<compile_context>
chip_gen: v7x
topology: tpu7x:2x2x1
jax: 0.10.0
libtpu: 0.0.40
codegen_flags: <defaults>
</compile_context>

<pallas_src>
import functools

import jax
import jax.numpy as jnp
from jax import lax
from jax.experimental import pallas as pl
from jax.experimental.pallas import tpu as pltpu

_SQRT_HALF = 0.7071067811865476


def _gelu_exact(v):
    return 0.5 * v * (1.0 + lax.erf(v * _SQRT_HALF))


def _pick_tile(S, cap=2048):
    """Largest divisor of S that is a multiple of 128 and <= cap; S itself if S % 128 != 0."""
    if S % 128 != 0:
        return S
    cap = max(128, cap)
    best, d = 128, 128
    while d <= min(S, cap):
        if S % d == 0:
            best = d
        d += 128
    return best


# --------------------------------------------------------------------------------------
# Pallas kernels (all channels-first: lane axis = flattened spatial / frequency extent)
# --------------------------------------------------------------------------------------
def _cf_linear_kernel(h_ref, wt_ref, b_ref, o_ref, *, apply_gelu):
    # h: (1, K, ts), wt: (N, K), b: (N, 1)  ->  o: (1, N, ts)
    acc = jnp.dot(wt_ref[...], h_ref[0], preferred_element_type=jnp.float32)
    acc = acc + b_ref[...]
    if apply_gelu:
        acc = _gelu_exact(acc)
    o_ref[0] = acc.astype(o_ref.dtype)


def _cf_linear_res_kernel(h_ref, wt_ref, b_ref, x1_ref, o_ref, *, apply_gelu):
    # fused: o = act( Wᵀ h + b + x1 )    (1x1 conv + spectral residual + GELU)
    acc = jnp.dot(wt_ref[...], h_ref[0], preferred_element_type=jnp.float32)
    acc = acc + b_ref[...] + x1_ref[0]
    if apply_gelu:
        acc = _gelu_exact(acc)
    o_ref[0] = acc.astype(o_ref.dtype)


def _cf_mlp_head_kernel(h_ref, w1t_ref, b1_ref, w2t_ref, b2_ref, o_ref):
    # fused fc1 + GELU + fc2; the (128, ts) hidden stays in VMEM/vregs.
    t = jnp.dot(w1t_ref[...], h_ref[0], preferred_element_type=jnp.float32) + b1_ref[...]
    t = _gelu_exact(t)
    o = jnp.dot(w2t_ref[...], t, preferred_element_type=jnp.float32) + b2_ref[...]
    o_ref[0] = o.astype(o_ref.dtype)


def _spectral_kernel(xr_ref, xi_ref, wr_ref, wi_ref, or_ref, oi_ref):
    # per-frequency channel mix: out[o,f] = sum_i x[i,f] * w[i,o,f]   (complex, real/imag split)
    xr = xr_ref[0][:, None, :]          # (Cin, 1, tf)
    xi = xi_ref[0][:, None, :]
    wr = wr_ref[...]                    # (Cin, Cout, tf)
    wi = wi_ref[...]
    or_ref[0] = jnp.sum(xr * wr - xi * wi, axis=0)
    oi_ref[0] = jnp.sum(xr * wi + xi * wr, axis=0)


# --------------------------------------------------------------------------------------
# Wrappers
# --------------------------------------------------------------------------------------
_PARAMS = pltpu.CompilerParams(dimension_semantics=("parallel", "parallel"),
                               vmem_limit_bytes=32 * 1024 * 1024)


def cf_linear_pallas(h, w, b, *, apply_gelu=False, tile_cap=2048):
    """h: (B, K, S) channels-first, w: (K, N), b: (N,)  ->  (B, N, S)."""
    B, K, S = h.shape
    N = w.shape[1]
    ts = _pick_tile(S, tile_cap)
    return pl.pallas_call(
        functools.partial(_cf_linear_kernel, apply_gelu=apply_gelu),
        out_shape=jax.ShapeDtypeStruct((B, N, S), jnp.float32),
        grid=(S // ts, B),
        in_specs=[
            pl.BlockSpec((1, K, ts), lambda s, bb: (bb, 0, s)),
            pl.BlockSpec((N, K), lambda s, bb: (0, 0)),
            pl.BlockSpec((N, 1), lambda s, bb: (0, 0)),
        ],
        out_specs=pl.BlockSpec((1, N, ts), lambda s, bb: (bb, 0, s)),
        compiler_params=_PARAMS,
    )(h, w.T, b.reshape(N, 1))


def cf_linear_res_pallas(h, w, b, x1, *, apply_gelu, tile_cap=2048):
    """Fused per-layer pointwise path: act(h·W + b + x1).  h, x1: (B, C, S)."""
    B, K, S = h.shape
    N = w.shape[1]
    ts = _pick_tile(S, tile_cap)
    return pl.pallas_call(
        functools.partial(_cf_linear_res_kernel, apply_gelu=apply_gelu),
        out_shape=jax.ShapeDtypeStruct((B, N, S), jnp.float32),
        grid=(S // ts, B),
        in_specs=[
            pl.BlockSpec((1, K, ts), lambda s, bb: (bb, 0, s)),
            pl.BlockSpec((N, K), lambda s, bb: (0, 0)),
            pl.BlockSpec((N, 1), lambda s, bb: (0, 0)),
            pl.BlockSpec((1, N, ts), lambda s, bb: (bb, 0, s)),
        ],
        out_specs=pl.BlockSpec((1, N, ts), lambda s, bb: (bb, 0, s)),
        compiler_params=_PARAMS,
    )(h, w.T, b.reshape(N, 1), x1)


def cf_mlp_head_pallas(h, w1, b1, w2, b2, *, tile_cap=512):
    """Fused fc1 + GELU + fc2.  h: (B, C, S) -> (B, num_channels, S)."""
    B, C, S = h.shape
    Nh = w1.shape[1]
    No = w2.shape[1]
    ts = _pick_tile(S, tile_cap)
    return pl.pallas_call(
        _cf_mlp_head_kernel,
        out_shape=jax.ShapeDtypeStruct((B, No, S), jnp.float32),
        grid=(S // ts, B),
        in_specs=[
            pl.BlockSpec((1, C, ts), lambda s, bb: (bb, 0, s)),
            pl.BlockSpec((Nh, C), lambda s, bb: (0, 0)),
            pl.BlockSpec((Nh, 1), lambda s, bb: (0, 0)),
            pl.BlockSpec((No, Nh), lambda s, bb: (0, 0)),
            pl.BlockSpec((No, 1), lambda s, bb: (0, 0)),
        ],
        out_specs=pl.BlockSpec((1, No, ts), lambda s, bb: (bb, 0, s)),
        compiler_params=_PARAMS,
    )(h, w1.T, b1.reshape(Nh, 1), w2.T, b2.reshape(No, 1))


def _pick_f_tile(Fa, B, Cin, Cout, budget_bytes=16 * 1024 * 1024):
    # double-buffered f32 blocks resident per f-column: x(r,i) + w(r,i) + out(r,i)
    per_f = 2 * 4 * (2 * B * Cin + 2 * Cin * Cout + 2 * B * Cout)
    return _pick_tile(Fa, cap=max(128, budget_bytes // per_f))


def spectral_mul_pallas(xr, xi, wr, wi):
    """out[b,o,f] = sum_i x[b,i,f]*w[i,o,f] (complex, split).  x: (B,Cin,Fa), w: (Cin,Cout,Fa)."""
    B, Cin, Fa = xr.shape
    Cout = wr.shape[1]
    tf = _pick_f_tile(Fa, B, Cin, Cout)
    return pl.pallas_call(
        _spectral_kernel,
        out_shape=(jax.ShapeDtypeStruct((B, Cout, Fa), jnp.float32),
                   jax.ShapeDtypeStruct((B, Cout, Fa), jnp.float32)),
        grid=(Fa // tf, B),             # weight block reused across the inner batch steps
        in_specs=[
            pl.BlockSpec((1, Cin, tf), lambda f, bb: (bb, 0, f)),
            pl.BlockSpec((1, Cin, tf), lambda f, bb: (bb, 0, f)),
            pl.BlockSpec((Cin, Cout, tf), lambda f, bb: (0, 0, f)),
            pl.BlockSpec((Cin, Cout, tf), lambda f, bb: (0, 0, f)),
        ],
        out_specs=[
            pl.BlockSpec((1, Cout, tf), lambda f, bb: (bb, 0, f)),
            pl.BlockSpec((1, Cout, tf), lambda f, bb: (bb, 0, f)),
        ],
        compiler_params=_PARAMS,
    )(xr, xi, wr, wi)


# --------------------------------------------------------------------------------------
# Spectral conv (MoE): compact active-mode weight assembly + FFT glue + Pallas multiply
# --------------------------------------------------------------------------------------
def assemble_compact_weights(cp, cfg):
    """Dense (Cin, Cout, 2*m1*ers, m2*ers) weights over ONLY the active frequency blocks."""
    m1, m2 = cfg["modes1"], cfg["modes2"]
    ers = cfg["expert_region_size"]
    ne = cfg["num_experts"]
    scaling = cfg["scaling"]
    assert ers * ers == ne + 1, "compact assembly requires num_experts + 1 to be a perfect square"
    Cin, Cout = cp["weights1"].shape[0], cp["weights1"].shape[1]

    g1 = jax.nn.sigmoid(cp["gates1"])                  # temperature = 1.0, gate_on_data=False
    g2 = jax.nn.sigmoid(cp["gates2"])
    # batched LoRA expansion over all experts: lw[e,i,o,x,y] = s * sum_r b[e,o,r,x,y] * a[e,r,i]
    lw1 = (scaling * jnp.einsum("eorxy,eri->eioxy", cp["lora_b1"], cp["lora_a1"])
           * g1[:, None, None, None, None])
    lw2 = (scaling * jnp.einsum("eorxy,eri->eioxy", cp["lora_b2"], cp["lora_a2"])
           * g2[:, None, None, None, None])

    # positions 0..ers*ers-1 in row-major (ri, ci) order: 0 = base weights, p = e+1 for expert e
    blocks1 = jnp.concatenate([cp["weights1"][None], lw1], axis=0)
    blocks2 = jnp.concatenate([cp["weights2"][None], lw2], axis=0)

    def grid_to_dense(blocks, flip_row_bands):
        b = blocks.reshape(ers, ers, Cin, Cout, m1, m2)
        if flip_row_bands:                             # mirrored row-band order for bottom half
            b = b[::-1]
        b = jnp.transpose(b, (2, 3, 0, 4, 1, 5))       # (Cin, Cout, ers, m1, ers, m2)
        return b.reshape(Cin, Cout, ers * m1, ers * m2)

    top = grid_to_dense(blocks1, False)                # spectrum rows [0, m1*ers)
    bot = grid_to_dense(blocks2, True)                 # spectrum rows [Hp - m1*ers, Hp)
    return jnp.concatenate([top, bot], axis=2)         # (Cin, Cout, 2*m1*ers, m2*ers)


def spectral_conv_moe(cp, h, cfg):
    """h: (B, C, Hp, Wp) float32 (NCHW).  Returns (out NCHW, sparsity loss)."""
    B, C, Hp, Wp = h.shape
    m1, m2, ers = cfg["modes1"], cfg["modes2"], cfg["expert_region_size"]
    R, Cc = m1 * ers, m2 * ers
    # TODO(synk): rfft2 / irfft2 have no Pallas equivalent; they stay in plain JAX (jnp.fft).
    x_ft = jnp.fft.rfft2(h, axes=(2, 3))               # (B, C, Hp, Wf) complex64
    Wf = x_ft.shape[-1]
    assert Hp >= 2 * R and Wf >= Cc, "active mode blocks must fit the spectrum without overlap"

    # only the active modes carry non-zero weights -> compact (B, C, 2R, Cc) problem
    x_act = jnp.concatenate([x_ft[:, :, :R, :Cc], x_ft[:, :, Hp - R:, :Cc]], axis=2)
    w_act = assemble_compact_weights(cp, cfg)          # (C, C, 2R, Cc) complex64
    Fa = 2 * R * Cc
    xr = jnp.real(x_act).reshape(B, C, Fa)
    xi = jnp.imag(x_act).reshape(B, C, Fa)
    wr = jnp.real(w_act).reshape(C, C, Fa)
    wi = jnp.imag(w_act).reshape(C, C, Fa)

    or_, oi = spectral_mul_pallas(xr, xi, wr, wi)      # hot path: complex einsum in Pallas
    out_act = (or_ + 1j * oi).reshape(B, C, 2 * R, Cc).astype(jnp.complex64)

    out_ft = jnp.zeros((B, C, Hp, Wf), jnp.complex64)
    out_ft = out_ft.at[:, :, :R, :Cc].set(out_act[:, :, :R])
    out_ft = out_ft.at[:, :, Hp - R:, :Cc].set(out_act[:, :, R:])
    out = jnp.fft.irfft2(out_ft, s=(Hp, Wp), axes=(2, 3)).astype(jnp.float32)

    sploss = jnp.mean(jax.nn.sigmoid(cp["gates1"])) + jnp.mean(jax.nn.sigmoid(cp["gates2"]))
    return out, sploss


# --------------------------------------------------------------------------------------
# Full GatedFreqMoE forward (channels-first activations, lane-dense everywhere)
# --------------------------------------------------------------------------------------
def gated_freq_moe_forward(params, x, grid, cfg):
    B, H, W, _ = x.shape
    width = cfg["width"]
    padding = 2

    xg = jnp.concatenate([x, grid], axis=-1)                      # (B, H, W, in_feat)
    xg = jnp.transpose(xg, (0, 3, 1, 2)).reshape(B, -1, H * W)    # channels-first, spatial on lanes
    h = cf_linear_pallas(xg, params["fc0_w"], params["fc0_b"])    # (B, width, H*W)
    h = h.reshape(B, width, H, W)
    # PyTorch F.pad(x, [0,2,0,2]) on NCHW: pad W then H on the high side.
    h = jnp.pad(h, ((0, 0), (0, 0), (0, padding), (0, padding)))
    Hp, Wp = H + padding, W + padding
    S = Hp * Wp

    sparsity_loss = 0.0
    for layer in range(4):
        x1, sploss = spectral_conv_moe(params["conv"][layer], h, cfg)       # (B, width, Hp, Wp)
        sparsity_loss = sparsity_loss + sploss
        # fused: 1x1 conv + spectral residual + (GELU for layers 0..2)
        h = cf_linear_res_pallas(h.reshape(B, width, S),
                                 params["w_w"][layer], params["w_b"][layer],
                                 x1.reshape(B, width, S),
                                 apply_gelu=(layer < 3))
        h = h.reshape(B, width, Hp, Wp)

    h = h[:, :, :H, :W].reshape(B, width, H * W)                  # crop padding
    out = cf_mlp_head_pallas(h, params["fc1_w"], params["fc1_b"],
                             params["fc2_w"], params["fc2_b"])    # (B, num_channels, H*W)
    out = jnp.transpose(out, (0, 2, 1)).reshape(B, H, W, 1, cfg["num_channels"])   # unsqueeze(-2)
    return out, sparsity_loss


# --------------------------------------------------------------------------------------
# Deterministic parameter init (synthetic; shapes match the PyTorch module)
# --------------------------------------------------------------------------------------
class _KeyGen:
    def __init__(self, key):
        self._key = key

    def __call__(self):
        self._key, sub = jax.random.split(self._key)
        return sub


def init_params(key, cfg):
    kg = _KeyGen(key)
    width = cfg["width"]
    m1, m2 = cfg["modes1"], cfg["modes2"]
    rank, ne = cfg["rank"], cfg["num_experts"]
    in_feat = cfg["initial_step"] * cfg["num_channels"] + 2
    scale = 1.0 / (width * width)

    def nrm(shape, s=0.1):
        return s * jax.random.normal(kg(), shape, jnp.float32)

    def crand(shape, s):  # ~ s * torch.rand(..., dtype=cfloat)
        return (s * (jax.random.uniform(kg(), shape) + 1j * jax.random.uniform(kg(), shape))
                ).astype(jnp.complex64)

    def cnorm(shape, s):  # ~ s * torch.randn(..., dtype=cfloat)
        return (s * (jax.random.normal(kg(), shape) + 1j * jax.random.normal(kg(), shape))
                ).astype(jnp.complex64)

    params = {
        "fc0_w": nrm((in_feat, width)), "fc0_b": nrm((width,)),
        "fc1_w": nrm((width, 128)), "fc1_b": nrm((128,)),
        "fc2_w": nrm((128, cfg["num_channels"])), "fc2_b": nrm((cfg["num_channels"],)),
        "w_w": [nrm((width, width)) for _ in range(4)],
        "w_b": [nrm((width,)) for _ in range(4)],
        "conv": [],
    }
    for _ in range(4):
        conv = {
            "weights1": crand((width, width, m1, m2), scale),
            "weights2": crand((width, width, m1, m2), scale),
            "lora_a1": cnorm((ne, rank, width), 0.02),
            "lora_b1": cnorm((ne, width, rank, m1, m2), 0.02),
            "lora_a2": cnorm((ne, rank, width), 0.02),
            "lora_b2": cnorm((ne, width, rank, m1, m2), 0.02),
            "gates1": jnp.zeros((ne,), jnp.float32),   # PyTorch init: zeros
            "gates2": jnp.zeros((ne,), jnp.float32),
        }
        params["conv"].append(conv)
    return params


# --------------------------------------------------------------------------------------
if __name__ == "__main__":
    num_channels = 2
    initial_step = 2
    width = 8
    modes1 = modes2 = 2
    rank = 4
    num_experts = 15
    B, H, W = 2, 16, 16

    cfg = {
        "num_channels": num_channels,
        "initial_step": initial_step,
        "width": width,
        "modes1": modes1,
        "modes2": modes2,
        "rank": rank,
        "scaling": 0.1,
        "num_experts": num_experts,
        "expert_region_size": int((num_experts + 1) ** 0.5),
    }

    root = jax.random.PRNGKey(0)
    kp, kx = jax.random.split(root)
    params = init_params(kp, cfg)

    x = jax.random.normal(kx, (B, H, W, initial_step * num_channels), jnp.float32)
    gy = jnp.linspace(0.0, 1.0, H)
    gx = jnp.linspace(0.0, 1.0, W)
    gyy, gxx = jnp.meshgrid(gy, gx, indexing="ij")
    grid = jnp.broadcast_to(jnp.stack([gyy, gxx], axis=-1)[None], (B, H, W, 2)).astype(jnp.float32)

    fwd = jax.jit(functools.partial(gated_freq_moe_forward, cfg=cfg))
    out, sploss = fwd(params, x, grid)
    jax.block_until_ready((out, sploss))

    assert out.shape == (B, H, W, 1, num_channels)
    print("KERNEL_OK")
</pallas_src>

<mosaic_0001>
module attributes {stable_mosaic.version = 11 : i64} {
  func.func @_cf_linear_kernel(%arg0: i32, %arg1: i32, %arg2: memref<1x6x256xf32, #tpu.memory_space<vmem>>, %arg3: memref<8x6xf32, #tpu.memory_space<vmem>>, %arg4: memref<8x1xf32, #tpu.memory_space<vmem>>, %arg5: memref<1x8x256xf32, #tpu.memory_space<vmem>>) attributes {dimension_semantics = [#tpu.dimension_semantics<parallel>, #tpu.dimension_semantics<parallel>], iteration_bounds = array<i64: 1, 2>, scalar_prefetch = 0 : i64, scratch_operands = 0 : i64, tpu.core_type = #tpu.core_type<tc>, window_params = [{transform_indices = @transform_0, window_bounds = array<i64: 1, 6, 256>}, {pipeline_mode = #tpu.pipeline_mode<synchronous>, transform_indices = @transform_1, window_bounds = array<i64: 8, 6>}, {pipeline_mode = #tpu.pipeline_mode<synchronous>, transform_indices = @transform_2, window_bounds = array<i64: 8, 1>}, {transform_indices = @transform_3, window_bounds = array<i64: 1, 8, 256>}]} {
    %c0 = arith.constant 0 : index
    %c0_0 = arith.constant 0 : index
    %0 = vector.load %arg3[%c0, %c0_0] : memref<8x6xf32, #tpu.memory_space<vmem>>, vector<8x6xf32>
    %c0_1 = arith.constant 0 : index
    %c0_2 = arith.constant 0 : index
    %c0_3 = arith.constant 0 : index
    %1 = vector.load %arg2[%c0_1, %c0_2, %c0_3] : memref<1x6x256xf32, #tpu.memory_space<vmem>>, vector<1x6x256xf32>
    %2 = vector.shape_cast %1 : vector<1x6x256xf32> to vector<6x256xf32>
    %cst = arith.constant dense<0.000000e+00> : vector<8x256xf32>
    %3 = tpu.matmul %0, %2, %cst {dimension_numbers = #tpu.dot_dimension_numbers<[1], [0], [0], [1], [0, 0, 1, 1], [], []>} : vector<8x6xf32>, vector<6x256xf32>, vector<8x256xf32> -> vector<8x256xf32>
    %c0_4 = arith.constant 0 : index
    %c0_5 = arith.constant 0 : index
    %4 = vector.load %arg4[%c0_4, %c0_5] : memref<8x1xf32, #tpu.memory_space<vmem>>, vector<8x1xf32>
    %5 = vector.broadcast %4 : vector<8x1xf32> to vector<8x256xf32>
    %6 = arith.addf %3, %5 : vector<8x256xf32>
    %c0_6 = arith.constant 0 : index
    %c0_7 = arith.constant 0 : index
    %c0_8 = arith.constant 0 : index
    %7 = vector.load %arg5[%c0_6, %c0_7, %c0_8] : memref<1x8x256xf32, #tpu.memory_space<vmem>>, vector<1x8x256xf32>
    %8 = vector.shape_cast %7 : vector<1x8x256xf32> to vector<8x256xf32>
    %9 = vector.shape_cast %6 : vector<8x256xf32> to vector<1x8x256xf32>
    tpu.vector_store %arg5[%c0_6, %c0_7, %c0_8], %9 {strides = array<i32>} : memref<1x8x256xf32, #tpu.memory_space<vmem>>, vector<1x8x256xf32>,
    return
  }
  func.func @transform_0(%arg0: i32, %arg1: i32) -> (i32, i32, i32) {
    %c0_i32 = arith.constant 0 : i32
    %c0_i32_0 = arith.constant 0 : i32
    return %arg1, %c0_i32, %arg0 : i32, i32, i32
  }
  func.func @transform_1(%arg0: i32, %arg1: i32) -> (i32, i32) {
    %c0_i32 = arith.constant 0 : i32
    %c0_i32_0 = arith.constant 0 : i32
    %c0_i32_1 = arith.constant 0 : i32
    return %c0_i32, %c0_i32_0 : i32, i32
  }
  func.func @transform_2(%arg0: i32, %arg1: i32) -> (i32, i32) {
    %c0_i32 = arith.constant 0 : i32
    %c0_i32_0 = arith.constant 0 : i32
    %c0_i32_1 = arith.constant 0 : i32
    return %c0_i32, %c0_i32_0 : i32, i32
  }
  func.func @transform_3(%arg0: i32, %arg1: i32) -> (i32, i32, i32) {
    %c0_i32 = arith.constant 0 : i32
    %c0_i32_0 = arith.constant 0 : i32
    return %arg1, %c0_i32, %arg0 : i32, i32, i32
  }
}

module attributes {stable_mosaic.version = 11 : i64} {
  func.func @_spectral_kernel(%arg0: i32, %arg1: i32, %arg2: memref<1x8x128xf32, #tpu.memory_space<vmem>>, %arg3: memref<1x8x128xf32, #tpu.memory_space<vmem>>, %arg4: memref<8x8x128xf32, #tpu.memory_space<vmem>>, %arg5: memref<8x8x128xf32, #tpu.memory_space<vmem>>, %arg6: memref<1x8x128xf32, #tpu.memory_space<vmem>>, %arg7: memref<1x8x128xf32, #tpu.memory_space<vmem>>) attributes {dimension_semantics = [#tpu.dimension_semantics<parallel>, #tpu.dimension_semantics<parallel>], iteration_bounds = array<i64: 1, 2>, scalar_prefetch = 0 : i64, scratch_operands = 0 : i64, tpu.core_type = #tpu.core_type<tc>, window_params = [{transform_indices = @transform_0, window_bounds = array<i64: 1, 8, 128>}, {transform_indices = @transform_1, window_bounds = array<i64: 1, 8, 128>}, {transform_indices = @transform_2, window_bounds = array<i64: 8, 8, 128>}, {transform_indices = @transform_3, window_bounds = array<i64: 8, 8, 128>}, {transform_indices = @transform_4, window_bounds = array<i64: 1, 8, 128>}, {transform_indices = @transform_5, window_bounds = array<i64: 1, 8, 128>}]} {
    %c0 = arith.constant 0 : index
    %c0_0 = arith.constant 0 : index
    %c0_1 = arith.constant 0 : index
    %0 = vector.load %arg2[%c0, %c0_0, %c0_1] : memref<1x8x128xf32, #tpu.memory_space<vmem>>, vector<1x8x128xf32>
    %1 = vector.shape_cast %0 : vector<1x8x128xf32> to vector<8x128xf32>
    %2 = vector.shape_cast %1 : vector<8x128xf32> to vector<8x1x128xf32>
    %c0_2 = arith.constant 0 : index
    %c0_3 = arith.constant 0 : index
    %c0_4 = arith.constant 0 : index
    %3 = vector.load %arg3[%c0_2, %c0_3, %c0_4] : memref<1x8x128xf32, #tpu.memory_space<vmem>>, vector<1x8x128xf32>
    %4 = vector.shape_cast %3 : vector<1x8x128xf32> to vector<8x128xf32>
    %5 = vector.shape_cast %4 : vector<8x128xf32> to vector<8x1x128xf32>
    %c0_5 = arith.constant 0 : index
    %c0_6 = arith.constant 0 : index
    %c0_7 = arith.constant 0 : index
    %6 = vector.load %arg4[%c0_5, %c0_6, %c0_7] : memref<8x8x128xf32, #tpu.memory_space<vmem>>, vector<8x8x128xf32>
    %c0_8 = arith.constant 0 : index
    %c0_9 = arith.constant 0 : index
    %c0_10 = arith.constant 0 : index
    %7 = vector.load %arg5[%c0_8, %c0_9, %c0_10] : memref<8x8x128xf32, #tpu.memory_space<vmem>>, vector<8x8x128xf32>
    %8 = vector.broadcast %2 : vector<8x1x128xf32> to vector<8x8x128xf32>
    %9 = arith.mulf %8, %6 : vector<8x8x128xf32>
    %10 = vector.broadcast %5 : vector<8x1x128xf32> to vector<8x8x128xf32>
    %11 = arith.mulf %10, %7 : vector<8x8x128xf32>
    %12 = arith.subf %9, %11 : vector<8x8x128xf32>
    %cst = arith.constant dense<0.000000e+00> : vector<8x128xf32>
    %13 = vector.multi_reduction <add>, %12, %cst [0] : vector<8x8x128xf32> to vector<8x128xf32>
    %c0_11 = arith.constant 0 : index
    %c0_12 = arith.constant 0 : index
    %c0_13 = arith.constant 0 : index
    %14 = vector.load %arg6[%c0_11, %c0_12, %c0_13] : memref<1x8x128xf32, #tpu.memory_space<vmem>>, vector<1x8x128xf32>
    %15 = vector.shape_cast %14 : vector<1x8x128xf32> to vector<8x128xf32>
    %16 = vector.shape_cast %13 : vector<8x128xf32> to vector<1x8x128xf32>
    tpu.vector_store %arg6[%c0_11, %c0_12, %c0_13], %16 {strides = array<i32>} : memref<1x8x128xf32, #tpu.memory_space<vmem>>, vector<1x8x128xf32>,
    %17 = vector.broadcast %2 : vector<8x1x128xf32> to vector<8x8x128xf32>
    %18 = arith.mulf %17, %7 : vector<8x8x128xf32>
    %19 = vector.broadcast %5 : vector<8x1x128xf32> to vector<8x8x128xf32>
    %20 = arith.mulf %19, %6 : vector<8x8x128xf32>
    %21 = arith.addf %18, %20 : vector<8x8x128xf32>
    %cst_14 = arith.constant dense<0.000000e+00> : vector<8x128xf32>
    %22 = vector.multi_reduction <add>, %21, %cst_14 [0] : vector<8x8x128xf32> to vector<8x128xf32>
    %c0_15 = arith.constant 0 : index
    %c0_16 = arith.constant 0 : index
    %c0_17 = arith.constant 0 : index
    %23 = vector.load %arg7[%c0_15, %c0_16, %c0_17] : memref<1x8x128xf32, #tpu.memory_space<vmem>>, vector<1x8x128xf32>
    %24 = vector.shape_cast %23 : vector<1x8x128xf32> to vector<8x128xf32>
    %25 = vector.shape_cast %22 : vector<8x128xf32> to vector<1x8x128xf32>
    tpu.vector_store %arg7[%c0_15, %c0_16, %c0_17], %25 {strides = array<i32>} : memref<1x8x128xf32, #tpu.memory_space<vmem>>, vector<1x8x128xf32>,
    return
  }
  func.func @transform_0(%arg0: i32, %arg1: i32) -> (i32, i32, i32) {
    %c0_i32 = arith.constant 0 : i32
    %c0_i32_0 = arith.constant 0 : i32
    return %arg1, %c0_i32, %arg0 : i32, i32, i32
  }
  func.func @transform_1(%arg0: i32, %arg1: i32) -> (i32, i32, i32) {
    %c0_i32 = arith.constant 0 : i32
    %c0_i32_0 = arith.constant 0 : i32
    return %arg1, %c0_i32, %arg0 : i32, i32, i32
  }
  func.func @transform_2(%arg0: i32, %arg1: i32) -> (i32, i32, i32) {
    %c0_i32 = arith.constant 0 : i32
    %c0_i32_0 = arith.constant 0 : i32
    %c0_i32_1 = arith.constant 0 : i32
    return %c0_i32, %c0_i32_0, %arg0 : i32, i32, i32
  }
  func.func @transform_3(%arg0: i32, %arg1: i32) -> (i32, i32, i32) {
    %c0_i32 = arith.constant 0 : i32
    %c0_i32_0 = arith.constant 0 : i32
    %c0_i32_1 = arith.constant 0 : i32
    return %c0_i32, %c0_i32_0, %arg0 : i32, i32, i32
  }
  func.func @transform_4(%arg0: i32, %arg1: i32) -> (i32, i32, i32) {
    %c0_i32 = arith.constant 0 : i32
    %c0_i32_0 = arith.constant 0 : i32
    return %arg1, %c0_i32, %arg0 : i32, i32, i32
  }
  func.func @transform_5(%arg0: i32, %arg1: i32) -> (i32, i32, i32) {
    %c0_i32 = arith.constant 0 : i32
    %c0_i32_0 = arith.constant 0 : i32
    return %arg1, %c0_i32, %arg0 : i32, i32, i32
  }
}

module attributes {stable_mosaic.version = 11 : i64} {
  func.func @_cf_linear_res_kernel(%arg0: i32, %arg1: i32, %arg2: memref<1x8x324xf32, #tpu.memory_space<vmem>>, %arg3: memref<8x8xf32, #tpu.memory_space<vmem>>, %arg4: memref<8x1xf32, #tpu.memory_space<vmem>>, %arg5: memref<1x8x324xf32, #tpu.memory_space<vmem>>, %arg6: memref<1x8x324xf32, #tpu.memory_space<vmem>>) attributes {dimension_semantics = [#tpu.dimension_semantics<parallel>, #tpu.dimension_semantics<parallel>], iteration_bounds = array<i64: 1, 2>, scalar_prefetch = 0 : i64, scratch_operands = 0 : i64, tpu.core_type = #tpu.core_type<tc>, window_params = [{transform_indices = @transform_0, window_bounds = array<i64: 1, 8, 324>}, {pipeline_mode = #tpu.pipeline_mode<synchronous>, transform_indices = @transform_1, window_bounds = array<i64: 8, 8>}, {pipeline_mode = #tpu.pipeline_mode<synchronous>, transform_indices = @transform_2, window_bounds = array<i64: 8, 1>}, {transform_indices = @transform_3, window_bounds = array<i64: 1, 8, 324>}, {transform_indices = @transform_4, window_bounds = array<i64: 1, 8, 324>}]} {
    %c0 = arith.constant 0 : index
    %c0_0 = arith.constant 0 : index
    %0 = vector.load %arg3[%c0, %c0_0] : memref<8x8xf32, #tpu.memory_space<vmem>>, vector<8x8xf32>
    %c0_1 = arith.constant 0 : index
    %c0_2 = arith.constant 0 : index
    %c0_3 = arith.constant 0 : index
    %1 = vector.load %arg2[%c0_1, %c0_2, %c0_3] : memref<1x8x324xf32, #tpu.memory_space<vmem>>, vector<1x8x324xf32>
    %2 = vector.shape_cast %1 : vector<1x8x324xf32> to vector<8x324xf32>
    %cst = arith.constant dense<0.000000e+00> : vector<8x324xf32>
    %3 = tpu.matmul %0, %2, %cst {dimension_numbers = #tpu.dot_dimension_numbers<[1], [0], [0], [1], [0, 0, 1, 1], [], []>} : vector<8x8xf32>, vector<8x324xf32>, vector<8x324xf32> -> vector<8x324xf32>
    %c0_4 = arith.constant 0 : index
    %c0_5 = arith.constant 0 : index
    %4 = vector.load %arg4[%c0_4, %c0_5] : memref<8x1xf32, #tpu.memory_space<vmem>>, vector<8x1xf32>
    %5 = vector.broadcast %4 : vector<8x1xf32> to vector<8x324xf32>
    %6 = arith.addf %3, %5 : vector<8x324xf32>
    %c0_6 = arith.constant 0 : index
    %c0_7 = arith.constant 0 : index
    %c0_8 = arith.constant 0 : index
    %7 = vector.load %arg5[%c0_6, %c0_7, %c0_8] : memref<1x8x324xf32, #tpu.memory_space<vmem>>, vector<1x8x324xf32>
    %8 = vector.shape_cast %7 : vector<1x8x324xf32> to vector<8x324xf32>
    %9 = arith.addf %6, %8 : vector<8x324xf32>
    %cst_9 = arith.constant 5.000000e-01 : f32
    %10 = vector.broadcast %cst_9 : f32 to vector<8x324xf32>
    %11 = arith.mulf %10, %9 : vector<8x324xf32>
    %cst_10 = arith.constant 0.707106769 : f32
    %12 = vector.broadcast %cst_10 : f32 to vector<8x324xf32>
    %13 = arith.mulf %9, %12 : vector<8x324xf32>
    %14 = math.erf %13 : vector<8x324xf32>
    %cst_11 = arith.constant 1.000000e+00 : f32
    %15 = vector.broadcast %cst_11 : f32 to vector<8x324xf32>
    %16 = arith.addf %15, %14 : vector<8x324xf32>
    %17 = arith.mulf %11, %16 : vector<8x324xf32>
    %c0_12 = arith.constant 0 : index
    %c0_13 = arith.constant 0 : index
    %c0_14 = arith.constant 0 : index
    %18 = vector.load %arg6[%c0_12, %c0_13, %c0_14] : memref<1x8x324xf32, #tpu.memory_space<vmem>>, vector<1x8x324xf32>
    %19 = vector.shape_cast %18 : vector<1x8x324xf32> to vector<8x324xf32>
    %20 = vector.shape_cast %17 : vector<8x324xf32> to vector<1x8x324xf32>
    tpu.vector_store %arg6[%c0_12, %c0_13, %c0_14], %20 {strides = array<i32>} : memref<1x8x324xf32, #tpu.memory_space<vmem>>, vector<1x8x324xf32>,
    return
  }
  func.func @transform_0(%arg0: i32, %arg1: i32) -> (i32, i32, i32) {
    %c0_i32 = arith.constant 0 : i32
    %c0_i32_0 = arith.constant 0 : i32
    return %arg1, %c0_i32, %arg0 : i32, i32, i32
  }
  func.func @transform_1(%arg0: i32, %arg1: i32) -> (i32, i32) {
    %c0_i32 = arith.constant 0 : i32
    %c0_i32_0 = arith.constant 0 : i32
    %c0_i32_1 = arith.constant 0 : i32
    return %c0_i32, %c0_i32_0 : i32, i32
  }
  func.func @transform_2(%arg0: i32, %arg1: i32) -> (i32, i32) {
    %c0_i32 = arith.constant 0 : i32
    %c0_i32_0 = arith.constant 0 : i32
    %c0_i32_1 = arith.constant 0 : i32
    return %c0_i32, %c0_i32_0 : i32, i32
  }
  func.func @transform_3(%arg0: i32, %arg1: i32) -> (i32, i32, i32) {
    %c0_i32 = arith.constant 0 : i32
    %c0_i32_0 = arith.constant 0 : i32
    return %arg1, %c0_i32, %arg0 : i32, i32, i32
  }
  func.func @transform_4(%arg0: i32, %arg1: i32) -> (i32, i32, i32) {
    %c0_i32 = arith.constant 0 : i32
    %c0_i32_0 = arith.constant 0 : i32
    return %arg1, %c0_i32, %arg0 : i32, i32, i32
  }
}

module attributes {stable_mosaic.version = 11 : i64} {
  func.func @_cf_linear_res_kernel(%arg0: i32, %arg1: i32, %arg2: memref<1x8x324xf32, #tpu.memory_space<vmem>>, %arg3: memref<8x8xf32, #tpu.memory_space<vmem>>, %arg4: memref<8x1xf32, #tpu.memory_space<vmem>>, %arg5: memref<1x8x324xf32, #tpu.memory_space<vmem>>, %arg6: memref<1x8x324xf32, #tpu.memory_space<vmem>>) attributes {dimension_semantics = [#tpu.dimension_semantics<parallel>, #tpu.dimension_semantics<parallel>], iteration_bounds = array<i64: 1, 2>, scalar_prefetch = 0 : i64, scratch_operands = 0 : i64, tpu.core_type = #tpu.core_type<tc>, window_params = [{transform_indices = @transform_0, window_bounds = array<i64: 1, 8, 324>}, {pipeline_mode = #tpu.pipeline_mode<synchronous>, transform_indices = @transform_1, window_bounds = array<i64: 8, 8>}, {pipeline_mode = #tpu.pipeline_mode<synchronous>, transform_indices = @transform_2, window_bounds = array<i64: 8, 1>}, {transform_indices = @transform_3, window_bounds = array<i64: 1, 8, 324>}, {transform_indices = @transform_4, window_bounds = array<i64: 1, 8, 324>}]} {
    %c0 = arith.constant 0 : index
    %c0_0 = arith.constant 0 : index
    %0 = vector.load %arg3[%c0, %c0_0] : memref<8x8xf32, #tpu.memory_space<vmem>>, vector<8x8xf32>
    %c0_1 = arith.constant 0 : index
    %c0_2 = arith.constant 0 : index
    %c0_3 = arith.constant 0 : index
    %1 = vector.load %arg2[%c0_1, %c0_2, %c0_3] : memref<1x8x324xf32, #tpu.memory_space<vmem>>, vector<1x8x324xf32>
    %2 = vector.shape_cast %1 : vector<1x8x324xf32> to vector<8x324xf32>
    %cst = arith.constant dense<0.000000e+00> : vector<8x324xf32>
    %3 = tpu.matmul %0, %2, %cst {dimension_numbers = #tpu.dot_dimension_numbers<[1], [0], [0], [1], [0, 0, 1, 1], [], []>} : vector<8x8xf32>, vector<8x324xf32>, vector<8x324xf32> -> vector<8x324xf32>
    %c0_4 = arith.constant 0 : index
    %c0_5 = arith.constant 0 : index
    %4 = vector.load %arg4[%c0_4, %c0_5] : memref<8x1xf32, #tpu.memory_space<vmem>>, vector<8x1xf32>
    %5 = vector.broadcast %4 : vector<8x1xf32> to vector<8x324xf32>
    %6 = arith.addf %3, %5 : vector<8x324xf32>
    %c0_6 = arith.constant 0 : index
    %c0_7 = arith.constant 0 : index
    %c0_8 = arith.constant 0 : index
    %7 = vector.load %arg5[%c0_6, %c0_7, %c0_8] : memref<1x8x324xf32, #tpu.memory_space<vmem>>, vector<1x8x324xf32>
    %8 = vector.shape_cast %7 : vector<1x8x324xf32> to vector<8x324xf32>
    %9 = arith.addf %6, %8 : vector<8x324xf32>
    %c0_9 = arith.constant 0 : index
    %c0_10 = arith.constant 0 : index
    %c0_11 = arith.constant 0 : index
    %10 = vector.load %arg6[%c0_9, %c0_10, %c0_11] : memref<1x8x324xf32, #tpu.memory_space<vmem>>, vector<1x8x324xf32>
    %11 = vector.shape_cast %10 : vector<1x8x324xf32> to vector<8x324xf32>
    %12 = vector.shape_cast %9 : vector<8x324xf32> to vector<1x8x324xf32>
    tpu.vector_store %arg6[%c0_9, %c0_10, %c0_11], %12 {strides = array<i32>} : memref<1x8x324xf32, #tpu.memory_space<vmem>>, vector<1x8x324xf32>,
    return
  }
  func.func @transform_0(%arg0: i32, %arg1: i32) -> (i32, i32, i32) {
    %c0_i32 = arith.constant 0 : i32
    %c0_i32_0 = arith.constant 0 : i32
    return %arg1, %c0_i32, %arg0 : i32, i32, i32
  }
  func.func @transform_1(%arg0: i32, %arg1: i32) -> (i32, i32) {
    %c0_i32 = arith.constant 0 : i32
    %c0_i32_0 = arith.constant 0 : i32
    %c0_i32_1 = arith.constant 0 : i32
    return %c0_i32, %c0_i32_0 : i32, i32
  }
  func.func @transform_2(%arg0: i32, %arg1: i32) -> (i32, i32) {
    %c0_i32 = arith.constant 0 : i32
    %c0_i32_0 = arith.constant 0 : i32
    %c0_i32_1 = arith.constant 0 : i32
    return %c0_i32, %c0_i32_0 : i32, i32
  }
  func.func @transform_3(%arg0: i32, %arg1: i32) -> (i32, i32, i32) {
    %c0_i32 = arith.constant 0 : i32
    %c0_i32_0 = arith.constant 0 : i32
    return %arg1, %c0_i32, %arg0 : i32, i32, i32
  }
  func.func @transform_4(%arg0: i32, %arg1: i32) -> (i32, i32, i32) {
    %c0_i32 = arith.constant 0 : i32
    %c0_i32_0 = arith.constant 0 : i32
    return %arg1, %c0_i32, %arg0 : i32, i32, i32
  }
}

module attributes {stable_mosaic.version = 11 : i64} {
  func.func @_cf_mlp_head_kernel(%arg0: i32, %arg1: i32, %arg2: memref<1x8x256xf32, #tpu.memory_space<vmem>>, %arg3: memref<128x8xf32, #tpu.memory_space<vmem>>, %arg4: memref<128x1xf32, #tpu.memory_space<vmem>>, %arg5: memref<2x128xf32, #tpu.memory_space<vmem>>, %arg6: memref<2x1xf32, #tpu.memory_space<vmem>>, %arg7: memref<1x2x256xf32, #tpu.memory_space<vmem>>) attributes {dimension_semantics = [#tpu.dimension_semantics<parallel>, #tpu.dimension_semantics<parallel>], iteration_bounds = array<i64: 1, 2>, scalar_prefetch = 0 : i64, scratch_operands = 0 : i64, tpu.core_type = #tpu.core_type<tc>, window_params = [{transform_indices = @transform_0, window_bounds = array<i64: 1, 8, 256>}, {pipeline_mode = #tpu.pipeline_mode<synchronous>, transform_indices = @transform_1, window_bounds = array<i64: 128, 8>}, {pipeline_mode = #tpu.pipeline_mode<synchronous>, transform_indices = @transform_2, window_bounds = array<i64: 128, 1>}, {pipeline_mode = #tpu.pipeline_mode<synchronous>, transform_indices = @transform_3, window_bounds = array<i64: 2, 128>}, {pipeline_mode = #tpu.pipeline_mode<synchronous>, transform_indices = @transform_4, window_bounds = array<i64: 2, 1>}, {transform_indices = @transform_5, window_bounds = array<i64: 1, 2, 256>}]} {
    %c0 = arith.constant 0 : index
    %c0_0 = arith.constant 0 : index
    %0 = vector.load %arg3[%c0, %c0_0] : memref<128x8xf32, #tpu.memory_space<vmem>>, vector<128x8xf32>
    %c0_1 = arith.constant 0 : index
    %c0_2 = arith.constant 0 : index
    %c0_3 = arith.constant 0 : index
    %1 = vector.load %arg2[%c0_1, %c0_2, %c0_3] : memref<1x8x256xf32, #tpu.memory_space<vmem>>, vector<1x8x256xf32>
    %2 = vector.shape_cast %1 : vector<1x8x256xf32> to vector<8x256xf32>
    %cst = arith.constant dense<0.000000e+00> : vector<128x256xf32>
    %3 = tpu.matmul %0, %2, %cst {dimension_numbers = #tpu.dot_dimension_numbers<[1], [0], [0], [1], [0, 0, 1, 1], [], []>} : vector<128x8xf32>, vector<8x256xf32>, vector<128x256xf32> -> vector<128x256xf32>
    %c0_4 = arith.constant 0 : index
    %c0_5 = arith.constant 0 : index
    %4 = vector.load %arg4[%c0_4, %c0_5] : memref<128x1xf32, #tpu.memory_space<vmem>>, vector<128x1xf32>
    %5 = vector.broadcast %4 : vector<128x1xf32> to vector<128x256xf32>
    %6 = arith.addf %3, %5 : vector<128x256xf32>
    %cst_6 = arith.constant 5.000000e-01 : f32
    %7 = vector.broadcast %cst_6 : f32 to vector<128x256xf32>
    %8 = arith.mulf %7, %6 : vector<128x256xf32>
    %cst_7 = arith.constant 0.707106769 : f32
    %9 = vector.broadcast %cst_7 : f32 to vector<128x256xf32>
    %10 = arith.mulf %6, %9 : vector<128x256xf32>
    %11 = math.erf %10 : vector<128x256xf32>
    %cst_8 = arith.constant 1.000000e+00 : f32
    %12 = vector.broadcast %cst_8 : f32 to vector<128x256xf32>
    %13 = arith.addf %12, %11 : vector<128x256xf32>
    %14 = arith.mulf %8, %13 : vector<128x256xf32>
    %c0_9 = arith.constant 0 : index
    %c0_10 = arith.constant 0 : index
    %15 = vector.load %arg5[%c0_9, %c0_10] : memref<2x128xf32, #tpu.memory_space<vmem>>, vector<2x128xf32>
    %cst_11 = arith.constant dense<0.000000e+00> : vector<2x256xf32>
    %16 = tpu.matmul %15, %14, %cst_11 {dimension_numbers = #tpu.dot_dimension_numbers<[1], [0], [0], [1], [0, 0, 1, 1], [], []>} : vector<2x128xf32>, vector<128x256xf32>, vector<2x256xf32> -> vector<2x256xf32>
    %c0_12 = arith.constant 0 : index
    %c0_13 = arith.constant 0 : index
    %17 = vector.load %arg6[%c0_12, %c0_13] : memref<2x1xf32, #tpu.memory_space<vmem>>, vector<2x1xf32>
    %18 = vector.broadcast %17 : vector<2x1xf32> to vector<2x256xf32>
    %19 = arith.addf %16, %18 : vector<2x256xf32>
    %c0_14 = arith.constant 0 : index
    %c0_15 = arith.constant 0 : index
    %c0_16 = arith.constant 0 : index
    %20 = vector.load %arg7[%c0_14, %c0_15, %c0_16] : memref<1x2x256xf32, #tpu.memory_space<vmem>>, vector<1x2x256xf32>
    %21 = vector.shape_cast %20 : vector<1x2x256xf32> to vector<2x256xf32>
    %22 = vector.shape_cast %19 : vector<2x256xf32> to vector<1x2x256xf32>
    tpu.vector_store %arg7[%c0_14, %c0_15, %c0_16], %22 {strides = array<i32>} : memref<1x2x256xf32, #tpu.memory_space<vmem>>, vector<1x2x256xf32>,
    return
  }
  func.func @transform_0(%arg0: i32, %arg1: i32) -> (i32, i32, i32) {
    %c0_i32 = arith.constant 0 : i32
    %c0_i32_0 = arith.constant 0 : i32
    return %arg1, %c0_i32, %arg0 : i32, i32, i32
  }
  func.func @transform_1(%arg0: i32, %arg1: i32) -> (i32, i32) {
    %c0_i32 = arith.constant 0 : i32
    %c0_i32_0 = arith.constant 0 : i32
    %c0_i32_1 = arith.constant 0 : i32
    return %c0_i32, %c0_i32_0 : i32, i32
  }
  func.func @transform_2(%arg0: i32, %arg1: i32) -> (i32, i32) {
    %c0_i32 = arith.constant 0 : i32
    %c0_i32_0 = arith.constant 0 : i32
    %c0_i32_1 = arith.constant 0 : i32
    return %c0_i32, %c0_i32_0 : i32, i32
  }
  func.func @transform_3(%arg0: i32, %arg1: i32) -> (i32, i32) {
    %c0_i32 = arith.constant 0 : i32
    %c0_i32_0 = arith.constant 0 : i32
    %c0_i32_1 = arith.constant 0 : i32
    return %c0_i32, %c0_i32_0 : i32, i32
  }
  func.func @transform_4(%arg0: i32, %arg1: i32) -> (i32, i32) {
    %c0_i32 = arith.constant 0 : i32
    %c0_i32_0 = arith.constant 0 : i32
    %c0_i32_1 = arith.constant 0 : i32
    return %c0_i32, %c0_i32_0 : i32, i32
  }
  func.func @transform_5(%arg0: i32, %arg1: i32) -> (i32, i32, i32) {
    %c0_i32 = arith.constant 0 : i32
    %c0_i32_0 = arith.constant 0 : i32
    return %arg1, %c0_i32, %arg0 : i32, i32, i32
  }
}

</mosaic_0001>

<llo_original>
// kernel: gated_freq_moe_forward.10
$region0: #{gated_freq_moe_forward.10}
  #allocation0 [shape = 'u32[]', space=smem, size = 0x4, offset = 0x4, fixed_abs, tag = 'smem constant byte address 0x4 - core index']
  #allocation1 [shape = 'u32[144,128]{1,0:T(1,128)}', space=vmem, size = 0x12000, scoped, tag = 'internal scratch']
  %s0 = inlined_call_operand.vmem [shape: f32[2,6,256], index: 0, kind: input, shape index: {}]
  %s1 = inlined_call_operand.vmem [shape: f32[8,6], index: 1, kind: input, shape index: {}]
  %s2 = inlined_call_operand.vmem [shape: f32[8,1], index: 2, kind: input, shape index: {}]
  %s3 = inlined_call_operand.vmem [shape: f32[2,8,256], index: 3, kind: output, shape index: {}]
  %s4 = sld [smem:[#allocation0]]
  $region45: #{gated_freq_moe_forward.10} parent=0
    _
  %s6 = ssub.s32 1, %s4
  %s7 = scalar_select 0, %s6, %s4
  loop: start=0, step=1, limit=4
  $region2: #{gated_freq_moe_forward.10} parent=0 // loop_pre_header
    _
  $region3: #{gated_freq_moe_forward.10} parent=0 // loop_header
    %s9 = sphi 0, %s13
    %p10 = scmp.ge.s32.totalorder %s9, 4
    %s16 = sphi 0, %s28
    %s17 = sphi 0, %s24
    %s18 = sphi 0, %s16
    %s19 = sphi 0, %s17
    %s20 = sphi 0, %s18
    %s21 = sphi 0, %s19
    %s33 = sphi 0, %s35
    %s36 = sphi 0, %s33
    %s37 = sphi 0, %s36
    %s53 = sphi 0, %s37
    %s57 = sphi 0, %s57
    %s59 = sphi 0, %s57
    %s60 = sphi 0, %s59
    %s74 = sphi 0, %s60
    %s78 = sphi 0, %s78
    %s80 = sphi 0, %s78
    %s81 = sphi 0, %s80
    %s95 = sphi 0, %s81
    %s103 = sphi 0, %s105
    %s106 = sphi 0, %s103
    %s107 = sphi 0, %s106
    %s123 = sphi 0, %s107
  $region4: #{gated_freq_moe_forward.10} parent=0 // loop_header_branch
    %12 = sbr.rel (%p10) target = $region8
  $region5: #{gated_freq_moe_forward.10} parent=0 // loop_body
    %s14 = ssub.s32 %s9, 1
    %s15 = ssub.s32 %s9, 2
    %s22 = sadd.s32 1, %s17
    %p23 = scmp.ge.s32.totalorder %s22, 2
    %s24 = scalar_select %p23, 0, %s22
    %s25 = sadd.s32 1, %s16
    %s26 = scalar_select %p23, %s25, %s16
    %p27 = scmp.ge.s32.totalorder %s26, 1
    %s28 = scalar_select %p27, 0, %s26
    %s29 = ssub.s32 %s17, %s24
    %s30 = ssub.s32 %s16, %s28
    %s31 = sor.u32 %s29, %s30
    %p32 = scmp.eq.s32.totalorder %s31, 0
    %s34 = sadd.s32 %s33, 1
    %s35 = scalar_select %p32, %s33, %s34
    %p38 = pneg %p32
    %p39 = scmp.eq.s32.totalorder %s9, 1
    %p40 = por %p38, %p39
    %p41 = scmp.ne.s32.totalorder %s33, %s36
    %p42 = scmp.eq.s32.totalorder %s9, 0
    %p43 = por %p41, %p42
    %p44 = scmp.ne.s32.totalorder %s33, %s36
    %p45 = scmp.eq.s32.totalorder %s14, 1
    %p46 = por %p44, %p45
    %p47 = scmp.ne.s32.totalorder %s36, %s37
    %p48 = scmp.eq.s32.totalorder %s14, 0
    %p49 = por %p47, %p48
    %p50 = scmp.ne.s32.totalorder %s36, %s37
    %p51 = scmp.eq.s32.totalorder %s15, 1
    %p52 = por %p50, %p51
    %p54 = scmp.ne.s32.totalorder %s37, %s53
    %p55 = scmp.eq.s32.totalorder %s15, 0
    %p56 = por %p54, %p55
    %s58 = sadd.s32 %s57, 1
    %p61 = scmp.eq.s32.totalorder %s9, 1
    %p62 = scmp.ne.s32.totalorder %s57, %s59
    %p63 = scmp.eq.s32.totalorder %s9, 0
    %p64 = por %p62, %p63
    %p65 = scmp.ne.s32.totalorder %s57, %s59
    %p66 = scmp.eq.s32.totalorder %s14, 1
    %p67 = por %p65, %p66
    %p68 = scmp.ne.s32.totalorder %s59, %s60
    %p69 = scmp.eq.s32.totalorder %s14, 0
    %p70 = por %p68, %p69
    %p71 = scmp.ne.s32.totalorder %s59, %s60
    %p72 = scmp.eq.s32.totalorder %s15, 1
    %p73 = por %p71, %p72
    %p75 = scmp.ne.s32.totalorder %s60, %s74
    %p76 = scmp.eq.s32.totalorder %s15, 0
    %p77 = por %p75, %p76
    %s79 = sadd.s32 %s78, 1
    %p82 = scmp.eq.s32.totalorder %s9, 1
    %p83 = scmp.ne.s32.totalorder %s78, %s80
    %p84 = scmp.eq.s32.totalorder %s9, 0
    %p85 = por %p83, %p84
    %p86 = scmp.ne.s32.totalorder %s78, %s80
    %p87 = scmp.eq.s32.totalorder %s14, 1
    %p88 = por %p86, %p87
    %p89 = scmp.ne.s32.totalorder %s80, %s81
    %p90 = scmp.eq.s32.totalorder %s14, 0
    %p91 = por %p89, %p90
    %p92 = scmp.ne.s32.totalorder %s80, %s81
    %p93 = scmp.eq.s32.totalorder %s15, 1
    %p94 = por %p92, %p93
    %p96 = scmp.ne.s32.totalorder %s81, %s95
    %p97 = scmp.eq.s32.totalorder %s15, 0
    %p98 = por %p96, %p97
    %s99 = ssub.s32 %s17, %s24
    %s100 = ssub.s32 %s16, %s28
    %s101 = sor.u32 %s99, %s100
    %p102 = scmp.eq.s32.totalorder %s101, 0
    %s104 = sadd.s32 %s103, 1
    %s105 = scalar_select %p102, %s103, %s104
    %p108 = pneg %p102
    %p109 = scmp.eq.s32.totalorder %s9, 1
    %p110 = por %p108, %p109
    %p111 = scmp.ne.s32.totalorder %s103, %s106
    %p112 = scmp.eq.s32.totalorder %s9, 0
    %p113 = por %p111, %p112
    %p114 = scmp.ne.s32.totalorder %s103, %s106
    %p115 = scmp.eq.s32.totalorder %s14, 1
    %p116 = por %p114, %p115
    %p117 = scmp.ne.s32.totalorder %s106, %s107
    %p118 = scmp.eq.s32.totalorder %s14, 0
    %p119 = por %p117, %p118
    %p120 = scmp.ne.s32.totalorder %s106, %s107
    %p121 = scmp.eq.s32.totalorder %s15, 1
    %p122 = por %p120, %p121
    %p124 = scmp.ne.s32.totalorder %s107, %s123
    %p125 = scmp.eq.s32.totalorder %s15, 0
    %p126 = por %p124, %p125
    %p127 = scmp.le.s32.totalorder 1, %s9
    %p128 = scmp.lt.s32.totalorder %s9, 3
    %p129 = pnand %p127, %p128
    %p130 = pneg %p129
    // Predicated region
    $region9: #{gated_freq_moe_forward.10} parent=5 // pred_check
      _
    $region10: #{gated_freq_moe_forward.10} parent=5 // pred_check_branch
      %132 = sbr.rel (%p129) target = $region12
    $region11: #{gated_freq_moe_forward.10} parent=5 // pred_region
      %s133 = ssub.s32 %s9, 1
      // Predicated region
      $region13: #{gated_freq_moe_forward.10} parent=11 // pred_check
        %p134 = pneg %p70
      $region14: #{gated_freq_moe_forward.10} parent=11 // pred_check_branch
        %136 = sbr.rel (%p134) target = $region16
      $region15: #{gated_freq_moe_forward.10} parent=11 // pred_region
        _
      $region16: #{gated_freq_moe_forward.10} parent=11 // pred_fallthru
        _
      // Predicated region
      $region17: #{gated_freq_moe_forward.10} parent=11 // pred_check
        %p137 = pneg %p91
      $region18: #{gated_freq_moe_forward.10} parent=11 // pred_check_branch
        %139 = sbr.rel (%p137) target = $region20
      $region19: #{gated_freq_moe_forward.10} parent=11 // pred_region
        _
      $region20: #{gated_freq_moe_forward.10} parent=11 // pred_fallthru
        _
    $region12: #{gated_freq_moe_forward.10} parent=5 // pred_fallthru
      _
    %p140 = scmp.lt.s32.totalorder %s9, 2
    // Predicated region
    $region21: #{gated_freq_moe_forward.10} parent=5 // pred_check
      %p141 = pneg %p140
    $region22: #{gated_freq_moe_forward.10} parent=5 // pred_check_branch
      %143 = sbr.rel (%p141) target = $region24
    $region23: #{gated_freq_moe_forward.10} parent=5 // pred_region
      // Predicated region
      $region25: #{gated_freq_moe_forward.10} parent=23 // pred_check
        %p144 = pneg %p43
      $region26: #{gated_freq_moe_forward.10} parent=23 // pred_check_branch
        %146 = sbr.rel (%p144) target = $region28
      $region27: #{gated_freq_moe_forward.10} parent=23 // pred_region
        %s147 = smul.u32 2, %s16
        %p148 = scmp.lt.s32.totalorder %s17, 1
        %s149 = scalar_select %p148, %s17, 1
        %p150 = scmp.lt.s32.totalorder %s147, 1
        %s151 = scalar_select %p150, %s147, 1
        %s152 = smul.addr %s149, 2
        %s153 = sadd.s32 %s151, %s152
        %s154 = smul.addr %s153, 8
        %s155 = scalar_lea.vmem %s0, %s154
        %s156 = smul.u32 2, %s16
      $region28: #{gated_freq_moe_forward.10} parent=23 // pred_fallthru
        _
    $region24: #{gated_freq_moe_forward.10} parent=5 // pred_fallthru
      _
    %p157 = scmp.le.s32.totalorder 1, %s9
    %p158 = scmp.lt.s32.totalorder %s9, 3
    %p159 = pnand %p157, %p158
    %p160 = pneg %p159
    // Predicated region
    $region29: #{gated_freq_moe_forward.10} parent=5 // pred_check
      _
    $region30: #{gated_freq_moe_forward.10} parent=5 // pred_check_branch
      %162 = sbr.rel (%p159) target = $region32
    $region31: #{gated_freq_moe_forward.10} parent=5 // pred_region
      %s163 = ssub.s32 %s9, 1
      %s164 = smul.u32 2, %s18
      %p165 = scmp.lt.s32.totalorder %s19, 1
      %s166 = scalar_select %p165, %s19, 1
      %p167 = scmp.lt.s32.totalorder %s164, 1
      %s168 = scalar_select %p167, %s164, 1
      %s169 = smul.addr %s166, 2
      %s170 = sadd.s32 %s168, %s169
      %s171 = smul.addr %s170, 8
      %s172 = scalar_lea.vmem %s0, %s171
      %p173 = pneg %p49
      %p174 = pneg %p46
      %p175 = pneg %p70
      %p176 = pneg %p67
      %p177 = pneg %p91
      %p178 = pneg %p88
      %p179 = pneg %p119
      %p180 = pneg %p116
      %s181 = smul.u32 2, %s18
      %p182 = scmp.lt.s32.totalorder %s19, 1
      %s183 = scalar_select %p182, %s19, 1
      %p184 = scmp.lt.s32.totalorder %s181, 1
      %s185 = scalar_select %p184, %s181, 1
      %s186 = smul.addr %s183, 2
      %s187 = sadd.s32 %s185, %s186
      %s188 = smul.addr %s187, 8
      %s189 = scalar_lea.vmem %s3, %s188
      %s190 = smul.u32 2, %s18
      %p191 = scmp.lt.s32.totalorder %s19, 1
      %s192 = scalar_select %p191, %s19, 1
      %p193 = scmp.lt.s32.totalorder %s190, 1
      %s194 = scalar_select %p193, %s190, 1
      %s195 = smul.addr %s192, 2
      %s196 = sadd.s32 %s194, %s195
      %s197 = smul.addr %s196, 8
      %s198 = scalar_lea.vmem %s0, %s197
      %s199 = smul.u32 2, %s18
      %s200 = smul.u32 2, %s18
      %p201 = scmp.lt.s32.totalorder %s19, 1
      %s202 = scalar_select %p201, %s19, 1
      %p203 = scmp.lt.s32.totalorder %s200, 1
      %s204 = scalar_select %p203, %s200, 1
      %s205 = smul.addr %s202, 2
      %s206 = sadd.s32 %s204, %s205
      %s207 = smul.addr %s206, 8
      %s208 = scalar_lea.vmem %s3, %s207
      %s209 = smul.u32 2, %s18
      %v210 = vld [vmem:[%s1] sm:$0xff]
      %v211 = vld [vmem:[%s198] sm:$0x3f]
      %v212 = vld [vmem:[%s198 + $0x8] sm:$0x3f]
      %v213 = vld [vmem:[%s2] sm:$0xff]
      %215 = vset.pattern.permute.xlu0 0
      %216 = vperm.xlu0 %215, %v213
      %v217 = vpop.permute.xlu0 %216
      %vm219 = vcmask 48128
      %v221 = vsel %vm219, %v210, 0
      %vm223 = vcmask 1045504
      %v225 = vsel %vm223, %v211, 0
      %v228 = vsel %vm223, %v212, 0
      %230 = vmatprep.subr.mxu0 %v228
      %231 = vmatpush1.msra.mxu0 %v225
      %232 = vmatprep.subr.mxu0 0.0
      %233 = vmatpush1.msra.mxu0 0.0
      %234 = vmatprep.subr.mxu0 0.0
      %235 = vmatpush1.msra.mxu0 0.0
      %236 = vmatprep.subr.mxu0 0.0
      %237 = vmatpush1.msra.mxu0 0.0
      %238 = vmatprep.subr.mxu0 0.0
      %239 = vmatpush1.msra.mxu0 0.0
      %240 = vmatprep.subr.mxu0 0.0
      %241 = vmatpush1.msra.mxu0 0.0
      %242 = vmatprep.subr.mxu0 0.0
      %243 = vmatpush1.msra.mxu0 0.0
      %244 = vmatprep.subr.mxu0 0.0
      %245 = vmatpush1.msra.mxu0 0.0
      %246 = vmatprep.subr.mxu0 0.0
      %247 = vmatpush1.msra.mxu0 0.0
      %248 = vmatprep.subr.mxu0 0.0
      %249 = vmatpush1.msra.mxu0 0.0
      %250 = vmatprep.subr.mxu0 0.0
      %251 = vmatpush1.msra.mxu0 0.0
      %252 = vmatprep.subr.mxu0 0.0
      %253 = vmatpush1.msra.mxu0 0.0
      %254 = vmatprep.subr.mxu0 0.0
      %255 = vmatpush1.msra.mxu0 0.0
      %256 = vmatprep.subr.mxu0 0.0
      %257 = vmatpush1.msra.mxu0 0.0
      %258 = vmatprep.subr.mxu0 0.0
      %259 = vmatpush1.msra.mxu0 0.0
      %260 = vmatprep.subr.mxu0 0.0
      %261 = vmatpush1.msra.mxu0 0.0
      %262 = vmatprep.subr.mxu0 0.0
      %263 = vmatpush1.msra.mxu0 0.0
      %264 = vmatprep.subr.mxu0 0.0
      %265 = vmatpush1.msra.mxu0 0.0
      %266 = vmatprep.subr.mxu0 0.0
      %267 = vmatpush1.msra.mxu0 0.0
      %268 = vmatprep.subr.mxu0 0.0
      %269 = vmatpush1.msra.mxu0 0.0
      %270 = vmatprep.subr.mxu0 0.0
      %271 = vmatpush1.msra.mxu0 0.0
      %272 = vmatprep.subr.mxu0 0.0
      %273 = vmatpush1.msra.mxu0 0.0
      %274 = vmatprep.subr.mxu0 0.0
      %275 = vmatpush1.msra.mxu0 0.0
      %276 = vmatprep.subr.mxu0 0.0
      %277 = vmatpush1.msra.mxu0 0.0
      %278 = vmatprep.subr.mxu0 0.0
      %279 = vmatpush1.msra.mxu0 0.0
      %280 = vmatprep.subr.mxu0 0.0
      %281 = vmatpush1.msra.mxu0 0.0
      %282 = vmatprep.subr.mxu0 0.0
      %283 = vmatpush1.msra.mxu0 0.0
      %284 = vmatprep.subr.mxu0 0.0
      %285 = vmatpush1.msra.mxu0 0.0
      %286 = vmatprep.subr.mxu0 0.0
      %287 = vmatpush1.msra.mxu0 0.0
      %288 = vmatprep.subr.mxu0 0.0
      %289 = vmatpush1.msra.mxu0 0.0
      %290 = vmatprep.subr.mxu0 0.0
      %291 = vmatpush1.msra.mxu0 0.0
      %292 = vmatprep.subr.mxu0 0.0
      %293 = vmatpush1.msra.mxu0 0.0
      %294 = vmatprep.mubr.f32.mxu0 0.0
      %295 = vmatmul.mubr.f32.gmra.mrb[0].mxu0 %v221
      %v296 = vpop.f32.mrb[0].mxu0
      %v297 = vadd.f32 %v217, %v296
      %v298 = vpop.f32.mrb[0].mxu0
      %v299 = vadd.f32 %v217, %v298
      %300 = vdwg.mxu0
      %301 = vst [vmem:[%s208] sm:$0xff] %v297
      %302 = vst [vmem:[%s208 + $0x8] sm:$0xff] %v299
      %s303 = smul.u32 2, %s18
      %p304 = scmp.lt.s32.totalorder %s19, 1
      %s305 = scalar_select %p304, %s19, 1
      %p306 = scmp.lt.s32.totalorder %s303, 1
      %s307 = scalar_select %p306, %s303, 1
      %s308 = smul.addr %s305, 2
      %s309 = sadd.s32 %s307, %s308
      %s310 = smul.addr %s309, 8
      %s311 = scalar_lea.vmem %s3, %s310
      // Predicated region
      $region33: #{gated_freq_moe_forward.10} parent=31 // pred_check
        %p312 = pneg %p116
      $region34: #{gated_freq_moe_forward.10} parent=31 // pred_check_branch
        %314 = sbr.rel (%p312) target = $region36
      $region35: #{gated_freq_moe_forward.10} parent=31 // pred_region
        %s315 = smul.u32 2, %s18
      $region36: #{gated_freq_moe_forward.10} parent=31 // pred_fallthru
        _
    $region32: #{gated_freq_moe_forward.10} parent=5 // pred_fallthru
      _
    %p316 = scmp.le.s32.totalorder 2, %s9
    // Predicated region
    $region37: #{gated_freq_moe_forward.10} parent=5 // pred_check
      %p317 = pneg %p316
    $region38: #{gated_freq_moe_forward.10} parent=5 // pred_check_branch
      %319 = sbr.rel (%p317) target = $region40
    $region39: #{gated_freq_moe_forward.10} parent=5 // pred_region
      %s320 = ssub.s32 %s9, 2
      // Predicated region
      $region41: #{gated_freq_moe_forward.10} parent=39 // pred_check
        %p321 = pneg %p122
      $region42: #{gated_freq_moe_forward.10} parent=39 // pred_check_branch
        %323 = sbr.rel (%p321) target = $region44
      $region43: #{gated_freq_moe_forward.10} parent=39 // pred_region
        %s324 = smul.u32 2, %s20
        %p325 = scmp.lt.s32.totalorder %s21, 1
        %s326 = scalar_select %p325, %s21, 1
        %p327 = scmp.lt.s32.totalorder %s324, 1
        %s328 = scalar_select %p327, %s324, 1
        %s329 = smul.addr %s326, 2
        %s330 = sadd.s32 %s328, %s329
        %s331 = smul.addr %s330, 8
        %s332 = scalar_lea.vmem %s3, %s331
      $region44: #{gated_freq_moe_forward.10} parent=39 // pred_fallthru
        _
    $region40: #{gated_freq_moe_forward.10} parent=5 // pred_fallthru
      _
  $region6: #{gated_freq_moe_forward.10} parent=0 // loop_footer
    %s13 = sadd.s32 1, %s9
  $region7: #{gated_freq_moe_forward.10} parent=0 // loop_footer_branch
    %8 = sbr.rel target = $region3
  $region8: #{gated_freq_moe_forward.10} parent=0 // loop_exit
    _

// kernel: custom-call.8
$region0: #{custom-call.8}
  %s0 = inlined_call_operand.hbm [shape: c64[15,4,8], index: 0, kind: input, shape index: {}]
  %s1 = inlined_call_operand.vmem [shape: f32[15,4,8], index: 1, kind: output, shape index: {}]
  $region1: #{custom-call.8} parent=0
    #allocation0 [shape = 's32[1]{0}', space=sflag, size = 0x4, scoped, tag = 'scoped memory for custom-call.8']
    %2 = vsyncpa [#allocation0], 0
    %s3 = sshll.u32 %s1, 4
    %s4 = int_to_ptr.vmem [resolvable:$true] %s3
    %6 = dma.hbm_to_vmem [thread:$0]  %s0, 512, %s4, [#allocation0]
    %7 = dma.done [#allocation0], 512
    %8 = vsyncpa [#allocation0], 1

// kernel: custom-call.9
$region0: #{custom-call.9}
  %s0 = inlined_call_operand.hbm [shape: c64[15,4,8], index: 0, kind: input, shape index: {}]
  %s1 = inlined_call_operand.vmem [shape: f32[15,4,8], index: 1, kind: output, shape index: {}]
  %s2 = scalar_lea.hbm %s0, 512
  $region1: #{custom-call.9} parent=0
    #allocation0 [shape = 's32[1]{0}', space=sflag, size = 0x4, scoped, tag = 'scoped memory for custom-call.9']
    %3 = vsyncpa [#allocation0], 0
    %s4 = sshll.u32 %s1, 4
    %s5 = int_to_ptr.vmem [resolvable:$true] %s4
    %7 = dma.hbm_to_vmem [thread:$0]  %s2, 512, %s5, [#allocation0]
    %8 = dma.done [#allocation0], 512
    %9 = vsyncpa [#allocation0], 1

// kernel: custom-call.10
$region0: #{custom-call.10}
  %s0 = inlined_call_operand.hbm [shape: c64[15,8,4,2,2], index: 0, kind: input, shape index: {}]
  %s1 = inlined_call_operand.vmem [shape: f32[15,8,4,2,2], index: 1, kind: output, shape index: {}]
  $region1: #{custom-call.10} parent=0
    #allocation0 [shape = 's32[1]{0}', space=sflag, size = 0x4, scoped, tag = 'scoped memory for custom-call.10']
    %2 = vsyncpa [#allocation0], 0
    %s3 = sshll.u32 %s1, 4
    %s4 = int_to_ptr.vmem [resolvable:$true] %s3
    %6 = dma.hbm_to_vmem [thread:$0]  %s0, 2048, %s4, [#allocation0]
    %7 = dma.done [#allocation0], 2048
    %8 = vsyncpa [#allocation0], 1

// kernel: custom-call.11
$region0: #{custom-call.11}
  %s0 = inlined_call_operand.hbm [shape: c64[15,8,4,2,2], index: 0, kind: input, shape index: {}]
  %s1 = inlined_call_operand.vmem [shape: f32[15,8,4,2,2], index: 1, kind: output, shape index: {}]
  %s2 = scalar_lea.hbm %s0, 2048
  $region1: #{custom-call.11} parent=0
    #allocation0 [shape = 's32[1]{0}', space=sflag, size = 0x4, scoped, tag = 'scoped memory for custom-call.11']
    %3 = vsyncpa [#allocation0], 0
    %s4 = sshll.u32 %s1, 4
    %s5 = int_to_ptr.vmem [resolvable:$true] %s4
    %7 = dma.hbm_to_vmem [thread:$0]  %s2, 2048, %s5, [#allocation0]
    %8 = dma.done [#allocation0], 2048
    %9 = vsyncpa [#allocation0], 1

// kernel: custom-call.6
$region0: #{custom-call.6}
  %s0 = inlined_call_operand.vmem [shape: c64[8,8,2,2], index: 0, kind: input, shape index: {}]
  %s1 = inlined_call_operand.vmem [shape: f32[8,8,2,2], index: 1, kind: output, shape index: {}]
  %v2 = vld [vmem:[%s0] sm:$0xff]
  %3 = vst [vmem:[%s1] sm:$0xff] %v2
  %s4 = scalar_lea.vmem %s1, 8
  %s5 = scalar_lea.vmem %s0, 8
  %v6 = vld [vmem:[%s5] sm:$0xff]
  %7 = vst [vmem:[%s4] sm:$0xff] %v6
  %s8 = scalar_lea.vmem %s1, 16
  %s9 = scalar_lea.vmem %s0, 16
  %v10 = vld [vmem:[%s9] sm:$0xff]
  %11 = vst [vmem:[%s8] sm:$0xff] %v10
  %s12 = scalar_lea.vmem %s1, 24
  %s13 = scalar_lea.vmem %s0, 24
  %v14 = vld [vmem:[%s13] sm:$0xff]
  %15 = vst [vmem:[%s12] sm:$0xff] %v14

// kernel: custom-call.7
$region0: #{custom-call.7}
  %s0 = inlined_call_operand.vmem [shape: c64[8,8,2,2], index: 0, kind: input, shape index: {}]
  %s1 = inlined_call_operand.vmem [shape: f32[8,8,2,2], index: 1, kind: output, shape index: {}]
  %s2 = scalar_lea.vmem %s0, 32
  %v3 = vld [vmem:[%s2] sm:$0xff]
  %4 = vst [vmem:[%s1] sm:$0xff] %v3
  %s5 = scalar_lea.vmem %s1, 8
  %s6 = scalar_lea.vmem %s2, 8
  %v7 = vld [vmem:[%s6] sm:$0xff]
  %8 = vst [vmem:[%s5] sm:$0xff] %v7
  %s9 = scalar_lea.vmem %s1, 16
  %s10 = scalar_lea.vmem %s2, 16
  %v11 = vld [vmem:[%s10] sm:$0xff]
  %12 = vst [vmem:[%s9] sm:$0xff] %v11
  %s13 = scalar_lea.vmem %s1, 24
  %s14 = scalar_lea.vmem %s2, 24
  %v15 = vld [vmem:[%s14] sm:$0xff]
  %16 = vst [vmem:[%s13] sm:$0xff] %v15

// kernel: gated_freq_moe_forward.11
$region0: #{gated_freq_moe_forward.11}
  #allocation0 [shape = 'u32[]', space=smem, size = 0x4, offset = 0x4, fixed_abs, tag = 'smem constant byte address 0x4 - core index']
  #allocation1 [shape = 'u32[144,128]{1,0:T(1,128)}', space=vmem, size = 0x12000, scoped, tag = 'internal scratch']
  %s0 = inlined_call_operand.vmem [shape: f32[2,8,128], index: 0, kind: input, shape index: {}]
  %s1 = inlined_call_operand.vmem [shape: f32[2,8,128], index: 1, kind: input, shape index: {}]
  %s2 = inlined_call_operand.vmem [shape: f32[8,8,128], index: 2, kind: input, shape index: {}]
  %s3 = inlined_call_operand.vmem [shape: f32[8,8,128], index: 3, kind: input, shape index: {}]
  %s4 = inlined_call_operand.vmem [shape: f32[2,8,128], index: 4, kind: output, shape index: {0}]
  %s5 = inlined_call_operand.vmem [shape: f32[2,8,128], index: 5, kind: output, shape index: {1}]
  %6 = xla_tuple %s4, %s5
  %s7 = sld [smem:[#allocation0]]
  $region57: #{gated_freq_moe_forward.11} parent=0
    _
  %s9 = ssub.s32 1, %s7
  %s10 = scalar_select 0, %s9, %s7
  loop: start=0, step=1, limit=4
  $region2: #{gated_freq_moe_forward.11} parent=0 // loop_pre_header
    _
  $region3: #{gated_freq_moe_forward.11} parent=0 // loop_header
    %s12 = sphi 0, %s16
    %p13 = scmp.ge.s32.totalorder %s12, 4
    %s19 = sphi 0, %s31
    %s20 = sphi 0, %s27
    %s21 = sphi 0, %s19
    %s22 = sphi 0, %s20
    %s23 = sphi 0, %s21
    %s24 = sphi 0, %s22
    %s36 = sphi 0, %s38
    %s39 = sphi 0, %s36
    %s40 = sphi 0, %s39
    %s56 = sphi 0, %s40
    %s64 = sphi 0, %s66
    %s67 = sphi 0, %s64
    %s68 = sphi 0, %s67
    %s84 = sphi 0, %s68
    %s90 = sphi 0, %s92
    %s93 = sphi 0, %s90
    %s94 = sphi 0, %s93
    %s110 = sphi 0, %s94
    %s116 = sphi 0, %s118
    %s119 = sphi 0, %s116
    %s120 = sphi 0, %s119
    %s136 = sphi 0, %s120
    %s144 = sphi 0, %s146
    %s147 = sphi 0, %s144
    %s148 = sphi 0, %s147
    %s164 = sphi 0, %s148
    %s172 = sphi 0, %s174
    %s175 = sphi 0, %s172
    %s176 = sphi 0, %s175
    %s192 = sphi 0, %s176
  $region4: #{gated_freq_moe_forward.11} parent=0 // loop_header_branch
    %15 = sbr.rel (%p13) target = $region8
  $region5: #{gated_freq_moe_forward.11} parent=0 // loop_body
    %s17 = ssub.s32 %s12, 1
    %s18 = ssub.s32 %s12, 2
    %s25 = sadd.s32 1, %s20
    %p26 = scmp.ge.s32.totalorder %s25, 2
    %s27 = scalar_select %p26, 0, %s25
    %s28 = sadd.s32 1, %s19
    %s29 = scalar_select %p26, %s28, %s19
    %p30 = scmp.ge.s32.totalorder %s29, 1
    %s31 = scalar_select %p30, 0, %s29
    %s32 = ssub.s32 %s20, %s27
    %s33 = ssub.s32 %s19, %s31
    %s34 = sor.u32 %s32, %s33
    %p35 = scmp.eq.s32.totalorder %s34, 0
    %s37 = sadd.s32 %s36, 1
    %s38 = scalar_select %p35, %s36, %s37
    %p41 = pneg %p35
    %p42 = scmp.eq.s32.totalorder %s12, 1
    %p43 = por %p41, %p42
    %p44 = scmp.ne.s32.totalorder %s36, %s39
    %p45 = scmp.eq.s32.totalorder %s12, 0
    %p46 = por %p44, %p45
    %p47 = scmp.ne.s32.totalorder %s36, %s39
    %p48 = scmp.eq.s32.totalorder %s17, 1
    %p49 = por %p47, %p48
    %p50 = scmp.ne.s32.totalorder %s39, %s40
    %p51 = scmp.eq.s32.totalorder %s17, 0
    %p52 = por %p50, %p51
    %p53 = scmp.ne.s32.totalorder %s39, %s40
    %p54 = scmp.eq.s32.totalorder %s18, 1
    %p55 = por %p53, %p54
    %p57 = scmp.ne.s32.totalorder %s40, %s56
    %p58 = scmp.eq.s32.totalorder %s18, 0
    %p59 = por %p57, %p58
    %s60 = ssub.s32 %s20, %s27
    %s61 = ssub.s32 %s19, %s31
    %s62 = sor.u32 %s60, %s61
    %p63 = scmp.eq.s32.totalorder %s62, 0
    %s65 = sadd.s32 %s64, 1
    %s66 = scalar_select %p63, %s64, %s65
    %p69 = pneg %p63
    %p70 = scmp.eq.s32.totalorder %s12, 1
    %p71 = por %p69, %p70
    %p72 = scmp.ne.s32.totalorder %s64, %s67
    %p73 = scmp.eq.s32.totalorder %s12, 0
    %p74 = por %p72, %p73
    %p75 = scmp.ne.s32.totalorder %s64, %s67
    %p76 = scmp.eq.s32.totalorder %s17, 1
    %p77 = por %p75, %p76
    %p78 = scmp.ne.s32.totalorder %s67, %s68
    %p79 = scmp.eq.s32.totalorder %s17, 0
    %p80 = por %p78, %p79
    %p81 = scmp.ne.s32.totalorder %s67, %s68
    %p82 = scmp.eq.s32.totalorder %s18, 1
    %p83 = por %p81, %p82
    %p85 = scmp.ne.s32.totalorder %s68, %s84
    %p86 = scmp.eq.s32.totalorder %s18, 0
    %p87 = por %p85, %p86
    %s88 = ssub.s32 %s19, %s31
    %p89 = scmp.eq.s32.totalorder %s88, 0
    %s91 = sadd.s32 %s90, 1
    %s92 = scalar_select %p89, %s90, %s91
    %p95 = pneg %p89
    %p96 = scmp.eq.s32.totalorder %s12, 1
    %p97 = por %p95, %p96
    %p98 = scmp.ne.s32.totalorder %s90, %s93
    %p99 = scmp.eq.s32.totalorder %s12, 0
    %p100 = por %p98, %p99
    %p101 = scmp.ne.s32.totalorder %s90, %s93
    %p102 = scmp.eq.s32.totalorder %s17, 1
    %p103 = por %p101, %p102
    %p104 = scmp.ne.s32.totalorder %s93, %s94
    %p105 = scmp.eq.s32.totalorder %s17, 0
    %p106 = por %p104, %p105
    %p107 = scmp.ne.s32.totalorder %s93, %s94
    %p108 = scmp.eq.s32.totalorder %s18, 1
    %p109 = por %p107, %p108
    %p111 = scmp.ne.s32.totalorder %s94, %s110
    %p112 = scmp.eq.s32.totalorder %s18, 0
    %p113 = por %p111, %p112
    %s114 = ssub.s32 %s19, %s31
    %p115 = scmp.eq.s32.totalorder %s114, 0
    %s117 = sadd.s32 %s116, 1
    %s118 = scalar_select %p115, %s116, %s117
    %p121 = pneg %p115
    %p122 = scmp.eq.s32.totalorder %s12, 1
    %p123 = por %p121, %p122
    %p124 = scmp.ne.s32.totalorder %s116, %s119
    %p125 = scmp.eq.s32.totalorder %s12, 0
    %p126 = por %p124, %p125
    %p127 = scmp.ne.s32.totalorder %s116, %s119
    %p128 = scmp.eq.s32.totalorder %s17, 1
    %p129 = por %p127, %p128
    %p130 = scmp.ne.s32.totalorder %s119, %s120
    %p131 = scmp.eq.s32.totalorder %s17, 0
    %p132 = por %p130, %p131
    %p133 = scmp.ne.s32.totalorder %s119, %s120
    %p134 = scmp.eq.s32.totalorder %s18, 1
    %p135 = por %p133, %p134
    %p137 = scmp.ne.s32.totalorder %s120, %s136
    %p138 = scmp.eq.s32.totalorder %s18, 0
    %p139 = por %p137, %p138
    %s140 = ssub.s32 %s20, %s27
    %s141 = ssub.s32 %s19, %s31
    %s142 = sor.u32 %s140, %s141
    %p143 = scmp.eq.s32.totalorder %s142, 0
    %s145 = sadd.s32 %s144, 1
    %s146 = scalar_select %p143, %s144, %s145
    %p149 = pneg %p143
    %p150 = scmp.eq.s32.totalorder %s12, 1
    %p151 = por %p149, %p150
    %p152 = scmp.ne.s32.totalorder %s144, %s147
    %p153 = scmp.eq.s32.totalorder %s12, 0
    %p154 = por %p152, %p153
    %p155 = scmp.ne.s32.totalorder %s144, %s147
    %p156 = scmp.eq.s32.totalorder %s17, 1
    %p157 = por %p155, %p156
    %p158 = scmp.ne.s32.totalorder %s147, %s148
    %p159 = scmp.eq.s32.totalorder %s17, 0
    %p160 = por %p158, %p159
    %p161 = scmp.ne.s32.totalorder %s147, %s148
    %p162 = scmp.eq.s32.totalorder %s18, 1
    %p163 = por %p161, %p162
    %p165 = scmp.ne.s32.totalorder %s148, %s164
    %p166 = scmp.eq.s32.totalorder %s18, 0
    %p167 = por %p165, %p166
    %s168 = ssub.s32 %s20, %s27
    %s169 = ssub.s32 %s19, %s31
    %s170 = sor.u32 %s168, %s169
    %p171 = scmp.eq.s32.totalorder %s170, 0
    %s173 = sadd.s32 %s172, 1
    %s174 = scalar_select %p171, %s172, %s173
    %p177 = pneg %p171
    %p178 = scmp.eq.s32.totalorder %s12, 1
    %p179 = por %p177, %p178
    %p180 = scmp.ne.s32.totalorder %s172, %s175
    %p181 = scmp.eq.s32.totalorder %s12, 0
    %p182 = por %p180, %p181
    %p183 = scmp.ne.s32.totalorder %s172, %s175
    %p184 = scmp.eq.s32.totalorder %s17, 1
    %p185 = por %p183, %p184
    %p186 = scmp.ne.s32.totalorder %s175, %s176
    %p187 = scmp.eq.s32.totalorder %s17, 0
    %p188 = por %p186, %p187
    %p189 = scmp.ne.s32.totalorder %s175, %s176
    %p190 = scmp.eq.s32.totalorder %s18, 1
    %p191 = por %p189, %p190
    %p193 = scmp.ne.s32.totalorder %s176, %s192
    %p194 = scmp.eq.s32.totalorder %s18, 0
    %p195 = por %p193, %p194
    %p196 = scmp.le.s32.totalorder 1, %s12
    %p197 = scmp.lt.s32.totalorder %s12, 3
    %p198 = pnand %p196, %p197
    %p199 = pneg %p198
    // Predicated region
    $region9: #{gated_freq_moe_forward.11} parent=5 // pred_check
      _
    $region10: #{gated_freq_moe_forward.11} parent=5 // pred_check_branch
      %201 = sbr.rel (%p198) target = $region12
    $region11: #{gated_freq_moe_forward.11} parent=5 // pred_region
      %s202 = ssub.s32 %s12, 1
      // Predicated region
      $region13: #{gated_freq_moe_forward.11} parent=11 // pred_check
        %p203 = pneg %p106
      $region14: #{gated_freq_moe_forward.11} parent=11 // pred_check_branch
        %205 = sbr.rel (%p203) target = $region16
      $region15: #{gated_freq_moe_forward.11} parent=11 // pred_region
        %p206 = scmp.lt.s32.totalorder %s21, 0
        %s207 = scalar_select %p206, %s21, 0
        %s208 = smul.addr %s207, 8
        %s209 = scalar_lea.vmem %s2, %s208
      $region16: #{gated_freq_moe_forward.11} parent=11 // pred_fallthru
        _
      // Predicated region
      $region17: #{gated_freq_moe_forward.11} parent=11 // pred_check
        %p210 = pneg %p132
      $region18: #{gated_freq_moe_forward.11} parent=11 // pred_check_branch
        %212 = sbr.rel (%p210) target = $region20
      $region19: #{gated_freq_moe_forward.11} parent=11 // pred_region
        %p213 = scmp.lt.s32.totalorder %s21, 0
        %s214 = scalar_select %p213, %s21, 0
        %s215 = smul.addr %s214, 8
        %s216 = scalar_lea.vmem %s3, %s215
      $region20: #{gated_freq_moe_forward.11} parent=11 // pred_fallthru
        _
    $region12: #{gated_freq_moe_forward.11} parent=5 // pred_fallthru
      _
    %p217 = scmp.lt.s32.totalorder %s12, 2
    // Predicated region
    $region21: #{gated_freq_moe_forward.11} parent=5 // pred_check
      %p218 = pneg %p217
    $region22: #{gated_freq_moe_forward.11} parent=5 // pred_check_branch
      %220 = sbr.rel (%p218) target = $region24
    $region23: #{gated_freq_moe_forward.11} parent=5 // pred_region
      // Predicated region
      $region25: #{gated_freq_moe_forward.11} parent=23 // pred_check
        %p221 = pneg %p46
      $region26: #{gated_freq_moe_forward.11} parent=23 // pred_check_branch
        %223 = sbr.rel (%p221) target = $region28
      $region27: #{gated_freq_moe_forward.11} parent=23 // pred_region
        %p224 = scmp.lt.s32.totalorder %s20, 1
        %s225 = scalar_select %p224, %s20, 1
        %p226 = scmp.lt.s32.totalorder %s19, 0
        %s227 = scalar_select %p226, %s19, 0
        %s228 = sadd.s32 %s227, %s225
        %s229 = smul.addr %s228, 8
        %s230 = scalar_lea.vmem %s0, %s229
      $region28: #{gated_freq_moe_forward.11} parent=23 // pred_fallthru
        _
      // Predicated region
      $region29: #{gated_freq_moe_forward.11} parent=23 // pred_check
        %p231 = pneg %p74
      $region30: #{gated_freq_moe_forward.11} parent=23 // pred_check_branch
        %233 = sbr.rel (%p231) target = $region32
      $region31: #{gated_freq_moe_forward.11} parent=23 // pred_region
        %p234 = scmp.lt.s32.totalorder %s20, 1
        %s235 = scalar_select %p234, %s20, 1
        %p236 = scmp.lt.s32.totalorder %s19, 0
        %s237 = scalar_select %p236, %s19, 0
        %s238 = sadd.s32 %s237, %s235
        %s239 = smul.addr %s238, 8
        %s240 = scalar_lea.vmem %s1, %s239
      $region32: #{gated_freq_moe_forward.11} parent=23 // pred_fallthru
        _
    $region24: #{gated_freq_moe_forward.11} parent=5 // pred_fallthru
      _
    %p241 = scmp.le.s32.totalorder 1, %s12
    %p242 = scmp.lt.s32.totalorder %s12, 3
    %p243 = pnand %p241, %p242
    %p244 = pneg %p243
    // Predicated region
    $region33: #{gated_freq_moe_forward.11} parent=5 // pred_check
      _
    $region34: #{gated_freq_moe_forward.11} parent=5 // pred_check_branch
      %246 = sbr.rel (%p243) target = $region36
    $region35: #{gated_freq_moe_forward.11} parent=5 // pred_region
      %s247 = ssub.s32 %s12, 1
      %p248 = scmp.lt.s32.totalorder %s22, 1
      %s249 = scalar_select %p248, %s22, 1
      %p250 = scmp.lt.s32.totalorder %s21, 0
      %s251 = scalar_select %p250, %s21, 0
      %s252 = sadd.s32 %s251, %s249
      %s253 = smul.addr %s252, 8
      %s254 = scalar_lea.vmem %s0, %s253
      %p255 = pneg %p52
      %p256 = pneg %p49
      %p257 = scmp.lt.s32.totalorder %s22, 1
      %s258 = scalar_select %p257, %s22, 1
      %p259 = scmp.lt.s32.totalorder %s21, 0
      %s260 = scalar_select %p259, %s21, 0
      %s261 = sadd.s32 %s260, %s258
      %s262 = smul.addr %s261, 8
      %s263 = scalar_lea.vmem %s1, %s262
      %p264 = pneg %p80
      %p265 = pneg %p77
      %p266 = scmp.lt.s32.totalorder %s21, 0
      %s267 = scalar_select %p266, %s21, 0
      %s268 = smul.addr %s267, 8
      %s269 = scalar_lea.vmem %s2, %s268
      %p270 = pneg %p106
      %p271 = pneg %p103
      %p272 = scmp.lt.s32.totalorder %s21, 0
      %s273 = scalar_select %p272, %s21, 0
      %s274 = smul.addr %s273, 8
      %s275 = scalar_lea.vmem %s3, %s274
      %p276 = pneg %p132
      %p277 = pneg %p129
      %p278 = pneg %p160
      %p279 = pneg %p157
      %p280 = scmp.lt.s32.totalorder %s22, 1
      %s281 = scalar_select %p280, %s22, 1
      %p282 = scmp.lt.s32.totalorder %s21, 0
      %s283 = scalar_select %p282, %s21, 0
      %s284 = sadd.s32 %s283, %s281
      %s285 = smul.addr %s284, 8
      %s286 = scalar_lea.vmem %s4, %s285
      %p287 = pneg %p188
      %p288 = pneg %p185
      %p289 = scmp.lt.s32.totalorder %s22, 1
      %s290 = scalar_select %p289, %s22, 1
      %p291 = scmp.lt.s32.totalorder %s21, 0
      %s292 = scalar_select %p291, %s21, 0
      %s293 = sadd.s32 %s292, %s290
      %s294 = smul.addr %s293, 8
      %s295 = scalar_lea.vmem %s5, %s294
      %p296 = scmp.lt.s32.totalorder %s22, 1
      %s297 = scalar_select %p296, %s22, 1
      %p298 = scmp.lt.s32.totalorder %s21, 0
      %s299 = scalar_select %p298, %s21, 0
      %s300 = sadd.s32 %s299, %s297
      %s301 = smul.addr %s300, 8
      %s302 = scalar_lea.vmem %s0, %s301
      %p303 = scmp.lt.s32.totalorder %s22, 1
      %s304 = scalar_select %p303, %s22, 1
      %p305 = scmp.lt.s32.totalorder %s21, 0
      %s306 = scalar_select %p305, %s21, 0
      %s307 = sadd.s32 %s306, %s304
      %s308 = smul.addr %s307, 8
      %s309 = scalar_lea.vmem %s1, %s308
      %p310 = scmp.lt.s32.totalorder %s21, 0
      %s311 = scalar_select %p310, %s21, 0
      %s312 = smul.addr %s311, 8
      %s313 = scalar_lea.vmem %s2, %s312
      %p314 = scmp.lt.s32.totalorder %s21, 0
      %s315 = scalar_select %p314, %s21, 0
      %s316 = smul.addr %s315, 8
      %s317 = scalar_lea.vmem %s3, %s316
      %p318 = scmp.lt.s32.totalorder %s22, 1
      %s319 = scalar_select %p318, %s22, 1
      %p320 = scmp.lt.s32.totalorder %s21, 0
      %s321 = scalar_select %p320, %s21, 0
      %s322 = sadd.s32 %s321, %s319
      %s323 = smul.addr %s322, 8
      %s324 = scalar_lea.vmem %s4, %s323
      %p325 = scmp.lt.s32.totalorder %s22, 1
      %s326 = scalar_select %p325, %s22, 1
      %p327 = scmp.lt.s32.totalorder %s21, 0
      %s328 = scalar_select %p327, %s21, 0
      %s329 = sadd.s32 %s328, %s326
      %s330 = smul.addr %s329, 8
      %s331 = scalar_lea.vmem %s5, %s330
      %v332 = vld [vmem:[%s302] sm:$0xff]
      %v334 = vcombine.high %v332, %v332
      %v336 = vunpack.c.l.s4 1966171168
      %v337 = vunpack.c.0.s8 %v336
      %v338 = vlaneseq
      %v339 = vshrl.u32 %v338, 7
      %v340 = vsub.s32 %v337, %v339
      %v341 = vrot.slane %v332, %v340
      %v343 = vunpack.c.l.s4 1966171168
      %v344 = vunpack.c.0.s8 %v343
      %v345 = vlaneseq
      %v346 = vshrl.u32 %v345, 7
      %v347 = vsub.s32 %v344, %v346
      %v348 = vrot.slane %v334, %v347
      %v349 = vcombine.high %v341, %v341
      %v350 = vcombine.high %v348, %v348
      %v352 = vunpack.c.l.s4 1966171168
      %v353 = vunpack.c.0.s8 %v352
      %v354 = vlaneseq
      %v355 = vshrl.u32 %v354, 7
      %v356 = vsub.s32 %v353, %v355
      %v357 = vrot.slane %v341, %v356
      %v359 = vunpack.c.l.s4 1966171168
      %v360 = vunpack.c.0.s8 %v359
      %v361 = vlaneseq
      %v362 = vshrl.u32 %v361, 7
      %v363 = vsub.s32 %v360, %v362
      %v364 = vrot.slane %v348, %v363
      %v366 = vunpack.c.l.s4 1966171168
      %v367 = vunpack.c.0.s8 %v366
      %v368 = vlaneseq
      %v369 = vshrl.u32 %v368, 7
      %v370 = vsub.s32 %v367, %v369
      %v371 = vrot.slane %v349, %v370
      %v373 = vunpack.c.l.s4 1966171168
      %v374 = vunpack.c.0.s8 %v373
      %v375 = vlaneseq
      %v376 = vshrl.u32 %v375, 7
      %v377 = vsub.s32 %v374, %v376
      %v378 = vrot.slane %v350, %v377
      %v379 = vcombine.high %v357, %v357
      %v380 = vcombine.high %v364, %v364
      %v381 = vcombine.high %v371, %v371
      %v382 = vcombine.high %v378, %v378
      %v383 = vld [vmem:[%s309] sm:$0xff]
      %v385 = vcombine.high %v383, %v383
      %v387 = vunpack.c.l.s4 1966171168
      %v388 = vunpack.c.0.s8 %v387
      %v389 = vlaneseq
      %v390 = vshrl.u32 %v389, 7
      %v391 = vsub.s32 %v388, %v390
      %v392 = vrot.slane %v383, %v391
      %v394 = vunpack.c.l.s4 1966171168
      %v395 = vunpack.c.0.s8 %v394
      %v396 = vlaneseq
      %v397 = vshrl.u32 %v396, 7
      %v398 = vsub.s32 %v395, %v397
      %v399 = vrot.slane %v385, %v398
      %v400 = vcombine.high %v392, %v392
      %v401 = vcombine.high %v399, %v399
      %v403 = vunpack.c.l.s4 1966171168
      %v404 = vunpack.c.0.s8 %v403
      %v405 = vlaneseq
      %v406 = vshrl.u32 %v405, 7
      %v407 = vsub.s32 %v404, %v406
      %v408 = vrot.slane %v392, %v407
      %v410 = vunpack.c.l.s4 1966171168
      %v411 = vunpack.c.0.s8 %v410
      %v412 = vlaneseq
      %v413 = vshrl.u32 %v412, 7
      %v414 = vsub.s32 %v411, %v413
      %v415 = vrot.slane %v399, %v414
      %v417 = vunpack.c.l.s4 1966171168
      %v418 = vunpack.c.0.s8 %v417
      %v419 = vlaneseq
      %v420 = vshrl.u32 %v419, 7
      %v421 = vsub.s32 %v418, %v420
      %v422 = vrot.slane %v400, %v421
      %v424 = vunpack.c.l.s4 1966171168
      %v425 = vunpack.c.0.s8 %v424
      %v426 = vlaneseq
      %v427 = vshrl.u32 %v426, 7
      %v428 = vsub.s32 %v425, %v427
      %v429 = vrot.slane %v401, %v428
      %v430 = vcombine.high %v408, %v408
      %v431 = vcombine.high %v415, %v415
      %v432 = vcombine.high %v422, %v422
      %v433 = vcombine.high %v429, %v429
      %v434 = vld [vmem:[%s313] sm:$0xff]
      %v435 = vld [vmem:[%s313 + $0x8] sm:$0xff]
      %v436 = vld [vmem:[%s313 + $0x10] sm:$0xff]
      %v437 = vld [vmem:[%s313 + $0x18] sm:$0xff]
      %v438 = vld [vmem:[%s313 + $0x20] sm:$0xff]
      %v439 = vld [vmem:[%s313 + $0x28] sm:$0xff]
      %v440 = vld [vmem:[%s313 + $0x30] sm:$0xff]
      %v441 = vld [vmem:[%s313 + $0x38] sm:$0xff]
      %v442 = vld [vmem:[%s317] sm:$0xff]
      %v443 = vld [vmem:[%s317 + $0x8] sm:$0xff]
      %v444 = vld [vmem:[%s317 + $0x10] sm:$0xff]
      %v445 = vld [vmem:[%s317 + $0x18] sm:$0xff]
      %v446 = vld [vmem:[%s317 + $0x20] sm:$0xff]
      %v447 = vld [vmem:[%s317 + $0x28] sm:$0xff]
      %v448 = vld [vmem:[%s317 + $0x30] sm:$0xff]
      %v449 = vld [vmem:[%s317 + $0x38] sm:$0xff]
      %v450 = vlaneseq
      %v451 = vshrl.u32 %v450, 7
      %v452 = vsub.s32 0, %v451
      %v453 = vrot.slane %v357, %v452
      %v454 = vlaneseq
      %v455 = vshrl.u32 %v454, 7
      %v456 = vsub.s32 0, %v455
      %v457 = vrot.slane %v371, %v456
      %v458 = vlaneseq
      %v459 = vshrl.u32 %v458, 7
      %v460 = vsub.s32 0, %v459
      %v461 = vrot.slane %v379, %v460
      %v462 = vlaneseq
      %v463 = vshrl.u32 %v462, 7
      %v464 = vsub.s32 0, %v463
      %v465 = vrot.slane %v381, %v464
      %v466 = vlaneseq
      %v467 = vshrl.u32 %v466, 7
      %v468 = vsub.s32 0, %v467
      %v469 = vrot.slane %v364, %v468
      %v470 = vlaneseq
      %v471 = vshrl.u32 %v470, 7
      %v472 = vsub.s32 0, %v471
      %v473 = vrot.slane %v378, %v472
      %v474 = vlaneseq
      %v475 = vshrl.u32 %v474, 7
      %v476 = vsub.s32 0, %v475
      %v477 = vrot.slane %v380, %v476
      %v478 = vlaneseq
      %v479 = vshrl.u32 %v478, 7
      %v480 = vsub.s32 0, %v479
      %v481 = vrot.slane %v382, %v480
      %v490 = vmul.f32 %v453, %v434
      %v491 = vmul.f32 %v457, %v435
      %v492 = vmul.f32 %v461, %v436
      %v493 = vmul.f32 %v465, %v437
      %v494 = vmul.f32 %v469, %v438
      %v495 = vmul.f32 %v473, %v439
      %v496 = vmul.f32 %v477, %v440
      %v497 = vmul.f32 %v481, %v441
      %v498 = vlaneseq
      %v499 = vshrl.u32 %v498, 7
      %v500 = vsub.s32 0, %v499
      %v501 = vrot.slane %v408, %v500
      %v502 = vlaneseq
      %v503 = vshrl.u32 %v502, 7
      %v504 = vsub.s32 0, %v503
      %v505 = vrot.slane %v422, %v504
      %v506 = vlaneseq
      %v507 = vshrl.u32 %v506, 7
      %v508 = vsub.s32 0, %v507
      %v509 = vrot.slane %v430, %v508
      %v510 = vlaneseq
      %v511 = vshrl.u32 %v510, 7
      %v512 = vsub.s32 0, %v511
      %v513 = vrot.slane %v432, %v512
      %v514 = vlaneseq
      %v515 = vshrl.u32 %v514, 7
      %v516 = vsub.s32 0, %v515
      %v517 = vrot.slane %v415, %v516
      %v518 = vlaneseq
      %v519 = vshrl.u32 %v518, 7
      %v520 = vsub.s32 0, %v519
      %v521 = vrot.slane %v429, %v520
      %v522 = vlaneseq
      %v523 = vshrl.u32 %v522, 7
      %v524 = vsub.s32 0, %v523
      %v525 = vrot.slane %v431, %v524
      %v526 = vlaneseq
      %v527 = vshrl.u32 %v526, 7
      %v528 = vsub.s32 0, %v527
      %v529 = vrot.slane %v433, %v528
      %v538 = vmul.f32 %v501, %v442
      %v539 = vmul.f32 %v505, %v443
      %v540 = vmul.f32 %v509, %v444
      %v541 = vmul.f32 %v513, %v445
      %v542 = vmul.f32 %v517, %v446
      %v543 = vmul.f32 %v521, %v447
      %v544 = vmul.f32 %v525, %v448
      %v545 = vmul.f32 %v529, %v449
      %v546 = vsub.f32 %v490, %v538
      %v547 = vsub.f32 %v491, %v539
      %v548 = vsub.f32 %v492, %v540
      %v549 = vsub.f32 %v493, %v541
      %v550 = vsub.f32 %v494, %v542
      %v551 = vsub.f32 %v495, %v543
      %v552 = vsub.f32 %v496, %v544
      %v553 = vsub.f32 %v497, %v545
      %v554 = vadd.f32 %v546, %v547
      %v555 = vadd.f32 %v554, %v548
      %v556 = vadd.f32 %v555, %v549
      %v557 = vadd.f32 %v556, %v550
      %v558 = vadd.f32 %v557, %v551
      %v559 = vadd.f32 %v558, %v552
      %v560 = vadd.f32 %v559, %v553
      %561 = vst [vmem:[%s324] sm:$0xff] %v560
      %v562 = vmul.f32 %v453, %v442
      %v563 = vmul.f32 %v457, %v443
      %v564 = vmul.f32 %v461, %v444
      %v565 = vmul.f32 %v465, %v445
      %v566 = vmul.f32 %v469, %v446
      %v567 = vmul.f32 %v473, %v447
      %v568 = vmul.f32 %v477, %v448
      %v569 = vmul.f32 %v481, %v449
      %v570 = vmul.f32 %v501, %v434
      %v571 = vmul.f32 %v505, %v435
      %v572 = vmul.f32 %v509, %v436
      %v573 = vmul.f32 %v513, %v437
      %v574 = vmul.f32 %v517, %v438
      %v575 = vmul.f32 %v521, %v439
      %v576 = vmul.f32 %v525, %v440
      %v577 = vmul.f32 %v529, %v441
      %v578 = vadd.f32 %v562, %v570
      %v579 = vadd.f32 %v563, %v571
      %v580 = vadd.f32 %v564, %v572
      %v581 = vadd.f32 %v565, %v573
      %v582 = vadd.f32 %v566, %v574
      %v583 = vadd.f32 %v567, %v575
      %v584 = vadd.f32 %v568, %v576
      %v585 = vadd.f32 %v569, %v577
      %v586 = vadd.f32 %v578, %v579
      %v587 = vadd.f32 %v586, %v580
      %v588 = vadd.f32 %v587, %v581
      %v589 = vadd.f32 %v588, %v582
      %v590 = vadd.f32 %v589, %v583
      %v591 = vadd.f32 %v590, %v584
      %v592 = vadd.f32 %v591, %v585
      %593 = vst [vmem:[%s331] sm:$0xff] %v592
      %p594 = scmp.lt.s32.totalorder %s22, 1
      %s595 = scalar_select %p594, %s22, 1
      %p596 = scmp.lt.s32.totalorder %s21, 0
      %s597 = scalar_select %p596, %s21, 0
      %s598 = sadd.s32 %s597, %s595
      %s599 = smul.addr %s598, 8
      %s600 = scalar_lea.vmem %s4, %s599
      %p601 = scmp.lt.s32.totalorder %s22, 1
      %s602 = scalar_select %p601, %s22, 1
      %p603 = scmp.lt.s32.totalorder %s21, 0
      %s604 = scalar_select %p603, %s21, 0
      %s605 = sadd.s32 %s604, %s602
      %s606 = smul.addr %s605, 8
      %s607 = scalar_lea.vmem %s5, %s606
      // Predicated region
      $region37: #{gated_freq_moe_forward.11} parent=35 // pred_check
        %p608 = pneg %p157
      $region38: #{gated_freq_moe_forward.11} parent=35 // pred_check_branch
        %610 = sbr.rel (%p608) target = $region40
      $region39: #{gated_freq_moe_forward.11} parent=35 // pred_region
        _
      $region40: #{gated_freq_moe_forward.11} parent=35 // pred_fallthru
        _
      // Predicated region
      $region41: #{gated_freq_moe_forward.11} parent=35 // pred_check
        %p611 = pneg %p185
      $region42: #{gated_freq_moe_forward.11} parent=35 // pred_check_branch
        %613 = sbr.rel (%p611) target = $region44
      $region43: #{gated_freq_moe_forward.11} parent=35 // pred_region
        _
      $region44: #{gated_freq_moe_forward.11} parent=35 // pred_fallthru
        _
    $region36: #{gated_freq_moe_forward.11} parent=5 // pred_fallthru
      _
    %p614 = scmp.le.s32.totalorder 2, %s12
    // Predicated region
    $region45: #{gated_freq_moe_forward.11} parent=5 // pred_check
      %p615 = pneg %p614
    $region46: #{gated_freq_moe_forward.11} parent=5 // pred_check_branch
      %617 = sbr.rel (%p615) target = $region48
    $region47: #{gated_freq_moe_forward.11} parent=5 // pred_region
      %s618 = ssub.s32 %s12, 2
      // Predicated region
      $region49: #{gated_freq_moe_forward.11} parent=47 // pred_check
        %p619 = pneg %p163
      $region50: #{gated_freq_moe_forward.11} parent=47 // pred_check_branch
        %621 = sbr.rel (%p619) target = $region52
      $region51: #{gated_freq_moe_forward.11} parent=47 // pred_region
        %p622 = scmp.lt.s32.totalorder %s24, 1
        %s623 = scalar_select %p622, %s24, 1
        %p624 = scmp.lt.s32.totalorder %s23, 0
        %s625 = scalar_select %p624, %s23, 0
        %s626 = sadd.s32 %s625, %s623
        %s627 = smul.addr %s626, 8
        %s628 = scalar_lea.vmem %s4, %s627
      $region52: #{gated_freq_moe_forward.11} parent=47 // pred_fallthru
        _
      // Predicated region
      $region53: #{gated_freq_moe_forward.11} parent=47 // pred_check
        %p629 = pneg %p191
      $region54: #{gated_freq_moe_forward.11} parent=47 // pred_check_branch
        %631 = sbr.rel (%p629) target = $region56
      $region55: #{gated_freq_moe_forward.11} parent=47 // pred_region
        %p632 = scmp.lt.s32.totalorder %s24, 1
        %s633 = scalar_select %p632, %s24, 1
        %p634 = scmp.lt.s32.totalorder %s23, 0
        %s635 = scalar_select %p634, %s23, 0
        %s636 = sadd.s32 %s635, %s633
        %s637 = smul.addr %s636, 8
        %s638 = scalar_lea.vmem %s5, %s637
      $region56: #{gated_freq_moe_forward.11} parent=47 // pred_fallthru
        _
    $region48: #{gated_freq_moe_forward.11} parent=5 // pred_fallthru
      _
  $region6: #{gated_freq_moe_forward.11} parent=0 // loop_footer
    %s16 = sadd.s32 1, %s12
  $region7: #{gated_freq_moe_forward.11} parent=0 // loop_footer_branch
    %11 = sbr.rel target = $region3
  $region8: #{gated_freq_moe_forward.11} parent=0 // loop_exit
    _

// kernel: reverse.9
$region0: #{reverse.9}
  %s0 = inlined_call_operand.vmem [shape: f32[2,8,18,8], index: 0, kind: input, shape index: {}]
  %s1 = inlined_call_operand.vmem [shape: f32[2,8,18,8], index: 1, kind: output, shape index: {}]
  $region1: #{reverse.9} parent=0
    #allocation0 [shape = 'u8[65536]{0}', space=vmem, size = 0x10000, scoped, tag = 'operand span for operand 0']
    #allocation1 [shape = 'u8[65536]{0}', space=vmem, size = 0x10000, scoped, tag = 'operand span for operand 1']
    // Predicated region
    $region2: #{reverse.9} parent=1 // pred_check
      _
    $region3: #{reverse.9} parent=1 // pred_check_branch
      %3 = sbr.rel (0) target = $region5
    $region4: #{reverse.9} parent=1 // pred_region
      // Predicated region
      $region6: #{reverse.9} parent=4 // pred_check
        _
      $region7: #{reverse.9} parent=4 // pred_check_branch
        %5 = sbr.rel (0) target = $region9
      $region8: #{reverse.9} parent=4 // pred_region
        // Predicated region
        $region21: #{reverse.9} parent=8 // pred_check
          _
        $region22: #{reverse.9} parent=8 // pred_check_branch
          %50 = sbr.rel (0) target = $region24
        $region23: #{reverse.9} parent=8 // pred_region
          loop: start=0, step=1, limit=1
          $region25: #{reverse.9} parent=23 // loop_pre_header
            _
          $region26: #{reverse.9} parent=23 // loop_header
            %s52 = sphi 0, %s56
            %p53 = scmp.ge.s32.totalorder %s52, 1
            %s57 = sphi %s0, %s0
            %s58 = sphi [#allocation0], [#allocation0]
          $region27: #{reverse.9} parent=23 // loop_header_branch
            %55 = sbr.rel (%p53) target = $region31
          $region28: #{reverse.9} parent=23 // loop_body
            %v59 = vld [vmem:[%s57] sm:$0xff]
            %60 = vst [vmem:[%s58] sm:$0xff] %v59
            %v61 = vld [vmem:[%s57 + $0x8] sm:$0xff]
            %62 = vst [vmem:[%s58 + $0x8] sm:$0xff] %v61
            %v63 = vld [vmem:[%s57 + $0x10] sm:$0xff]
            %64 = vst [vmem:[%s58 + $0x10] sm:$0xff] %v63
            %v65 = vld [vmem:[%s57 + $0x18] sm:$0xff]
            %66 = vst [vmem:[%s58 + $0x18] sm:$0xff] %v65
            %v67 = vld [vmem:[%s57 + $0x20] sm:$0xff]
            %68 = vst [vmem:[%s58 + $0x20] sm:$0xff] %v67
            %v69 = vld [vmem:[%s57 + $0x28] sm:$0xff]
            %70 = vst [vmem:[%s58 + $0x28] sm:$0xff] %v69
            %v71 = vld [vmem:[%s57 + $0x30] sm:$0xff]
            %72 = vst [vmem:[%s58 + $0x30] sm:$0xff] %v71
            %v73 = vld [vmem:[%s57 + $0x38] sm:$0xff]
            %74 = vst [vmem:[%s58 + $0x38] sm:$0xff] %v73
            %v75 = vld [vmem:[%s57 + $0x40] sm:$0xff]
            %76 = vst [vmem:[%s58 + $0x40] sm:$0xff] %v75
            %v77 = vld [vmem:[%s57 + $0x48] sm:$0xff]
            %78 = vst [vmem:[%s58 + $0x48] sm:$0xff] %v77
            %v79 = vld [vmem:[%s57 + $0x50] sm:$0xff]
            %80 = vst [vmem:[%s58 + $0x50] sm:$0xff] %v79
            %v81 = vld [vmem:[%s57 + $0x58] sm:$0xff]
            %82 = vst [vmem:[%s58 + $0x58] sm:$0xff] %v81
            %v83 = vld [vmem:[%s57 + $0x60] sm:$0xff]
            %84 = vst [vmem:[%s58 + $0x60] sm:$0xff] %v83
            %v85 = vld [vmem:[%s57 + $0x68] sm:$0xff]
            %86 = vst [vmem:[%s58 + $0x68] sm:$0xff] %v85
            %v87 = vld [vmem:[%s57 + $0x70] sm:$0xff]
            %88 = vst [vmem:[%s58 + $0x70] sm:$0xff] %v87
            %v89 = vld [vmem:[%s57 + $0x78] sm:$0xff]
            %90 = vst [vmem:[%s58 + $0x78] sm:$0xff] %v89
          $region29: #{reverse.9} parent=23 // loop_footer
            %s56 = sadd.s32 1, %s52
          $region30: #{reverse.9} parent=23 // loop_footer_branch
            %51 = sbr.rel target = $region26
          $region31: #{reverse.9} parent=23 // loop_exit
            _
        $region24: #{reverse.9} parent=8 // pred_fallthru
          _
        // Predicated region
        $region32: #{reverse.9} parent=8 // pred_check
          _
        $region33: #{reverse.9} parent=8 // pred_check_branch
          %92 = sbr.rel target = $region35
        $region34: #{reverse.9} parent=8 // pred_region
          _
        $region35: #{reverse.9} parent=8 // pred_fallthru
          _
      $region9: #{reverse.9} parent=4 // pred_fallthru
        _
      // Predicated region
      $region10: #{reverse.9} parent=4 // pred_check
        _
      $region11: #{reverse.9} parent=4 // pred_check_branch
        %7 = sbr.rel target = $region13
      $region12: #{reverse.9} parent=4 // pred_region
        loop: start=0, step=1, limit=1
        $region14: #{reverse.9} parent=12 // loop_pre_header
          _
        $region15: #{reverse.9} parent=12 // loop_header
          %s10 = sphi 0, %s14
          %p11 = scmp.ge.s32.totalorder %s10, 1
          %s15 = sphi %s0, %s0
          %s16 = sphi [#allocation0], [#allocation0]
        $region16: #{reverse.9} parent=12 // loop_header_branch
          %13 = sbr.rel (%p11) target = $region20
        $region17: #{reverse.9} parent=12 // loop_body
          %v17 = vld [vmem:[%s15] sm:$0xff]
          %18 = vst [vmem:[%s16] sm:$0xff] %v17
          %v19 = vld [vmem:[%s15 + $0x8] sm:$0xff]
          %20 = vst [vmem:[%s16 + $0x8] sm:$0xff] %v19
          %v21 = vld [vmem:[%s15 + $0x10] sm:$0xff]
          %22 = vst [vmem:[%s16 + $0x10] sm:$0xff] %v21
          %v23 = vld [vmem:[%s15 + $0x18] sm:$0xff]
          %24 = vst [vmem:[%s16 + $0x18] sm:$0xff] %v23
          %v25 = vld [vmem:[%s15 + $0x20] sm:$0xff]
          %26 = vst [vmem:[%s16 + $0x20] sm:$0xff] %v25
          %v27 = vld [vmem:[%s15 + $0x28] sm:$0xff]
          %28 = vst [vmem:[%s16 + $0x28] sm:$0xff] %v27
          %v29 = vld [vmem:[%s15 + $0x30] sm:$0xff]
          %30 = vst [vmem:[%s16 + $0x30] sm:$0xff] %v29
          %v31 = vld [vmem:[%s15 + $0x38] sm:$0xff]
          %32 = vst [vmem:[%s16 + $0x38] sm:$0xff] %v31
          %v33 = vld [vmem:[%s15 + $0x40] sm:$0xff]
          %34 = vst [vmem:[%s16 + $0x40] sm:$0xff] %v33
          %v35 = vld [vmem:[%s15 + $0x48] sm:$0xff]
          %36 = vst [vmem:[%s16 + $0x48] sm:$0xff] %v35
          %v37 = vld [vmem:[%s15 + $0x50] sm:$0xff]
          %38 = vst [vmem:[%s16 + $0x50] sm:$0xff] %v37
          %v39 = vld [vmem:[%s15 + $0x58] sm:$0xff]
          %40 = vst [vmem:[%s16 + $0x58] sm:$0xff] %v39
          %v41 = vld [vmem:[%s15 + $0x60] sm:$0xff]
          %42 = vst [vmem:[%s16 + $0x60] sm:$0xff] %v41
          %v43 = vld [vmem:[%s15 + $0x68] sm:$0xff]
          %44 = vst [vmem:[%s16 + $0x68] sm:$0xff] %v43
          %v45 = vld [vmem:[%s15 + $0x70] sm:$0xff]
          %46 = vst [vmem:[%s16 + $0x70] sm:$0xff] %v45
          %v47 = vld [vmem:[%s15 + $0x78] sm:$0xff]
          %48 = vst [vmem:[%s16 + $0x78] sm:$0xff] %v47
        $region18: #{reverse.9} parent=12 // loop_footer
          %s14 = sadd.s32 1, %s10
        $region19: #{reverse.9} parent=12 // loop_footer_branch
          %9 = sbr.rel target = $region15
        $region20: #{reverse.9} parent=12 // loop_exit
          _
      $region13: #{reverse.9} parent=4 // pred_fallthru
        _
    $region5: #{reverse.9} parent=1 // pred_fallthru
      _
    %93 = vnop
    %s94 = scalar_lea.vmem [#allocation0], 7
    %v95 = vld [vmem:[%s94] ss:$-1 sm:$0xff]
    %96 = vst [vmem:[#allocation1] sm:$0xff] %v95
    %s97 = scalar_lea.vmem [#allocation1], 8
    %s98 = scalar_lea.vmem [#allocation0], 8
    %s99 = scalar_lea.vmem %s98, 7 [#allocation0]
    %v100 = vld [vmem:[%s99] ss:$-1 sm:$0xff]
    %101 = vst [vmem:[%s97] sm:$0xff] %v100
    %s102 = scalar_lea.vmem [#allocation1], 16
    %s103 = scalar_lea.vmem [#allocation0], 16
    %s104 = scalar_lea.vmem %s103, 7 [#allocation0]
    %v105 = vld [vmem:[%s104] ss:$-1 sm:$0xff]
    %106 = vst [vmem:[%s102] sm:$0xff] %v105
    %s107 = scalar_lea.vmem [#allocation1], 24
    %s108 = scalar_lea.vmem [#allocation0], 24
    %s109 = scalar_lea.vmem %s108, 7 [#allocation0]
    %v110 = vld [vmem:[%s109] ss:$-1 sm:$0xff]
    %111 = vst [vmem:[%s107] sm:$0xff] %v110
    %s112 = scalar_lea.vmem [#allocation1], 32
    %s113 = scalar_lea.vmem [#allocation0], 32
    %s114 = scalar_lea.vmem %s113, 7 [#allocation0]
    %v115 = vld [vmem:[%s114] ss:$-1 sm:$0xff]
    %116 = vst [vmem:[%s112] sm:$0xff] %v115
    %s117 = scalar_lea.vmem [#allocation1], 40
    %s118 = scalar_lea.vmem [#allocation0], 40
    %s119 = scalar_lea.vmem %s118, 7 [#allocation0]
    %v120 = vld [vmem:[%s119] ss:$-1 sm:$0xff]
    %121 = vst [vmem:[%s117] sm:$0xff] %v120
    %s122 = scalar_lea.vmem [#allocation1], 48
    %s123 = scalar_lea.vmem [#allocation0], 48
    %s124 = scalar_lea.vmem %s123, 7 [#allocation0]
    %v125 = vld [vmem:[%s124] ss:$-1 sm:$0xff]
    %126 = vst [vmem:[%s122] sm:$0xff] %v125
    %s127 = scalar_lea.vmem [#allocation1], 56
    %s128 = scalar_lea.vmem [#allocation0], 56
    %s129 = scalar_lea.vmem %s128, 7 [#allocation0]
    %v130 = vld [vmem:[%s129] ss:$-1 sm:$0xff]
    %131 = vst [vmem:[%s127] sm:$0xff] %v130
    %s132 = scalar_lea.vmem [#allocation1], 64
    %s133 = scalar_lea.vmem [#allocation0], 64
    %s134 = scalar_lea.vmem %s133, 7 [#allocation0]
    %v135 = vld [vmem:[%s134] ss:$-1 sm:$0xff]
    %136 = vst [vmem:[%s132] sm:$0xff] %v135
    %s137 = scalar_lea.vmem [#allocation1], 72
    %s138 = scalar_lea.vmem [#allocation0], 72
    %s139 = scalar_lea.vmem %s138, 7 [#allocation0]
    %v140 = vld [vmem:[%s139] ss:$-1 sm:$0xff]
    %141 = vst [vmem:[%s137] sm:$0xff] %v140
    %s142 = scalar_lea.vmem [#allocation1], 80
    %s143 = scalar_lea.vmem [#allocation0], 80
    %s144 = scalar_lea.vmem %s143, 7 [#allocation0]
    %v145 = vld [vmem:[%s144] ss:$-1 sm:$0xff]
    %146 = vst [vmem:[%s142] sm:$0xff] %v145
    %s147 = scalar_lea.vmem [#allocation1], 88
    %s148 = scalar_lea.vmem [#allocation0], 88
    %s149 = scalar_lea.vmem %s148, 7 [#allocation0]
    %v150 = vld [vmem:[%s149] ss:$-1 sm:$0xff]
    %151 = vst [vmem:[%s147] sm:$0xff] %v150
    %s152 = scalar_lea.vmem [#allocation1], 96
    %s153 = scalar_lea.vmem [#allocation0], 96
    %s154 = scalar_lea.vmem %s153, 7 [#allocation0]
    %v155 = vld [vmem:[%s154] ss:$-1 sm:$0xff]
    %156 = vst [vmem:[%s152] sm:$0xff] %v155
    %s157 = scalar_lea.vmem [#allocation1], 104
    %s158 = scalar_lea.vmem [#allocation0], 104
    %s159 = scalar_lea.vmem %s158, 7 [#allocation0]
    %v160 = vld [vmem:[%s159] ss:$-1 sm:$0xff]
    %161 = vst [vmem:[%s157] sm:$0xff] %v160
    %s162 = scalar_lea.vmem [#allocation1], 112
    %s163 = scalar_lea.vmem [#allocation0], 112
    %s164 = scalar_lea.vmem %s163, 7 [#allocation0]
    %v165 = vld [vmem:[%s164] ss:$-1 sm:$0xff]
    %166 = vst [vmem:[%s162] sm:$0xff] %v165
    %s167 = scalar_lea.vmem [#allocation1], 120
    %s168 = scalar_lea.vmem [#allocation0], 120
    %s169 = scalar_lea.vmem %s168, 7 [#allocation0]
    %v170 = vld [vmem:[%s169] ss:$-1 sm:$0xff]
    %171 = vst [vmem:[%s167] sm:$0xff] %v170
    // Predicated region
    $region36: #{reverse.9} parent=1 // pred_check
      _
    $region37: #{reverse.9} parent=1 // pred_check_branch
      %173 = sbr.rel (0) target = $region39
    $region38: #{reverse.9} parent=1 // pred_region
      // Predicated region
      $region40: #{reverse.9} parent=38 // pred_check
        _
      $region41: #{reverse.9} parent=38 // pred_check_branch
        %175 = sbr.rel (0) target = $region43
      $region42: #{reverse.9} parent=38 // pred_region
        // Predicated region
        $region55: #{reverse.9} parent=42 // pred_check
          _
        $region56: #{reverse.9} parent=42 // pred_check_branch
          %220 = sbr.rel (0) target = $region58
        $region57: #{reverse.9} parent=42 // pred_region
          loop: start=0, step=1, limit=1
          $region59: #{reverse.9} parent=57 // loop_pre_header
            _
          $region60: #{reverse.9} parent=57 // loop_header
            %s222 = sphi 0, %s226
            %p223 = scmp.ge.s32.totalorder %s222, 1
            %s227 = sphi [#allocation1], [#allocation1]
            %s228 = sphi %s1, %s1
          $region61: #{reverse.9} parent=57 // loop_header_branch
            %225 = sbr.rel (%p223) target = $region65
          $region62: #{reverse.9} parent=57 // loop_body
            %v229 = vld [vmem:[%s227] sm:$0xff]
            %230 = vst [vmem:[%s228] sm:$0xff] %v229
            %v231 = vld [vmem:[%s227 + $0x8] sm:$0xff]
            %232 = vst [vmem:[%s228 + $0x8] sm:$0xff] %v231
            %v233 = vld [vmem:[%s227 + $0x10] sm:$0xff]
            %234 = vst [vmem:[%s228 + $0x10] sm:$0xff] %v233
            %v235 = vld [vmem:[%s227 + $0x18] sm:$0xff]
            %236 = vst [vmem:[%s228 + $0x18] sm:$0xff] %v235
            %v237 = vld [vmem:[%s227 + $0x20] sm:$0xff]
            %238 = vst [vmem:[%s228 + $0x20] sm:$0xff] %v237
            %v239 = vld [vmem:[%s227 + $0x28] sm:$0xff]
            %240 = vst [vmem:[%s228 + $0x28] sm:$0xff] %v239
            %v241 = vld [vmem:[%s227 + $0x30] sm:$0xff]
            %242 = vst [vmem:[%s228 + $0x30] sm:$0xff] %v241
            %v243 = vld [vmem:[%s227 + $0x38] sm:$0xff]
            %244 = vst [vmem:[%s228 + $0x38] sm:$0xff] %v243
            %v245 = vld [vmem:[%s227 + $0x40] sm:$0xff]
            %246 = vst [vmem:[%s228 + $0x40] sm:$0xff] %v245
            %v247 = vld [vmem:[%s227 + $0x48] sm:$0xff]
            %248 = vst [vmem:[%s228 + $0x48] sm:$0xff] %v247
            %v249 = vld [vmem:[%s227 + $0x50] sm:$0xff]
            %250 = vst [vmem:[%s228 + $0x50] sm:$0xff] %v249
            %v251 = vld [vmem:[%s227 + $0x58] sm:$0xff]
            %252 = vst [vmem:[%s228 + $0x58] sm:$0xff] %v251
            %v253 = vld [vmem:[%s227 + $0x60] sm:$0xff]
            %254 = vst [vmem:[%s228 + $0x60] sm:$0xff] %v253
            %v255 = vld [vmem:[%s227 + $0x68] sm:$0xff]
            %256 = vst [vmem:[%s228 + $0x68] sm:$0xff] %v255
            %v257 = vld [vmem:[%s227 + $0x70] sm:$0xff]
            %258 = vst [vmem:[%s228 + $0x70] sm:$0xff] %v257
            %v259 = vld [vmem:[%s227 + $0x78] sm:$0xff]
            %260 = vst [vmem:[%s228 + $0x78] sm:$0xff] %v259
          $region63: #{reverse.9} parent=57 // loop_footer
            %s226 = sadd.s32 1, %s222
          $region64: #{reverse.9} parent=57 // loop_footer_branch
            %221 = sbr.rel target = $region60
          $region65: #{reverse.9} parent=57 // loop_exit
            _
        $region58: #{reverse.9} parent=42 // pred_fallthru
          _
        // Predicated region
        $region66: #{reverse.9} parent=42 // pred_check
          _
        $region67: #{reverse.9} parent=42 // pred_check_branch
          %262 = sbr.rel target = $region69
        $region68: #{reverse.9} parent=42 // pred_region
          _
        $region69: #{reverse.9} parent=42 // pred_fallthru
          _
      $region43: #{reverse.9} parent=38 // pred_fallthru
        _
      // Predicated region
      $region44: #{reverse.9} parent=38 // pred_check
        _
      $region45: #{reverse.9} parent=38 // pred_check_branch
        %177 = sbr.rel target = $region47
      $region46: #{reverse.9} parent=38 // pred_region
        loop: start=0, step=1, limit=1
        $region48: #{reverse.9} parent=46 // loop_pre_header
          _
        $region49: #{reverse.9} parent=46 // loop_header
          %s180 = sphi 0, %s184
          %p181 = scmp.ge.s32.totalorder %s180, 1
          %s185 = sphi [#allocation1], [#allocation1]
          %s186 = sphi %s1, %s1
        $region50: #{reverse.9} parent=46 // loop_header_branch
          %183 = sbr.rel (%p181) target = $region54
        $region51: #{reverse.9} parent=46 // loop_body
          %v187 = vld [vmem:[%s185] sm:$0xff]
          %188 = vst [vmem:[%s186] sm:$0xff] %v187
          %v189 = vld [vmem:[%s185 + $0x8] sm:$0xff]
          %190 = vst [vmem:[%s186 + $0x8] sm:$0xff] %v189
          %v191 = vld [vmem:[%s185 + $0x10] sm:$0xff]
          %192 = vst [vmem:[%s186 + $0x10] sm:$0xff] %v191
          %v193 = vld [vmem:[%s185 + $0x18] sm:$0xff]
          %194 = vst [vmem:[%s186 + $0x18] sm:$0xff] %v193
          %v195 = vld [vmem:[%s185 + $0x20] sm:$0xff]
          %196 = vst [vmem:[%s186 + $0x20] sm:$0xff] %v195
          %v197 = vld [vmem:[%s185 + $0x28] sm:$0xff]
          %198 = vst [vmem:[%s186 + $0x28] sm:$0xff] %v197
          %v199 = vld [vmem:[%s185 + $0x30] sm:$0xff]
          %200 = vst [vmem:[%s186 + $0x30] sm:$0xff] %v199
          %v201 = vld [vmem:[%s185 + $0x38] sm:$0xff]
          %202 = vst [vmem:[%s186 + $0x38] sm:$0xff] %v201
          %v203 = vld [vmem:[%s185 + $0x40] sm:$0xff]
          %204 = vst [vmem:[%s186 + $0x40] sm:$0xff] %v203
          %v205 = vld [vmem:[%s185 + $0x48] sm:$0xff]
          %206 = vst [vmem:[%s186 + $0x48] sm:$0xff] %v205
          %v207 = vld [vmem:[%s185 + $0x50] sm:$0xff]
          %208 = vst [vmem:[%s186 + $0x50] sm:$0xff] %v207
          %v209 = vld [vmem:[%s185 + $0x58] sm:$0xff]
          %210 = vst [vmem:[%s186 + $0x58] sm:$0xff] %v209
          %v211 = vld [vmem:[%s185 + $0x60] sm:$0xff]
          %212 = vst [vmem:[%s186 + $0x60] sm:$0xff] %v211
          %v213 = vld [vmem:[%s185 + $0x68] sm:$0xff]
          %214 = vst [vmem:[%s186 + $0x68] sm:$0xff] %v213
          %v215 = vld [vmem:[%s185 + $0x70] sm:$0xff]
          %216 = vst [vmem:[%s186 + $0x70] sm:$0xff] %v215
          %v217 = vld [vmem:[%s185 + $0x78] sm:$0xff]
          %218 = vst [vmem:[%s186 + $0x78] sm:$0xff] %v217
        $region52: #{reverse.9} parent=46 // loop_footer
          %s184 = sadd.s32 1, %s180
        $region53: #{reverse.9} parent=46 // loop_footer_branch
          %179 = sbr.rel target = $region49
        $region54: #{reverse.9} parent=46 // loop_exit
          _
      $region47: #{reverse.9} parent=38 // pred_fallthru
        _
    $region39: #{reverse.9} parent=1 // pred_fallthru
      _
    %263 = vnop

// kernel: gated_freq_moe_forward.12
$region0: #{gated_freq_moe_forward.12}
  #allocation0 [shape = 'u32[]', space=smem, size = 0x4, offset = 0x4, fixed_abs, tag = 'smem constant byte address 0x4 - core index']
  #allocation1 [shape = 'u32[144,128]{1,0:T(1,128)}', space=vmem, size = 0x12000, scoped, tag = 'internal scratch']
  %s0 = inlined_call_operand.vmem [shape: f32[2,8,324], index: 0, kind: input, shape index: {}]
  %s1 = inlined_call_operand.vmem [shape: f32[8,8], index: 1, kind: input, shape index: {}]
  %s2 = inlined_call_operand.vmem [shape: f32[8,1], index: 2, kind: input, shape index: {}]
  %s3 = inlined_call_operand.vmem [shape: f32[2,8,324], index: 3, kind: input, shape index: {}]
  %s4 = inlined_call_operand.vmem [shape: f32[2,8,324], index: 4, kind: output, shape index: {}]
  %s5 = sld [smem:[#allocation0]]
  $region49: #{gated_freq_moe_forward.12} parent=0
    _
  %s7 = ssub.s32 1, %s5
  %s8 = scalar_select 0, %s7, %s5
  loop: start=0, step=1, limit=4
  $region2: #{gated_freq_moe_forward.12} parent=0 // loop_pre_header
    _
  $region3: #{gated_freq_moe_forward.12} parent=0 // loop_header
    %s10 = sphi 0, %s14
    %p11 = scmp.ge.s32.totalorder %s10, 4
    %s17 = sphi 0, %s29
    %s18 = sphi 0, %s25
    %s19 = sphi 0, %s17
    %s20 = sphi 0, %s18
    %s21 = sphi 0, %s19
    %s22 = sphi 0, %s20
    %s34 = sphi 0, %s36
    %s37 = sphi 0, %s34
    %s38 = sphi 0, %s37
    %s54 = sphi 0, %s38
    %s58 = sphi 0, %s58
    %s60 = sphi 0, %s58
    %s61 = sphi 0, %s60
    %s75 = sphi 0, %s61
    %s79 = sphi 0, %s79
    %s81 = sphi 0, %s79
    %s82 = sphi 0, %s81
    %s96 = sphi 0, %s82
    %s104 = sphi 0, %s106
    %s107 = sphi 0, %s104
    %s108 = sphi 0, %s107
    %s124 = sphi 0, %s108
    %s132 = sphi 0, %s134
    %s135 = sphi 0, %s132
    %s136 = sphi 0, %s135
    %s152 = sphi 0, %s136
  $region4: #{gated_freq_moe_forward.12} parent=0 // loop_header_branch
    %13 = sbr.rel (%p11) target = $region8
  $region5: #{gated_freq_moe_forward.12} parent=0 // loop_body
    %s15 = ssub.s32 %s10, 1
    %s16 = ssub.s32 %s10, 2
    %s23 = sadd.s32 1, %s18
    %p24 = scmp.ge.s32.totalorder %s23, 2
    %s25 = scalar_select %p24, 0, %s23
    %s26 = sadd.s32 1, %s17
    %s27 = scalar_select %p24, %s26, %s17
    %p28 = scmp.ge.s32.totalorder %s27, 1
    %s29 = scalar_select %p28, 0, %s27
    %s30 = ssub.s32 %s18, %s25
    %s31 = ssub.s32 %s17, %s29
    %s32 = sor.u32 %s30, %s31
    %p33 = scmp.eq.s32.totalorder %s32, 0
    %s35 = sadd.s32 %s34, 1
    %s36 = scalar_select %p33, %s34, %s35
    %p39 = pneg %p33
    %p40 = scmp.eq.s32.totalorder %s10, 1
    %p41 = por %p39, %p40
    %p42 = scmp.ne.s32.totalorder %s34, %s37
    %p43 = scmp.eq.s32.totalorder %s10, 0
    %p44 = por %p42, %p43
    %p45 = scmp.ne.s32.totalorder %s34, %s37
    %p46 = scmp.eq.s32.totalorder %s15, 1
    %p47 = por %p45, %p46
    %p48 = scmp.ne.s32.totalorder %s37, %s38
    %p49 = scmp.eq.s32.totalorder %s15, 0
    %p50 = por %p48, %p49
    %p51 = scmp.ne.s32.totalorder %s37, %s38
    %p52 = scmp.eq.s32.totalorder %s16, 1
    %p53 = por %p51, %p52
    %p55 = scmp.ne.s32.totalorder %s38, %s54
    %p56 = scmp.eq.s32.totalorder %s16, 0
    %p57 = por %p55, %p56
    %s59 = sadd.s32 %s58, 1
    %p62 = scmp.eq.s32.totalorder %s10, 1
    %p63 = scmp.ne.s32.totalorder %s58, %s60
    %p64 = scmp.eq.s32.totalorder %s10, 0
    %p65 = por %p63, %p64
    %p66 = scmp.ne.s32.totalorder %s58, %s60
    %p67 = scmp.eq.s32.totalorder %s15, 1
    %p68 = por %p66, %p67
    %p69 = scmp.ne.s32.totalorder %s60, %s61
    %p70 = scmp.eq.s32.totalorder %s15, 0
    %p71 = por %p69, %p70
    %p72 = scmp.ne.s32.totalorder %s60, %s61
    %p73 = scmp.eq.s32.totalorder %s16, 1
    %p74 = por %p72, %p73
    %p76 = scmp.ne.s32.totalorder %s61, %s75
    %p77 = scmp.eq.s32.totalorder %s16, 0
    %p78 = por %p76, %p77
    %s80 = sadd.s32 %s79, 1
    %p83 = scmp.eq.s32.totalorder %s10, 1
    %p84 = scmp.ne.s32.totalorder %s79, %s81
    %p85 = scmp.eq.s32.totalorder %s10, 0
    %p86 = por %p84, %p85
    %p87 = scmp.ne.s32.totalorder %s79, %s81
    %p88 = scmp.eq.s32.totalorder %s15, 1
    %p89 = por %p87, %p88
    %p90 = scmp.ne.s32.totalorder %s81, %s82
    %p91 = scmp.eq.s32.totalorder %s15, 0
    %p92 = por %p90, %p91
    %p93 = scmp.ne.s32.totalorder %s81, %s82
    %p94 = scmp.eq.s32.totalorder %s16, 1
    %p95 = por %p93, %p94
    %p97 = scmp.ne.s32.totalorder %s82, %s96
    %p98 = scmp.eq.s32.totalorder %s16, 0
    %p99 = por %p97, %p98
    %s100 = ssub.s32 %s18, %s25
    %s101 = ssub.s32 %s17, %s29
    %s102 = sor.u32 %s100, %s101
    %p103 = scmp.eq.s32.totalorder %s102, 0
    %s105 = sadd.s32 %s104, 1
    %s106 = scalar_select %p103, %s104, %s105
    %p109 = pneg %p103
    %p110 = scmp.eq.s32.totalorder %s10, 1
    %p111 = por %p109, %p110
    %p112 = scmp.ne.s32.totalorder %s104, %s107
    %p113 = scmp.eq.s32.totalorder %s10, 0
    %p114 = por %p112, %p113
    %p115 = scmp.ne.s32.totalorder %s104, %s107
    %p116 = scmp.eq.s32.totalorder %s15, 1
    %p117 = por %p115, %p116
    %p118 = scmp.ne.s32.totalorder %s107, %s108
    %p119 = scmp.eq.s32.totalorder %s15, 0
    %p120 = por %p118, %p119
    %p121 = scmp.ne.s32.totalorder %s107, %s108
    %p122 = scmp.eq.s32.totalorder %s16, 1
    %p123 = por %p121, %p122
    %p125 = scmp.ne.s32.totalorder %s108, %s124
    %p126 = scmp.eq.s32.totalorder %s16, 0
    %p127 = por %p125, %p126
    %s128 = ssub.s32 %s18, %s25
    %s129 = ssub.s32 %s17, %s29
    %s130 = sor.u32 %s128, %s129
    %p131 = scmp.eq.s32.totalorder %s130, 0
    %s133 = sadd.s32 %s132, 1
    %s134 = scalar_select %p131, %s132, %s133
    %p137 = pneg %p131
    %p138 = scmp.eq.s32.totalorder %s10, 1
    %p139 = por %p137, %p138
    %p140 = scmp.ne.s32.totalorder %s132, %s135
    %p141 = scmp.eq.s32.totalorder %s10, 0
    %p142 = por %p140, %p141
    %p143 = scmp.ne.s32.totalorder %s132, %s135
    %p144 = scmp.eq.s32.totalorder %s15, 1
    %p145 = por %p143, %p144
    %p146 = scmp.ne.s32.totalorder %s135, %s136
    %p147 = scmp.eq.s32.totalorder %s15, 0
    %p148 = por %p146, %p147
    %p149 = scmp.ne.s32.totalorder %s135, %s136
    %p150 = scmp.eq.s32.totalorder %s16, 1
    %p151 = por %p149, %p150
    %p153 = scmp.ne.s32.totalorder %s136, %s152
    %p154 = scmp.eq.s32.totalorder %s16, 0
    %p155 = por %p153, %p154
    %p156 = scmp.le.s32.totalorder 1, %s10
    %p157 = scmp.lt.s32.totalorder %s10, 3
    %p158 = pnand %p156, %p157
    %p159 = pneg %p158
    // Predicated region
    $region9: #{gated_freq_moe_forward.12} parent=5 // pred_check
      _
    $region10: #{gated_freq_moe_forward.12} parent=5 // pred_check_branch
      %161 = sbr.rel (%p158) target = $region12
    $region11: #{gated_freq_moe_forward.12} parent=5 // pred_region
      %s162 = ssub.s32 %s10, 1
      // Predicated region
      $region13: #{gated_freq_moe_forward.12} parent=11 // pred_check
        %p163 = pneg %p71
      $region14: #{gated_freq_moe_forward.12} parent=11 // pred_check_branch
        %165 = sbr.rel (%p163) target = $region16
      $region15: #{gated_freq_moe_forward.12} parent=11 // pred_region
        _
      $region16: #{gated_freq_moe_forward.12} parent=11 // pred_fallthru
        _
      // Predicated region
      $region17: #{gated_freq_moe_forward.12} parent=11 // pred_check
        %p166 = pneg %p92
      $region18: #{gated_freq_moe_forward.12} parent=11 // pred_check_branch
        %168 = sbr.rel (%p166) target = $region20
      $region19: #{gated_freq_moe_forward.12} parent=11 // pred_region
        _
      $region20: #{gated_freq_moe_forward.12} parent=11 // pred_fallthru
        _
    $region12: #{gated_freq_moe_forward.12} parent=5 // pred_fallthru
      _
    %p169 = scmp.lt.s32.totalorder %s10, 2
    // Predicated region
    $region21: #{gated_freq_moe_forward.12} parent=5 // pred_check
      %p170 = pneg %p169
    $region22: #{gated_freq_moe_forward.12} parent=5 // pred_check_branch
      %172 = sbr.rel (%p170) target = $region24
    $region23: #{gated_freq_moe_forward.12} parent=5 // pred_region
      // Predicated region
      $region25: #{gated_freq_moe_forward.12} parent=23 // pred_check
        %p173 = pneg %p44
      $region26: #{gated_freq_moe_forward.12} parent=23 // pred_check_branch
        %175 = sbr.rel (%p173) target = $region28
      $region27: #{gated_freq_moe_forward.12} parent=23 // pred_region
        %s176 = smul.u32 3, %s17
        %p177 = scmp.lt.s32.totalorder %s18, 1
        %s178 = scalar_select %p177, %s18, 1
        %p179 = scmp.lt.s32.totalorder %s176, 2
        %s180 = scalar_select %p179, %s176, 2
        %s181 = smul.addr %s178, 3
        %s182 = sadd.s32 %s180, %s181
        %s183 = smul.addr %s182, 8
        %s184 = scalar_lea.vmem %s0, %s183
        %s185 = smul.u32 3, %s17
      $region28: #{gated_freq_moe_forward.12} parent=23 // pred_fallthru
        _
      // Predicated region
      $region29: #{gated_freq_moe_forward.12} parent=23 // pred_check
        %p186 = pneg %p114
      $region30: #{gated_freq_moe_forward.12} parent=23 // pred_check_branch
        %188 = sbr.rel (%p186) target = $region32
      $region31: #{gated_freq_moe_forward.12} parent=23 // pred_region
        %s189 = smul.u32 3, %s17
        %p190 = scmp.lt.s32.totalorder %s18, 1
        %s191 = scalar_select %p190, %s18, 1
        %p192 = scmp.lt.s32.totalorder %s189, 2
        %s193 = scalar_select %p192, %s189, 2
        %s194 = smul.addr %s191, 3
        %s195 = sadd.s32 %s193, %s194
        %s196 = smul.addr %s195, 8
        %s197 = scalar_lea.vmem %s3, %s196
        %s198 = smul.u32 3, %s17
      $region32: #{gated_freq_moe_forward.12} parent=23 // pred_fallthru
        _
    $region24: #{gated_freq_moe_forward.12} parent=5 // pred_fallthru
      _
    %p199 = scmp.le.s32.totalorder 1, %s10
    %p200 = scmp.lt.s32.totalorder %s10, 3
    %p201 = pnand %p199, %p200
    %p202 = pneg %p201
    // Predicated region
    $region33: #{gated_freq_moe_forward.12} parent=5 // pred_check
      _
    $region34: #{gated_freq_moe_forward.12} parent=5 // pred_check_branch
      %204 = sbr.rel (%p201) target = $region36
    $region35: #{gated_freq_moe_forward.12} parent=5 // pred_region
      %s205 = ssub.s32 %s10, 1
      %s206 = smul.u32 3, %s19
      %p207 = scmp.lt.s32.totalorder %s20, 1
      %s208 = scalar_select %p207, %s20, 1
      %p209 = scmp.lt.s32.totalorder %s206, 2
      %s210 = scalar_select %p209, %s206, 2
      %s211 = smul.addr %s208, 3
      %s212 = sadd.s32 %s210, %s211
      %s213 = smul.addr %s212, 8
      %s214 = scalar_lea.vmem %s0, %s213
      %p215 = pneg %p50
      %p216 = pneg %p47
      %p217 = pneg %p71
      %p218 = pneg %p68
      %p219 = pneg %p92
      %p220 = pneg %p89
      %s221 = smul.u32 3, %s19
      %p222 = scmp.lt.s32.totalorder %s20, 1
      %s223 = scalar_select %p222, %s20, 1
      %p224 = scmp.lt.s32.totalorder %s221, 2
      %s225 = scalar_select %p224, %s221, 2
      %s226 = smul.addr %s223, 3
      %s227 = sadd.s32 %s225, %s226
      %s228 = smul.addr %s227, 8
      %s229 = scalar_lea.vmem %s3, %s228
      %p230 = pneg %p120
      %p231 = pneg %p117
      %p232 = pneg %p148
      %p233 = pneg %p145
      %s234 = smul.u32 3, %s19
      %p235 = scmp.lt.s32.totalorder %s20, 1
      %s236 = scalar_select %p235, %s20, 1
      %p237 = scmp.lt.s32.totalorder %s234, 2
      %s238 = scalar_select %p237, %s234, 2
      %s239 = smul.addr %s236, 3
      %s240 = sadd.s32 %s238, %s239
      %s241 = smul.addr %s240, 8
      %s242 = scalar_lea.vmem %s4, %s241
      %s243 = smul.u32 3, %s19
      %p244 = scmp.lt.s32.totalorder %s20, 1
      %s245 = scalar_select %p244, %s20, 1
      %p246 = scmp.lt.s32.totalorder %s243, 2
      %s247 = scalar_select %p246, %s243, 2
      %s248 = smul.addr %s245, 3
      %s249 = sadd.s32 %s247, %s248
      %s250 = smul.addr %s249, 8
      %s251 = scalar_lea.vmem %s0, %s250
      %s252 = smul.u32 3, %s19
      %s253 = smul.u32 3, %s19
      %p254 = scmp.lt.s32.totalorder %s20, 1
      %s255 = scalar_select %p254, %s20, 1
      %p256 = scmp.lt.s32.totalorder %s253, 2
      %s257 = scalar_select %p256, %s253, 2
      %s258 = smul.addr %s255, 3
      %s259 = sadd.s32 %s257, %s258
      %s260 = smul.addr %s259, 8
      %s261 = scalar_lea.vmem %s3, %s260
      %s262 = smul.u32 3, %s19
      %s263 = smul.u32 3, %s19
      %p264 = scmp.lt.s32.totalorder %s20, 1
      %s265 = scalar_select %p264, %s20, 1
      %p266 = scmp.lt.s32.totalorder %s263, 2
      %s267 = scalar_select %p266, %s263, 2
      %s268 = smul.addr %s265, 3
      %s269 = sadd.s32 %s267, %s268
      %s270 = smul.addr %s269, 8
      %s271 = scalar_lea.vmem %s4, %s270
      %s272 = smul.u32 3, %s19
      %v273 = vld [vmem:[%s1] sm:$0xff]
      %v274 = vld [vmem:[%s251] sm:$0xff]
      %v275 = vld [vmem:[%s251 + $0x8] sm:$0xff]
      %v276 = vld [vmem:[%s251 + $0x10] sm:$0xff]
      %v277 = vld [vmem:[%s2] sm:$0xff]
      %279 = vset.pattern.permute.xlu0 0
      %280 = vperm.xlu0 %279, %v277
      %v281 = vpop.permute.xlu0 %280
      %vm283 = vcmask 64512
      %v285 = vsel %vm283, %v273, 0
      %287 = vmatprep.subr.mxu0 %v275
      %288 = vmatpush1.msra.mxu0 %v274
      %289 = vmatprep.subr.mxu0 0.0
      %290 = vmatpush1.msra.mxu0 0.0
      %291 = vmatprep.subr.mxu0 0.0
      %292 = vmatpush1.msra.mxu0 0.0
      %293 = vmatprep.subr.mxu0 0.0
      %294 = vmatpush1.msra.mxu0 0.0
      %295 = vmatprep.subr.mxu0 0.0
      %296 = vmatpush1.msra.mxu0 0.0
      %297 = vmatprep.subr.mxu0 0.0
      %298 = vmatpush1.msra.mxu0 0.0
      %299 = vmatprep.subr.mxu0 0.0
      %300 = vmatpush1.msra.mxu0 0.0
      %301 = vmatprep.subr.mxu0 0.0
      %302 = vmatpush1.msra.mxu0 0.0
      %303 = vmatprep.subr.mxu0 0.0
      %304 = vmatpush1.msra.mxu0 0.0
      %305 = vmatprep.subr.mxu0 0.0
      %306 = vmatpush1.msra.mxu0 0.0
      %307 = vmatprep.subr.mxu0 0.0
      %308 = vmatpush1.msra.mxu0 0.0
      %309 = vmatprep.subr.mxu0 0.0
      %310 = vmatpush1.msra.mxu0 0.0
      %311 = vmatprep.subr.mxu0 0.0
      %312 = vmatpush1.msra.mxu0 0.0
      %313 = vmatprep.subr.mxu0 0.0
      %314 = vmatpush1.msra.mxu0 0.0
      %315 = vmatprep.subr.mxu0 0.0
      %316 = vmatpush1.msra.mxu0 0.0
      %317 = vmatprep.subr.mxu0 0.0
      %318 = vmatpush1.msra.mxu0 0.0
      %319 = vmatprep.subr.mxu0 0.0
      %320 = vmatpush1.msra.mxu0 0.0
      %321 = vmatprep.subr.mxu0 0.0
      %322 = vmatpush1.msra.mxu0 0.0
      %323 = vmatprep.subr.mxu0 0.0
      %324 = vmatpush1.msra.mxu0 0.0
      %325 = vmatprep.subr.mxu0 0.0
      %326 = vmatpush1.msra.mxu0 0.0
      %327 = vmatprep.subr.mxu0 0.0
      %328 = vmatpush1.msra.mxu0 0.0
      %329 = vmatprep.subr.mxu0 0.0
      %330 = vmatpush1.msra.mxu0 0.0
      %331 = vmatprep.subr.mxu0 0.0
      %332 = vmatpush1.msra.mxu0 0.0
      %333 = vmatprep.subr.mxu0 0.0
      %334 = vmatpush1.msra.mxu0 0.0
      %335 = vmatprep.subr.mxu0 0.0
      %336 = vmatpush1.msra.mxu0 0.0
      %337 = vmatprep.subr.mxu0 0.0
      %338 = vmatpush1.msra.mxu0 0.0
      %339 = vmatprep.subr.mxu0 0.0
      %340 = vmatpush1.msra.mxu0 0.0
      %341 = vmatprep.subr.mxu0 0.0
      %342 = vmatpush1.msra.mxu0 0.0
      %343 = vmatprep.subr.mxu0 0.0
      %344 = vmatpush1.msra.mxu0 0.0
      %345 = vmatprep.subr.mxu0 0.0
      %346 = vmatpush1.msra.mxu0 0.0
      %347 = vmatprep.subr.mxu0 0.0
      %348 = vmatpush1.msra.mxu0 0.0
      %349 = vmatprep.subr.mxu0 0.0
      %350 = vmatpush1.msra.mxu0 0.0
      %351 = vmatprep.mubr.f32.mxu0 0.0
      %352 = vmatmul.mubr.f32.gmra.mrb[0].mxu0 %v285
      %v353 = vpop.f32.mrb[0].mxu0
      %v354 = vadd.f32 %v281, %v353
      %v355 = vpop.f32.mrb[0].mxu0
      %v356 = vadd.f32 %v281, %v355
      %357 = vdwg.mxu0
      %358 = vmatprep.subr.mxu0 0.0
      %359 = vmatpush1.msra.mxu0 %v276
      %360 = vmatprep.subr.mxu0 0.0
      %361 = vmatpush1.msra.mxu0 0.0
      %362 = vmatprep.subr.mxu0 0.0
      %363 = vmatpush1.msra.mxu0 0.0
      %364 = vmatprep.subr.mxu0 0.0
      %365 = vmatpush1.msra.mxu0 0.0
      %366 = vmatprep.subr.mxu0 0.0
      %367 = vmatpush1.msra.mxu0 0.0
      %368 = vmatprep.subr.mxu0 0.0
      %369 = vmatpush1.msra.mxu0 0.0
      %370 = vmatprep.subr.mxu0 0.0
      %371 = vmatpush1.msra.mxu0 0.0
      %372 = vmatprep.subr.mxu0 0.0
      %373 = vmatpush1.msra.mxu0 0.0
      %374 = vmatprep.subr.mxu0 0.0
      %375 = vmatpush1.msra.mxu0 0.0
      %376 = vmatprep.subr.mxu0 0.0
      %377 = vmatpush1.msra.mxu0 0.0
      %378 = vmatprep.subr.mxu0 0.0
      %379 = vmatpush1.msra.mxu0 0.0
      %380 = vmatprep.subr.mxu0 0.0
      %381 = vmatpush1.msra.mxu0 0.0
      %382 = vmatprep.subr.mxu0 0.0
      %383 = vmatpush1.msra.mxu0 0.0
      %384 = vmatprep.subr.mxu0 0.0
      %385 = vmatpush1.msra.mxu0 0.0
      %386 = vmatprep.subr.mxu0 0.0
      %387 = vmatpush1.msra.mxu0 0.0
      %388 = vmatprep.subr.mxu0 0.0
      %389 = vmatpush1.msra.mxu0 0.0
      %390 = vmatprep.subr.mxu0 0.0
      %391 = vmatpush1.msra.mxu0 0.0
      %392 = vmatprep.subr.mxu0 0.0
      %393 = vmatpush1.msra.mxu0 0.0
      %394 = vmatprep.subr.mxu0 0.0
      %395 = vmatpush1.msra.mxu0 0.0
      %396 = vmatprep.subr.mxu0 0.0
      %397 = vmatpush1.msra.mxu0 0.0
      %398 = vmatprep.subr.mxu0 0.0
      %399 = vmatpush1.msra.mxu0 0.0
      %400 = vmatprep.subr.mxu0 0.0
      %401 = vmatpush1.msra.mxu0 0.0
      %402 = vmatprep.subr.mxu0 0.0
      %403 = vmatpush1.msra.mxu0 0.0
      %404 = vmatprep.subr.mxu0 0.0
      %405 = vmatpush1.msra.mxu0 0.0
      %406 = vmatprep.subr.mxu0 0.0
      %407 = vmatpush1.msra.mxu0 0.0
      %408 = vmatprep.subr.mxu0 0.0
      %409 = vmatpush1.msra.mxu0 0.0
      %410 = vmatprep.subr.mxu0 0.0
      %411 = vmatpush1.msra.mxu0 0.0
      %412 = vmatprep.subr.mxu0 0.0
      %413 = vmatpush1.msra.mxu0 0.0
      %414 = vmatprep.subr.mxu0 0.0
      %415 = vmatpush1.msra.mxu0 0.0
      %416 = vmatprep.subr.mxu0 0.0
      %417 = vmatpush1.msra.mxu0 0.0
      %418 = vmatprep.subr.mxu0 0.0
      %419 = vmatpush1.msra.mxu0 0.0
      %420 = vmatprep.subr.mxu0 0.0
      %421 = vmatpush1.msra.mxu0 0.0
      %422 = vmatprep.mubr.f32.mxu0 0.0
      %423 = vmatmul.mubr.f32.gmra.mrb[0].mxu0 %v285
      %v424 = vpop.f32.mrb[0].mxu0
      %v425 = vadd.f32 %v281, %v424
      %v426 = vpop.f32.mrb[0].mxu0
      %427 = vdwg.mxu0
      %v428 = vld [vmem:[%s261] sm:$0xff]
      %v429 = vld [vmem:[%s261 + $0x8] sm:$0xff]
      %v430 = vld [vmem:[%s261 + $0x10] sm:$0xff]
      %v431 = vadd.f32 %v354, %v428
      %v432 = vadd.f32 %v356, %v429
      %v433 = vadd.f32 %v425, %v430
      %v434 = vmul.f32 %v431, 0.5
      %v435 = vmul.f32 %v432, 0.5
      %v436 = vmul.f32 %v433, 0.5
      %v437 = vmul.f32 %v431, 0.70710677
      %v438 = vmul.f32 %v432, 0.70710677
      %v439 = vmul.f32 %v433, 0.70710677
      %v440 = verf.f32.pop %v437
      %v441 = verf.f32.pop %v438
      %v442 = verf.f32.pop %v439
      %v443 = vadd.f32 %v440, 1.0
      %v444 = vadd.f32 %v441, 1.0
      %v445 = vadd.f32 %v442, 1.0
      %v446 = vmul.f32 %v434, %v443
      %v447 = vmul.f32 %v435, %v444
      %v448 = vmul.f32 %v436, %v445
      %449 = vst [vmem:[%s271] sm:$0xff] %v446
      %450 = vst [vmem:[%s271 + $0x8] sm:$0xff] %v447
      %vm451 = vcmask 556032
      %452 = vst.msk [vmem:[%s271 + $0x10] sm:$0xff] %vm451, %v448
      %s453 = smul.u32 3, %s19
      %p454 = scmp.lt.s32.totalorder %s20, 1
      %s455 = scalar_select %p454, %s20, 1
      %p456 = scmp.lt.s32.totalorder %s453, 2
      %s457 = scalar_select %p456, %s453, 2
      %s458 = smul.addr %s455, 3
      %s459 = sadd.s32 %s457, %s458
      %s460 = smul.addr %s459, 8
      %s461 = scalar_lea.vmem %s4, %s460
      // Predicated region
      $region37: #{gated_freq_moe_forward.12} parent=35 // pred_check
        %p462 = pneg %p145
      $region38: #{gated_freq_moe_forward.12} parent=35 // pred_check_branch
        %464 = sbr.rel (%p462) target = $region40
      $region39: #{gated_freq_moe_forward.12} parent=35 // pred_region
        %s465 = smul.u32 3, %s19
      $region40: #{gated_freq_moe_forward.12} parent=35 // pred_fallthru
        _
    $region36: #{gated_freq_moe_forward.12} parent=5 // pred_fallthru
      _
    %p466 = scmp.le.s32.totalorder 2, %s10
    // Predicated region
    $region41: #{gated_freq_moe_forward.12} parent=5 // pred_check
      %p467 = pneg %p466
    $region42: #{gated_freq_moe_forward.12} parent=5 // pred_check_branch
      %469 = sbr.rel (%p467) target = $region44
    $region43: #{gated_freq_moe_forward.12} parent=5 // pred_region
      %s470 = ssub.s32 %s10, 2
      // Predicated region
      $region45: #{gated_freq_moe_forward.12} parent=43 // pred_check
        %p471 = pneg %p151
      $region46: #{gated_freq_moe_forward.12} parent=43 // pred_check_branch
        %473 = sbr.rel (%p471) target = $region48
      $region47: #{gated_freq_moe_forward.12} parent=43 // pred_region
        %s474 = smul.u32 3, %s21
        %p475 = scmp.lt.s32.totalorder %s22, 1
        %s476 = scalar_select %p475, %s22, 1
        %p477 = scmp.lt.s32.totalorder %s474, 2
        %s478 = scalar_select %p477, %s474, 2
        %s479 = smul.addr %s476, 3
        %s480 = sadd.s32 %s478, %s479
        %s481 = smul.addr %s480, 8
        %s482 = scalar_lea.vmem %s4, %s481
      $region48: #{gated_freq_moe_forward.12} parent=43 // pred_fallthru
        _
    $region44: #{gated_freq_moe_forward.12} parent=5 // pred_fallthru
      _
  $region6: #{gated_freq_moe_forward.12} parent=0 // loop_footer
    %s14 = sadd.s32 1, %s10
  $region7: #{gated_freq_moe_forward.12} parent=0 // loop_footer_branch
    %9 = sbr.rel target = $region3
  $region8: #{gated_freq_moe_forward.12} parent=0 // loop_exit
    _

// kernel: gated_freq_moe_forward.18
$region0: #{gated_freq_moe_forward.18}
  #allocation0 [shape = 'u32[]', space=smem, size = 0x4, offset = 0x4, fixed_abs, tag = 'smem constant byte address 0x4 - core index']
  #allocation1 [shape = 'u32[144,128]{1,0:T(1,128)}', space=vmem, size = 0x12000, scoped, tag = 'internal scratch']
  %s0 = inlined_call_operand.vmem [shape: f32[2,8,324], index: 0, kind: input, shape index: {}]
  %s1 = inlined_call_operand.vmem [shape: f32[8,8], index: 1, kind: input, shape index: {}]
  %s2 = inlined_call_operand.vmem [shape: f32[8,1], index: 2, kind: input, shape index: {}]
  %s3 = inlined_call_operand.vmem [shape: f32[2,8,324], index: 3, kind: input, shape index: {}]
  %s4 = inlined_call_operand.vmem [shape: f32[2,8,324], index: 4, kind: output, shape index: {}]
  %s5 = sld [smem:[#allocation0]]
  $region49: #{gated_freq_moe_forward.18} parent=0
    _
  %s7 = ssub.s32 1, %s5
  %s8 = scalar_select 0, %s7, %s5
  loop: start=0, step=1, limit=4
  $region2: #{gated_freq_moe_forward.18} parent=0 // loop_pre_header
    _
  $region3: #{gated_freq_moe_forward.18} parent=0 // loop_header
    %s10 = sphi 0, %s14
    %p11 = scmp.ge.s32.totalorder %s10, 4
    %s17 = sphi 0, %s29
    %s18 = sphi 0, %s25
    %s19 = sphi 0, %s17
    %s20 = sphi 0, %s18
    %s21 = sphi 0, %s19
    %s22 = sphi 0, %s20
    %s34 = sphi 0, %s36
    %s37 = sphi 0, %s34
    %s38 = sphi 0, %s37
    %s54 = sphi 0, %s38
    %s58 = sphi 0, %s58
    %s60 = sphi 0, %s58
    %s61 = sphi 0, %s60
    %s75 = sphi 0, %s61
    %s79 = sphi 0, %s79
    %s81 = sphi 0, %s79
    %s82 = sphi 0, %s81
    %s96 = sphi 0, %s82
    %s104 = sphi 0, %s106
    %s107 = sphi 0, %s104
    %s108 = sphi 0, %s107
    %s124 = sphi 0, %s108
    %s132 = sphi 0, %s134
    %s135 = sphi 0, %s132
    %s136 = sphi 0, %s135
    %s152 = sphi 0, %s136
  $region4: #{gated_freq_moe_forward.18} parent=0 // loop_header_branch
    %13 = sbr.rel (%p11) target = $region8
  $region5: #{gated_freq_moe_forward.18} parent=0 // loop_body
    %s15 = ssub.s32 %s10, 1
    %s16 = ssub.s32 %s10, 2
    %s23 = sadd.s32 1, %s18
    %p24 = scmp.ge.s32.totalorder %s23, 2
    %s25 = scalar_select %p24, 0, %s23
    %s26 = sadd.s32 1, %s17
    %s27 = scalar_select %p24, %s26, %s17
    %p28 = scmp.ge.s32.totalorder %s27, 1
    %s29 = scalar_select %p28, 0, %s27
    %s30 = ssub.s32 %s18, %s25
    %s31 = ssub.s32 %s17, %s29
    %s32 = sor.u32 %s30, %s31
    %p33 = scmp.eq.s32.totalorder %s32, 0
    %s35 = sadd.s32 %s34, 1
    %s36 = scalar_select %p33, %s34, %s35
    %p39 = pneg %p33
    %p40 = scmp.eq.s32.totalorder %s10, 1
    %p41 = por %p39, %p40
    %p42 = scmp.ne.s32.totalorder %s34, %s37
    %p43 = scmp.eq.s32.totalorder %s10, 0
    %p44 = por %p42, %p43
    %p45 = scmp.ne.s32.totalorder %s34, %s37
    %p46 = scmp.eq.s32.totalorder %s15, 1
    %p47 = por %p45, %p46
    %p48 = scmp.ne.s32.totalorder %s37, %s38
    %p49 = scmp.eq.s32.totalorder %s15, 0
    %p50 = por %p48, %p49
    %p51 = scmp.ne.s32.totalorder %s37, %s38
    %p52 = scmp.eq.s32.totalorder %s16, 1
    %p53 = por %p51, %p52
    %p55 = scmp.ne.s32.totalorder %s38, %s54
    %p56 = scmp.eq.s32.totalorder %s16, 0
    %p57 = por %p55, %p56
    %s59 = sadd.s32 %s58, 1
    %p62 = scmp.eq.s32.totalorder %s10, 1
    %p63 = scmp.ne.s32.totalorder %s58, %s60
    %p64 = scmp.eq.s32.totalorder %s10, 0
    %p65 = por %p63, %p64
    %p66 = scmp.ne.s32.totalorder %s58, %s60
    %p67 = scmp.eq.s32.totalorder %s15, 1
    %p68 = por %p66, %p67
    %p69 = scmp.ne.s32.totalorder %s60, %s61
    %p70 = scmp.eq.s32.totalorder %s15, 0
    %p71 = por %p69, %p70
    %p72 = scmp.ne.s32.totalorder %s60, %s61
    %p73 = scmp.eq.s32.totalorder %s16, 1
    %p74 = por %p72, %p73
    %p76 = scmp.ne.s32.totalorder %s61, %s75
    %p77 = scmp.eq.s32.totalorder %s16, 0
    %p78 = por %p76, %p77
    %s80 = sadd.s32 %s79, 1
    %p83 = scmp.eq.s32.totalorder %s10, 1
    %p84 = scmp.ne.s32.totalorder %s79, %s81
    %p85 = scmp.eq.s32.totalorder %s10, 0
    %p86 = por %p84, %p85
    %p87 = scmp.ne.s32.totalorder %s79, %s81
    %p88 = scmp.eq.s32.totalorder %s15, 1
    %p89 = por %p87, %p88
    %p90 = scmp.ne.s32.totalorder %s81, %s82
    %p91 = scmp.eq.s32.totalorder %s15, 0
    %p92 = por %p90, %p91
    %p93 = scmp.ne.s32.totalorder %s81, %s82
    %p94 = scmp.eq.s32.totalorder %s16, 1
    %p95 = por %p93, %p94
    %p97 = scmp.ne.s32.totalorder %s82, %s96
    %p98 = scmp.eq.s32.totalorder %s16, 0
    %p99 = por %p97, %p98
    %s100 = ssub.s32 %s18, %s25
    %s101 = ssub.s32 %s17, %s29
    %s102 = sor.u32 %s100, %s101
    %p103 = scmp.eq.s32.totalorder %s102, 0
    %s105 = sadd.s32 %s104, 1
    %s106 = scalar_select %p103, %s104, %s105
    %p109 = pneg %p103
    %p110 = scmp.eq.s32.totalorder %s10, 1
    %p111 = por %p109, %p110
    %p112 = scmp.ne.s32.totalorder %s104, %s107
    %p113 = scmp.eq.s32.totalorder %s10, 0
    %p114 = por %p112, %p113
    %p115 = scmp.ne.s32.totalorder %s104, %s107
    %p116 = scmp.eq.s32.totalorder %s15, 1
    %p117 = por %p115, %p116
    %p118 = scmp.ne.s32.totalorder %s107, %s108
    %p119 = scmp.eq.s32.totalorder %s15, 0
    %p120 = por %p118, %p119
    %p121 = scmp.ne.s32.totalorder %s107, %s108
    %p122 = scmp.eq.s32.totalorder %s16, 1
    %p123 = por %p121, %p122
    %p125 = scmp.ne.s32.totalorder %s108, %s124
    %p126 = scmp.eq.s32.totalorder %s16, 0
    %p127 = por %p125, %p126
    %s128 = ssub.s32 %s18, %s25
    %s129 = ssub.s32 %s17, %s29
    %s130 = sor.u32 %s128, %s129
    %p131 = scmp.eq.s32.totalorder %s130, 0
    %s133 = sadd.s32 %s132, 1
    %s134 = scalar_select %p131, %s132, %s133
    %p137 = pneg %p131
    %p138 = scmp.eq.s32.totalorder %s10, 1
    %p139 = por %p137, %p138
    %p140 = scmp.ne.s32.totalorder %s132, %s135
    %p141 = scmp.eq.s32.totalorder %s10, 0
    %p142 = por %p140, %p141
    %p143 = scmp.ne.s32.totalorder %s132, %s135
    %p144 = scmp.eq.s32.totalorder %s15, 1
    %p145 = por %p143, %p144
    %p146 = scmp.ne.s32.totalorder %s135, %s136
    %p147 = scmp.eq.s32.totalorder %s15, 0
    %p148 = por %p146, %p147
    %p149 = scmp.ne.s32.totalorder %s135, %s136
    %p150 = scmp.eq.s32.totalorder %s16, 1
    %p151 = por %p149, %p150
    %p153 = scmp.ne.s32.totalorder %s136, %s152
    %p154 = scmp.eq.s32.totalorder %s16, 0
    %p155 = por %p153, %p154
    %p156 = scmp.le.s32.totalorder 1, %s10
    %p157 = scmp.lt.s32.totalorder %s10, 3
    %p158 = pnand %p156, %p157
    %p159 = pneg %p158
    // Predicated region
    $region9: #{gated_freq_moe_forward.18} parent=5 // pred_check
      _
    $region10: #{gated_freq_moe_forward.18} parent=5 // pred_check_branch
      %161 = sbr.rel (%p158) target = $region12
    $region11: #{gated_freq_moe_forward.18} parent=5 // pred_region
      %s162 = ssub.s32 %s10, 1
      // Predicated region
      $region13: #{gated_freq_moe_forward.18} parent=11 // pred_check
        %p163 = pneg %p71
      $region14: #{gated_freq_moe_forward.18} parent=11 // pred_check_branch
        %165 = sbr.rel (%p163) target = $region16
      $region15: #{gated_freq_moe_forward.18} parent=11 // pred_region
        _
      $region16: #{gated_freq_moe_forward.18} parent=11 // pred_fallthru
        _
      // Predicated region
      $region17: #{gated_freq_moe_forward.18} parent=11 // pred_check
        %p166 = pneg %p92
      $region18: #{gated_freq_moe_forward.18} parent=11 // pred_check_branch
        %168 = sbr.rel (%p166) target = $region20
      $region19: #{gated_freq_moe_forward.18} parent=11 // pred_region
        _
      $region20: #{gated_freq_moe_forward.18} parent=11 // pred_fallthru
        _
    $region12: #{gated_freq_moe_forward.18} parent=5 // pred_fallthru
      _
    %p169 = scmp.lt.s32.totalorder %s10, 2
    // Predicated region
    $region21: #{gated_freq_moe_forward.18} parent=5 // pred_check
      %p170 = pneg %p169
    $region22: #{gated_freq_moe_forward.18} parent=5 // pred_check_branch
      %172 = sbr.rel (%p170) target = $region24
    $region23: #{gated_freq_moe_forward.18} parent=5 // pred_region
      // Predicated region
      $region25: #{gated_freq_moe_forward.18} parent=23 // pred_check
        %p173 = pneg %p44
      $region26: #{gated_freq_moe_forward.18} parent=23 // pred_check_branch
        %175 = sbr.rel (%p173) target = $region28
      $region27: #{gated_freq_moe_forward.18} parent=23 // pred_region
        %s176 = smul.u32 3, %s17
        %p177 = scmp.lt.s32.totalorder %s18, 1
        %s178 = scalar_select %p177, %s18, 1
        %p179 = scmp.lt.s32.totalorder %s176, 2
        %s180 = scalar_select %p179, %s176, 2
        %s181 = smul.addr %s178, 3
        %s182 = sadd.s32 %s180, %s181
        %s183 = smul.addr %s182, 8
        %s184 = scalar_lea.vmem %s0, %s183
        %s185 = smul.u32 3, %s17
      $region28: #{gated_freq_moe_forward.18} parent=23 // pred_fallthru
        _
      // Predicated region
      $region29: #{gated_freq_moe_forward.18} parent=23 // pred_check
        %p186 = pneg %p114
      $region30: #{gated_freq_moe_forward.18} parent=23 // pred_check_branch
        %188 = sbr.rel (%p186) target = $region32
      $region31: #{gated_freq_moe_forward.18} parent=23 // pred_region
        %s189 = smul.u32 3, %s17
        %p190 = scmp.lt.s32.totalorder %s18, 1
        %s191 = scalar_select %p190, %s18, 1
        %p192 = scmp.lt.s32.totalorder %s189, 2
        %s193 = scalar_select %p192, %s189, 2
        %s194 = smul.addr %s191, 3
        %s195 = sadd.s32 %s193, %s194
        %s196 = smul.addr %s195, 8
        %s197 = scalar_lea.vmem %s3, %s196
        %s198 = smul.u32 3, %s17
      $region32: #{gated_freq_moe_forward.18} parent=23 // pred_fallthru
        _
    $region24: #{gated_freq_moe_forward.18} parent=5 // pred_fallthru
      _
    %p199 = scmp.le.s32.totalorder 1, %s10
    %p200 = scmp.lt.s32.totalorder %s10, 3
    %p201 = pnand %p199, %p200
    %p202 = pneg %p201
    // Predicated region
    $region33: #{gated_freq_moe_forward.18} parent=5 // pred_check
      _
    $region34: #{gated_freq_moe_forward.18} parent=5 // pred_check_branch
      %204 = sbr.rel (%p201) target = $region36
    $region35: #{gated_freq_moe_forward.18} parent=5 // pred_region
      %s205 = ssub.s32 %s10, 1
      %s206 = smul.u32 3, %s19
      %p207 = scmp.lt.s32.totalorder %s20, 1
      %s208 = scalar_select %p207, %s20, 1
      %p209 = scmp.lt.s32.totalorder %s206, 2
      %s210 = scalar_select %p209, %s206, 2
      %s211 = smul.addr %s208, 3
      %s212 = sadd.s32 %s210, %s211
      %s213 = smul.addr %s212, 8
      %s214 = scalar_lea.vmem %s0, %s213
      %p215 = pneg %p50
      %p216 = pneg %p47
      %p217 = pneg %p71
      %p218 = pneg %p68
      %p219 = pneg %p92
      %p220 = pneg %p89
      %s221 = smul.u32 3, %s19
      %p222 = scmp.lt.s32.totalorder %s20, 1
      %s223 = scalar_select %p222, %s20, 1
      %p224 = scmp.lt.s32.totalorder %s221, 2
      %s225 = scalar_select %p224, %s221, 2
      %s226 = smul.addr %s223, 3
      %s227 = sadd.s32 %s225, %s226
      %s228 = smul.addr %s227, 8
      %s229 = scalar_lea.vmem %s3, %s228
      %p230 = pneg %p120
      %p231 = pneg %p117
      %p232 = pneg %p148
      %p233 = pneg %p145
      %s234 = smul.u32 3, %s19
      %p235 = scmp.lt.s32.totalorder %s20, 1
      %s236 = scalar_select %p235, %s20, 1
      %p237 = scmp.lt.s32.totalorder %s234, 2
      %s238 = scalar_select %p237, %s234, 2
      %s239 = smul.addr %s236, 3
      %s240 = sadd.s32 %s238, %s239
      %s241 = smul.addr %s240, 8
      %s242 = scalar_lea.vmem %s4, %s241
      %s243 = smul.u32 3, %s19
      %p244 = scmp.lt.s32.totalorder %s20, 1
      %s245 = scalar_select %p244, %s20, 1
      %p246 = scmp.lt.s32.totalorder %s243, 2
      %s247 = scalar_select %p246, %s243, 2
      %s248 = smul.addr %s245, 3
      %s249 = sadd.s32 %s247, %s248
      %s250 = smul.addr %s249, 8
      %s251 = scalar_lea.vmem %s0, %s250
      %s252 = smul.u32 3, %s19
      %s253 = smul.u32 3, %s19
      %p254 = scmp.lt.s32.totalorder %s20, 1
      %s255 = scalar_select %p254, %s20, 1
      %p256 = scmp.lt.s32.totalorder %s253, 2
      %s257 = scalar_select %p256, %s253, 2
      %s258 = smul.addr %s255, 3
      %s259 = sadd.s32 %s257, %s258
      %s260 = smul.addr %s259, 8
      %s261 = scalar_lea.vmem %s3, %s260
      %s262 = smul.u32 3, %s19
      %s263 = smul.u32 3, %s19
      %p264 = scmp.lt.s32.totalorder %s20, 1
      %s265 = scalar_select %p264, %s20, 1
      %p266 = scmp.lt.s32.totalorder %s263, 2
      %s267 = scalar_select %p266, %s263, 2
      %s268 = smul.addr %s265, 3
      %s269 = sadd.s32 %s267, %s268
      %s270 = smul.addr %s269, 8
      %s271 = scalar_lea.vmem %s4, %s270
      %s272 = smul.u32 3, %s19
      %v273 = vld [vmem:[%s1] sm:$0xff]
      %v274 = vld [vmem:[%s251] sm:$0xff]
      %v275 = vld [vmem:[%s251 + $0x8] sm:$0xff]
      %v276 = vld [vmem:[%s251 + $0x10] sm:$0xff]
      %v277 = vld [vmem:[%s2] sm:$0xff]
      %279 = vset.pattern.permute.xlu0 0
      %280 = vperm.xlu0 %279, %v277
      %v281 = vpop.permute.xlu0 %280
      %vm283 = vcmask 64512
      %v285 = vsel %vm283, %v273, 0
      %287 = vmatprep.subr.mxu0 %v275
      %288 = vmatpush1.msra.mxu0 %v274
      %289 = vmatprep.subr.mxu0 0.0
      %290 = vmatpush1.msra.mxu0 0.0
      %291 = vmatprep.subr.mxu0 0.0
      %292 = vmatpush1.msra.mxu0 0.0
      %293 = vmatprep.subr.mxu0 0.0
      %294 = vmatpush1.msra.mxu0 0.0
      %295 = vmatprep.subr.mxu0 0.0
      %296 = vmatpush1.msra.mxu0 0.0
      %297 = vmatprep.subr.mxu0 0.0
      %298 = vmatpush1.msra.mxu0 0.0
      %299 = vmatprep.subr.mxu0 0.0
      %300 = vmatpush1.msra.mxu0 0.0
      %301 = vmatprep.subr.mxu0 0.0
      %302 = vmatpush1.msra.mxu0 0.0
      %303 = vmatprep.subr.mxu0 0.0
      %304 = vmatpush1.msra.mxu0 0.0
      %305 = vmatprep.subr.mxu0 0.0
      %306 = vmatpush1.msra.mxu0 0.0
      %307 = vmatprep.subr.mxu0 0.0
      %308 = vmatpush1.msra.mxu0 0.0
      %309 = vmatprep.subr.mxu0 0.0
      %310 = vmatpush1.msra.mxu0 0.0
      %311 = vmatprep.subr.mxu0 0.0
      %312 = vmatpush1.msra.mxu0 0.0
      %313 = vmatprep.subr.mxu0 0.0
      %314 = vmatpush1.msra.mxu0 0.0
      %315 = vmatprep.subr.mxu0 0.0
      %316 = vmatpush1.msra.mxu0 0.0
      %317 = vmatprep.subr.mxu0 0.0
      %318 = vmatpush1.msra.mxu0 0.0
      %319 = vmatprep.subr.mxu0 0.0
      %320 = vmatpush1.msra.mxu0 0.0
      %321 = vmatprep.subr.mxu0 0.0
      %322 = vmatpush1.msra.mxu0 0.0
      %323 = vmatprep.subr.mxu0 0.0
      %324 = vmatpush1.msra.mxu0 0.0
      %325 = vmatprep.subr.mxu0 0.0
      %326 = vmatpush1.msra.mxu0 0.0
      %327 = vmatprep.subr.mxu0 0.0
      %328 = vmatpush1.msra.mxu0 0.0
      %329 = vmatprep.subr.mxu0 0.0
      %330 = vmatpush1.msra.mxu0 0.0
      %331 = vmatprep.subr.mxu0 0.0
      %332 = vmatpush1.msra.mxu0 0.0
      %333 = vmatprep.subr.mxu0 0.0
      %334 = vmatpush1.msra.mxu0 0.0
      %335 = vmatprep.subr.mxu0 0.0
      %336 = vmatpush1.msra.mxu0 0.0
      %337 = vmatprep.subr.mxu0 0.0
      %338 = vmatpush1.msra.mxu0 0.0
      %339 = vmatprep.subr.mxu0 0.0
      %340 = vmatpush1.msra.mxu0 0.0
      %341 = vmatprep.subr.mxu0 0.0
      %342 = vmatpush1.msra.mxu0 0.0
      %343 = vmatprep.subr.mxu0 0.0
      %344 = vmatpush1.msra.mxu0 0.0
      %345 = vmatprep.subr.mxu0 0.0
      %346 = vmatpush1.msra.mxu0 0.0
      %347 = vmatprep.subr.mxu0 0.0
      %348 = vmatpush1.msra.mxu0 0.0
      %349 = vmatprep.subr.mxu0 0.0
      %350 = vmatpush1.msra.mxu0 0.0
      %351 = vmatprep.mubr.f32.mxu0 0.0
      %352 = vmatmul.mubr.f32.gmra.mrb[0].mxu0 %v285
      %v353 = vpop.f32.mrb[0].mxu0
      %v354 = vadd.f32 %v281, %v353
      %v355 = vpop.f32.mrb[0].mxu0
      %v356 = vadd.f32 %v281, %v355
      %357 = vdwg.mxu0
      %358 = vmatprep.subr.mxu0 0.0
      %359 = vmatpush1.msra.mxu0 %v276
      %360 = vmatprep.subr.mxu0 0.0
      %361 = vmatpush1.msra.mxu0 0.0
      %362 = vmatprep.subr.mxu0 0.0
      %363 = vmatpush1.msra.mxu0 0.0
      %364 = vmatprep.subr.mxu0 0.0
      %365 = vmatpush1.msra.mxu0 0.0
      %366 = vmatprep.subr.mxu0 0.0
      %367 = vmatpush1.msra.mxu0 0.0
      %368 = vmatprep.subr.mxu0 0.0
      %369 = vmatpush1.msra.mxu0 0.0
      %370 = vmatprep.subr.mxu0 0.0
      %371 = vmatpush1.msra.mxu0 0.0
      %372 = vmatprep.subr.mxu0 0.0
      %373 = vmatpush1.msra.mxu0 0.0
      %374 = vmatprep.subr.mxu0 0.0
      %375 = vmatpush1.msra.mxu0 0.0
      %376 = vmatprep.subr.mxu0 0.0
      %377 = vmatpush1.msra.mxu0 0.0
      %378 = vmatprep.subr.mxu0 0.0
      %379 = vmatpush1.msra.mxu0 0.0
      %380 = vmatprep.subr.mxu0 0.0
      %381 = vmatpush1.msra.mxu0 0.0
      %382 = vmatprep.subr.mxu0 0.0
      %383 = vmatpush1.msra.mxu0 0.0
      %384 = vmatprep.subr.mxu0 0.0
      %385 = vmatpush1.msra.mxu0 0.0
      %386 = vmatprep.subr.mxu0 0.0
      %387 = vmatpush1.msra.mxu0 0.0
      %388 = vmatprep.subr.mxu0 0.0
      %389 = vmatpush1.msra.mxu0 0.0
      %390 = vmatprep.subr.mxu0 0.0
      %391 = vmatpush1.msra.mxu0 0.0
      %392 = vmatprep.subr.mxu0 0.0
      %393 = vmatpush1.msra.mxu0 0.0
      %394 = vmatprep.subr.mxu0 0.0
      %395 = vmatpush1.msra.mxu0 0.0
      %396 = vmatprep.subr.mxu0 0.0
      %397 = vmatpush1.msra.mxu0 0.0
      %398 = vmatprep.subr.mxu0 0.0
      %399 = vmatpush1.msra.mxu0 0.0
      %400 = vmatprep.subr.mxu0 0.0
      %401 = vmatpush1.msra.mxu0 0.0
      %402 = vmatprep.subr.mxu0 0.0
      %403 = vmatpush1.msra.mxu0 0.0
      %404 = vmatprep.subr.mxu0 0.0
      %405 = vmatpush1.msra.mxu0 0.0
      %406 = vmatprep.subr.mxu0 0.0
      %407 = vmatpush1.msra.mxu0 0.0
      %408 = vmatprep.subr.mxu0 0.0
      %409 = vmatpush1.msra.mxu0 0.0
      %410 = vmatprep.subr.mxu0 0.0
      %411 = vmatpush1.msra.mxu0 0.0
      %412 = vmatprep.subr.mxu0 0.0
      %413 = vmatpush1.msra.mxu0 0.0
      %414 = vmatprep.subr.mxu0 0.0
      %415 = vmatpush1.msra.mxu0 0.0
      %416 = vmatprep.subr.mxu0 0.0
      %417 = vmatpush1.msra.mxu0 0.0
      %418 = vmatprep.subr.mxu0 0.0
      %419 = vmatpush1.msra.mxu0 0.0
      %420 = vmatprep.subr.mxu0 0.0
      %421 = vmatpush1.msra.mxu0 0.0
      %422 = vmatprep.mubr.f32.mxu0 0.0
      %423 = vmatmul.mubr.f32.gmra.mrb[0].mxu0 %v285
      %v424 = vpop.f32.mrb[0].mxu0
      %v425 = vadd.f32 %v281, %v424
      %v426 = vpop.f32.mrb[0].mxu0
      %427 = vdwg.mxu0
      %v428 = vld [vmem:[%s261] sm:$0xff]
      %v429 = vld [vmem:[%s261 + $0x8] sm:$0xff]
      %v430 = vld [vmem:[%s261 + $0x10] sm:$0xff]
      %v431 = vadd.f32 %v354, %v428
      %v432 = vadd.f32 %v356, %v429
      %v433 = vadd.f32 %v425, %v430
      %434 = vst [vmem:[%s271] sm:$0xff] %v431
      %435 = vst [vmem:[%s271 + $0x8] sm:$0xff] %v432
      %vm436 = vcmask 556032
      %437 = vst.msk [vmem:[%s271 + $0x10] sm:$0xff] %vm436, %v433
      %s438 = smul.u32 3, %s19
      %p439 = scmp.lt.s32.totalorder %s20, 1
      %s440 = scalar_select %p439, %s20, 1
      %p441 = scmp.lt.s32.totalorder %s438, 2
      %s442 = scalar_select %p441, %s438, 2
      %s443 = smul.addr %s440, 3
      %s444 = sadd.s32 %s442, %s443
      %s445 = smul.addr %s444, 8
      %s446 = scalar_lea.vmem %s4, %s445
      // Predicated region
      $region37: #{gated_freq_moe_forward.18} parent=35 // pred_check
        %p447 = pneg %p145
      $region38: #{gated_freq_moe_forward.18} parent=35 // pred_check_branch
        %449 = sbr.rel (%p447) target = $region40
      $region39: #{gated_freq_moe_forward.18} parent=35 // pred_region
        %s450 = smul.u32 3, %s19
      $region40: #{gated_freq_moe_forward.18} parent=35 // pred_fallthru
        _
    $region36: #{gated_freq_moe_forward.18} parent=5 // pred_fallthru
      _
    %p451 = scmp.le.s32.totalorder 2, %s10
    // Predicated region
    $region41: #{gated_freq_moe_forward.18} parent=5 // pred_check
      %p452 = pneg %p451
    $region42: #{gated_freq_moe_forward.18} parent=5 // pred_check_branch
      %454 = sbr.rel (%p452) target = $region44
    $region43: #{gated_freq_moe_forward.18} parent=5 // pred_region
      %s455 = ssub.s32 %s10, 2
      // Predicated region
      $region45: #{gated_freq_moe_forward.18} parent=43 // pred_check
        %p456 = pneg %p151
      $region46: #{gated_freq_moe_forward.18} parent=43 // pred_check_branch
        %458 = sbr.rel (%p456) target = $region48
      $region47: #{gated_freq_moe_forward.18} parent=43 // pred_region
        %s459 = smul.u32 3, %s21
        %p460 = scmp.lt.s32.totalorder %s22, 1
        %s461 = scalar_select %p460, %s22, 1
        %p462 = scmp.lt.s32.totalorder %s459, 2
        %s463 = scalar_select %p462, %s459, 2
        %s464 = smul.addr %s461, 3
        %s465 = sadd.s32 %s463, %s464
        %s466 = smul.addr %s465, 8
        %s467 = scalar_lea.vmem %s4, %s466
      $region48: #{gated_freq_moe_forward.18} parent=43 // pred_fallthru
        _
    $region44: #{gated_freq_moe_forward.18} parent=5 // pred_fallthru
      _
  $region6: #{gated_freq_moe_forward.18} parent=0 // loop_footer
    %s14 = sadd.s32 1, %s10
  $region7: #{gated_freq_moe_forward.18} parent=0 // loop_footer_branch
    %9 = sbr.rel target = $region3
  $region8: #{gated_freq_moe_forward.18} parent=0 // loop_exit
    _

// kernel: gated_freq_moe_forward.19
$region0: #{gated_freq_moe_forward.19}
  #allocation0 [shape = 'u32[]', space=smem, size = 0x4, offset = 0x4, fixed_abs, tag = 'smem constant byte address 0x4 - core index']
  #allocation1 [shape = 'u32[144,128]{1,0:T(1,128)}', space=vmem, size = 0x12000, scoped, tag = 'internal scratch']
  %s0 = inlined_call_operand.vmem [shape: f32[2,8,256], index: 0, kind: input, shape index: {}]
  %s1 = inlined_call_operand.vmem [shape: f32[128,8], index: 1, kind: input, shape index: {}]
  %s2 = inlined_call_operand.vmem [shape: f32[128,1], index: 2, kind: input, shape index: {}]
  %s3 = inlined_call_operand.vmem [shape: f32[2,128], index: 3, kind: input, shape index: {}]
  %s4 = inlined_call_operand.vmem [shape: f32[2,1], index: 4, kind: input, shape index: {}]
  %s5 = inlined_call_operand.vmem [shape: f32[2,2,256], index: 5, kind: output, shape index: {}]
  %s6 = sld [smem:[#allocation0]]
  $region53: #{gated_freq_moe_forward.19} parent=0
    _
  %s8 = ssub.s32 1, %s6
  %s9 = scalar_select 0, %s8, %s6
  loop: start=0, step=1, limit=4
  $region2: #{gated_freq_moe_forward.19} parent=0 // loop_pre_header
    _
  $region3: #{gated_freq_moe_forward.19} parent=0 // loop_header
    %s11 = sphi 0, %s15
    %p12 = scmp.ge.s32.totalorder %s11, 4
    %s18 = sphi 0, %s30
    %s19 = sphi 0, %s26
    %s20 = sphi 0, %s18
    %s21 = sphi 0, %s19
    %s22 = sphi 0, %s20
    %s23 = sphi 0, %s21
    %s35 = sphi 0, %s37
    %s38 = sphi 0, %s35
    %s39 = sphi 0, %s38
    %s55 = sphi 0, %s39
    %s59 = sphi 0, %s59
    %s61 = sphi 0, %s59
    %s62 = sphi 0, %s61
    %s76 = sphi 0, %s62
    %s80 = sphi 0, %s80
    %s82 = sphi 0, %s80
    %s83 = sphi 0, %s82
    %s97 = sphi 0, %s83
    %s101 = sphi 0, %s101
    %s103 = sphi 0, %s101
    %s104 = sphi 0, %s103
    %s118 = sphi 0, %s104
    %s122 = sphi 0, %s122
    %s124 = sphi 0, %s122
    %s125 = sphi 0, %s124
    %s139 = sphi 0, %s125
    %s147 = sphi 0, %s149
    %s150 = sphi 0, %s147
    %s151 = sphi 0, %s150
    %s167 = sphi 0, %s151
  $region4: #{gated_freq_moe_forward.19} parent=0 // loop_header_branch
    %14 = sbr.rel (%p12) target = $region8
  $region5: #{gated_freq_moe_forward.19} parent=0 // loop_body
    %s16 = ssub.s32 %s11, 1
    %s17 = ssub.s32 %s11, 2
    %s24 = sadd.s32 1, %s19
    %p25 = scmp.ge.s32.totalorder %s24, 2
    %s26 = scalar_select %p25, 0, %s24
    %s27 = sadd.s32 1, %s18
    %s28 = scalar_select %p25, %s27, %s18
    %p29 = scmp.ge.s32.totalorder %s28, 1
    %s30 = scalar_select %p29, 0, %s28
    %s31 = ssub.s32 %s19, %s26
    %s32 = ssub.s32 %s18, %s30
    %s33 = sor.u32 %s31, %s32
    %p34 = scmp.eq.s32.totalorder %s33, 0
    %s36 = sadd.s32 %s35, 1
    %s37 = scalar_select %p34, %s35, %s36
    %p40 = pneg %p34
    %p41 = scmp.eq.s32.totalorder %s11, 1
    %p42 = por %p40, %p41
    %p43 = scmp.ne.s32.totalorder %s35, %s38
    %p44 = scmp.eq.s32.totalorder %s11, 0
    %p45 = por %p43, %p44
    %p46 = scmp.ne.s32.totalorder %s35, %s38
    %p47 = scmp.eq.s32.totalorder %s16, 1
    %p48 = por %p46, %p47
    %p49 = scmp.ne.s32.totalorder %s38, %s39
    %p50 = scmp.eq.s32.totalorder %s16, 0
    %p51 = por %p49, %p50
    %p52 = scmp.ne.s32.totalorder %s38, %s39
    %p53 = scmp.eq.s32.totalorder %s17, 1
    %p54 = por %p52, %p53
    %p56 = scmp.ne.s32.totalorder %s39, %s55
    %p57 = scmp.eq.s32.totalorder %s17, 0
    %p58 = por %p56, %p57
    %s60 = sadd.s32 %s59, 1
    %p63 = scmp.eq.s32.totalorder %s11, 1
    %p64 = scmp.ne.s32.totalorder %s59, %s61
    %p65 = scmp.eq.s32.totalorder %s11, 0
    %p66 = por %p64, %p65
    %p67 = scmp.ne.s32.totalorder %s59, %s61
    %p68 = scmp.eq.s32.totalorder %s16, 1
    %p69 = por %p67, %p68
    %p70 = scmp.ne.s32.totalorder %s61, %s62
    %p71 = scmp.eq.s32.totalorder %s16, 0
    %p72 = por %p70, %p71
    %p73 = scmp.ne.s32.totalorder %s61, %s62
    %p74 = scmp.eq.s32.totalorder %s17, 1
    %p75 = por %p73, %p74
    %p77 = scmp.ne.s32.totalorder %s62, %s76
    %p78 = scmp.eq.s32.totalorder %s17, 0
    %p79 = por %p77, %p78
    %s81 = sadd.s32 %s80, 1
    %p84 = scmp.eq.s32.totalorder %s11, 1
    %p85 = scmp.ne.s32.totalorder %s80, %s82
    %p86 = scmp.eq.s32.totalorder %s11, 0
    %p87 = por %p85, %p86
    %p88 = scmp.ne.s32.totalorder %s80, %s82
    %p89 = scmp.eq.s32.totalorder %s16, 1
    %p90 = por %p88, %p89
    %p91 = scmp.ne.s32.totalorder %s82, %s83
    %p92 = scmp.eq.s32.totalorder %s16, 0
    %p93 = por %p91, %p92
    %p94 = scmp.ne.s32.totalorder %s82, %s83
    %p95 = scmp.eq.s32.totalorder %s17, 1
    %p96 = por %p94, %p95
    %p98 = scmp.ne.s32.totalorder %s83, %s97
    %p99 = scmp.eq.s32.totalorder %s17, 0
    %p100 = por %p98, %p99
    %s102 = sadd.s32 %s101, 1
    %p105 = scmp.eq.s32.totalorder %s11, 1
    %p106 = scmp.ne.s32.totalorder %s101, %s103
    %p107 = scmp.eq.s32.totalorder %s11, 0
    %p108 = por %p106, %p107
    %p109 = scmp.ne.s32.totalorder %s101, %s103
    %p110 = scmp.eq.s32.totalorder %s16, 1
    %p111 = por %p109, %p110
    %p112 = scmp.ne.s32.totalorder %s103, %s104
    %p113 = scmp.eq.s32.totalorder %s16, 0
    %p114 = por %p112, %p113
    %p115 = scmp.ne.s32.totalorder %s103, %s104
    %p116 = scmp.eq.s32.totalorder %s17, 1
    %p117 = por %p115, %p116
    %p119 = scmp.ne.s32.totalorder %s104, %s118
    %p120 = scmp.eq.s32.totalorder %s17, 0
    %p121 = por %p119, %p120
    %s123 = sadd.s32 %s122, 1
    %p126 = scmp.eq.s32.totalorder %s11, 1
    %p127 = scmp.ne.s32.totalorder %s122, %s124
    %p128 = scmp.eq.s32.totalorder %s11, 0
    %p129 = por %p127, %p128
    %p130 = scmp.ne.s32.totalorder %s122, %s124
    %p131 = scmp.eq.s32.totalorder %s16, 1
    %p132 = por %p130, %p131
    %p133 = scmp.ne.s32.totalorder %s124, %s125
    %p134 = scmp.eq.s32.totalorder %s16, 0
    %p135 = por %p133, %p134
    %p136 = scmp.ne.s32.totalorder %s124, %s125
    %p137 = scmp.eq.s32.totalorder %s17, 1
    %p138 = por %p136, %p137
    %p140 = scmp.ne.s32.totalorder %s125, %s139
    %p141 = scmp.eq.s32.totalorder %s17, 0
    %p142 = por %p140, %p141
    %s143 = ssub.s32 %s19, %s26
    %s144 = ssub.s32 %s18, %s30
    %s145 = sor.u32 %s143, %s144
    %p146 = scmp.eq.s32.totalorder %s145, 0
    %s148 = sadd.s32 %s147, 1
    %s149 = scalar_select %p146, %s147, %s148
    %p152 = pneg %p146
    %p153 = scmp.eq.s32.totalorder %s11, 1
    %p154 = por %p152, %p153
    %p155 = scmp.ne.s32.totalorder %s147, %s150
    %p156 = scmp.eq.s32.totalorder %s11, 0
    %p157 = por %p155, %p156
    %p158 = scmp.ne.s32.totalorder %s147, %s150
    %p159 = scmp.eq.s32.totalorder %s16, 1
    %p160 = por %p158, %p159
    %p161 = scmp.ne.s32.totalorder %s150, %s151
    %p162 = scmp.eq.s32.totalorder %s16, 0
    %p163 = por %p161, %p162
    %p164 = scmp.ne.s32.totalorder %s150, %s151
    %p165 = scmp.eq.s32.totalorder %s17, 1
    %p166 = por %p164, %p165
    %p168 = scmp.ne.s32.totalorder %s151, %s167
    %p169 = scmp.eq.s32.totalorder %s17, 0
    %p170 = por %p168, %p169
    %p171 = scmp.le.s32.totalorder 1, %s11
    %p172 = scmp.lt.s32.totalorder %s11, 3
    %p173 = pnand %p171, %p172
    %p174 = pneg %p173
    // Predicated region
    $region9: #{gated_freq_moe_forward.19} parent=5 // pred_check
      _
    $region10: #{gated_freq_moe_forward.19} parent=5 // pred_check_branch
      %176 = sbr.rel (%p173) target = $region12
    $region11: #{gated_freq_moe_forward.19} parent=5 // pred_region
      %s177 = ssub.s32 %s11, 1
      // Predicated region
      $region13: #{gated_freq_moe_forward.19} parent=11 // pred_check
        %p178 = pneg %p72
      $region14: #{gated_freq_moe_forward.19} parent=11 // pred_check_branch
        %180 = sbr.rel (%p178) target = $region16
      $region15: #{gated_freq_moe_forward.19} parent=11 // pred_region
        _
      $region16: #{gated_freq_moe_forward.19} parent=11 // pred_fallthru
        _
      // Predicated region
      $region17: #{gated_freq_moe_forward.19} parent=11 // pred_check
        %p181 = pneg %p93
      $region18: #{gated_freq_moe_forward.19} parent=11 // pred_check_branch
        %183 = sbr.rel (%p181) target = $region20
      $region19: #{gated_freq_moe_forward.19} parent=11 // pred_region
        _
      $region20: #{gated_freq_moe_forward.19} parent=11 // pred_fallthru
        _
      // Predicated region
      $region21: #{gated_freq_moe_forward.19} parent=11 // pred_check
        %p184 = pneg %p114
      $region22: #{gated_freq_moe_forward.19} parent=11 // pred_check_branch
        %186 = sbr.rel (%p184) target = $region24
      $region23: #{gated_freq_moe_forward.19} parent=11 // pred_region
        _
      $region24: #{gated_freq_moe_forward.19} parent=11 // pred_fallthru
        _
      // Predicated region
      $region25: #{gated_freq_moe_forward.19} parent=11 // pred_check
        %p187 = pneg %p135
      $region26: #{gated_freq_moe_forward.19} parent=11 // pred_check_branch
        %189 = sbr.rel (%p187) target = $region28
      $region27: #{gated_freq_moe_forward.19} parent=11 // pred_region
        _
      $region28: #{gated_freq_moe_forward.19} parent=11 // pred_fallthru
        _
    $region12: #{gated_freq_moe_forward.19} parent=5 // pred_fallthru
      _
    %p190 = scmp.lt.s32.totalorder %s11, 2
    // Predicated region
    $region29: #{gated_freq_moe_forward.19} parent=5 // pred_check
      %p191 = pneg %p190
    $region30: #{gated_freq_moe_forward.19} parent=5 // pred_check_branch
      %193 = sbr.rel (%p191) target = $region32
    $region31: #{gated_freq_moe_forward.19} parent=5 // pred_region
      // Predicated region
      $region33: #{gated_freq_moe_forward.19} parent=31 // pred_check
        %p194 = pneg %p45
      $region34: #{gated_freq_moe_forward.19} parent=31 // pred_check_branch
        %196 = sbr.rel (%p194) target = $region36
      $region35: #{gated_freq_moe_forward.19} parent=31 // pred_region
        %s197 = smul.u32 2, %s18
        %p198 = scmp.lt.s32.totalorder %s19, 1
        %s199 = scalar_select %p198, %s19, 1
        %p200 = scmp.lt.s32.totalorder %s197, 1
        %s201 = scalar_select %p200, %s197, 1
        %s202 = smul.addr %s199, 2
        %s203 = sadd.s32 %s201, %s202
        %s204 = smul.addr %s203, 8
        %s205 = scalar_lea.vmem %s0, %s204
        %s206 = smul.u32 2, %s18
      $region36: #{gated_freq_moe_forward.19} parent=31 // pred_fallthru
        _
    $region32: #{gated_freq_moe_forward.19} parent=5 // pred_fallthru
      _
    %p207 = scmp.le.s32.totalorder 1, %s11
    %p208 = scmp.lt.s32.totalorder %s11, 3
    %p209 = pnand %p207, %p208
    %p210 = pneg %p209
    // Predicated region
    $region37: #{gated_freq_moe_forward.19} parent=5 // pred_check
      _
    $region38: #{gated_freq_moe_forward.19} parent=5 // pred_check_branch
      %212 = sbr.rel (%p209) target = $region40
    $region39: #{gated_freq_moe_forward.19} parent=5 // pred_region
      %s213 = ssub.s32 %s11, 1
      %s214 = smul.u32 2, %s20
      %p215 = scmp.lt.s32.totalorder %s21, 1
      %s216 = scalar_select %p215, %s21, 1
      %p217 = scmp.lt.s32.totalorder %s214, 1
      %s218 = scalar_select %p217, %s214, 1
      %s219 = smul.addr %s216, 2
      %s220 = sadd.s32 %s218, %s219
      %s221 = smul.addr %s220, 8
      %s222 = scalar_lea.vmem %s0, %s221
      %p223 = pneg %p51
      %p224 = pneg %p48
      %p225 = pneg %p72
      %p226 = pneg %p69
      %p227 = pneg %p93
      %p228 = pneg %p90
      %p229 = pneg %p114
      %p230 = pneg %p111
      %p231 = pneg %p135
      %p232 = pneg %p132
      %p233 = pneg %p163
      %p234 = pneg %p160
      %s235 = smul.u32 2, %s20
      %p236 = scmp.lt.s32.totalorder %s21, 1
      %s237 = scalar_select %p236, %s21, 1
      %p238 = scmp.lt.s32.totalorder %s235, 1
      %s239 = scalar_select %p238, %s235, 1
      %s240 = smul.addr %s237, 2
      %s241 = sadd.s32 %s239, %s240
      %s242 = smul.addr %s241, 2
      %s243 = scalar_lea.vmem %s5, %s242
      %s244 = smul.u32 2, %s20
      %p245 = scmp.lt.s32.totalorder %s21, 1
      %s246 = scalar_select %p245, %s21, 1
      %p247 = scmp.lt.s32.totalorder %s244, 1
      %s248 = scalar_select %p247, %s244, 1
      %s249 = smul.addr %s246, 2
      %s250 = sadd.s32 %s248, %s249
      %s251 = smul.addr %s250, 8
      %s252 = scalar_lea.vmem %s0, %s251
      %s253 = smul.u32 2, %s20
      %s254 = smul.u32 2, %s20
      %p255 = scmp.lt.s32.totalorder %s21, 1
      %s256 = scalar_select %p255, %s21, 1
      %p257 = scmp.lt.s32.totalorder %s254, 1
      %s258 = scalar_select %p257, %s254, 1
      %s259 = smul.addr %s256, 2
      %s260 = sadd.s32 %s258, %s259
      %s261 = smul.addr %s260, 2
      %s262 = scalar_lea.vmem %s5, %s261
      %s263 = smul.u32 2, %s20
      %v264 = vld [vmem:[%s1] sm:$0xff]
      %v265 = vld [vmem:[%s1 + $0x8] sm:$0xff]
      %v266 = vld [vmem:[%s1 + $0x10] sm:$0xff]
      %v267 = vld [vmem:[%s1 + $0x18] sm:$0xff]
      %v268 = vld [vmem:[%s1 + $0x20] sm:$0xff]
      %v269 = vld [vmem:[%s1 + $0x28] sm:$0xff]
      %v270 = vld [vmem:[%s1 + $0x30] sm:$0xff]
      %v271 = vld [vmem:[%s1 + $0x38] sm:$0xff]
      %v272 = vld [vmem:[%s1 + $0x40] sm:$0xff]
      %v273 = vld [vmem:[%s1 + $0x48] sm:$0xff]
      %v274 = vld [vmem:[%s1 + $0x50] sm:$0xff]
      %v275 = vld [vmem:[%s1 + $0x58] sm:$0xff]
      %v276 = vld [vmem:[%s1 + $0x60] sm:$0xff]
      %v277 = vld [vmem:[%s1 + $0x68] sm:$0xff]
      %v278 = vld [vmem:[%s1 + $0x70] sm:$0xff]
      %v279 = vld [vmem:[%s1 + $0x78] sm:$0xff]
      %v280 = vld [vmem:[%s252] sm:$0xff]
      %v281 = vld [vmem:[%s252 + $0x8] sm:$0xff]
      %v282 = vld [vmem:[%s2] sm:$0xff]
      %v283 = vld [vmem:[%s2 + $0x8] sm:$0xff]
      %v284 = vld [vmem:[%s2 + $0x10] sm:$0xff]
      %v285 = vld [vmem:[%s2 + $0x18] sm:$0xff]
      %v286 = vld [vmem:[%s2 + $0x20] sm:$0xff]
      %v287 = vld [vmem:[%s2 + $0x28] sm:$0xff]
      %v288 = vld [vmem:[%s2 + $0x30] sm:$0xff]
      %v289 = vld [vmem:[%s2 + $0x38] sm:$0xff]
      %v290 = vld [vmem:[%s2 + $0x40] sm:$0xff]
      %v291 = vld [vmem:[%s2 + $0x48] sm:$0xff]
      %v292 = vld [vmem:[%s2 + $0x50] sm:$0xff]
      %v293 = vld [vmem:[%s2 + $0x58] sm:$0xff]
      %v294 = vld [vmem:[%s2 + $0x60] sm:$0xff]
      %v295 = vld [vmem:[%s2 + $0x68] sm:$0xff]
      %v296 = vld [vmem:[%s2 + $0x70] sm:$0xff]
      %v297 = vld [vmem:[%s2 + $0x78] sm:$0xff]
      %299 = vset.pattern.permute.xlu0 0
      %300 = vperm.xlu0 %299, %v282
      %v301 = vpop.permute.xlu0 %300
      %304 = vset.pattern.permute.xlu0 0
      %305 = vperm.xlu0 %304, %v283
      %v306 = vpop.permute.xlu0 %305
      %309 = vset.pattern.permute.xlu0 0
      %310 = vperm.xlu0 %309, %v284
      %v311 = vpop.permute.xlu0 %310
      %314 = vset.pattern.permute.xlu0 0
      %315 = vperm.xlu0 %314, %v285
      %v316 = vpop.permute.xlu0 %315
      %319 = vset.pattern.permute.xlu0 0
      %320 = vperm.xlu0 %319, %v286
      %v321 = vpop.permute.xlu0 %320
      %324 = vset.pattern.permute.xlu0 0
      %325 = vperm.xlu0 %324, %v287
      %v326 = vpop.permute.xlu0 %325
      %329 = vset.pattern.permute.xlu0 0
      %330 = vperm.xlu0 %329, %v288
      %v331 = vpop.permute.xlu0 %330
      %334 = vset.pattern.permute.xlu0 0
      %335 = vperm.xlu0 %334, %v289
      %v336 = vpop.permute.xlu0 %335
      %339 = vset.pattern.permute.xlu0 0
      %340 = vperm.xlu0 %339, %v290
      %v341 = vpop.permute.xlu0 %340
      %344 = vset.pattern.permute.xlu0 0
      %345 = vperm.xlu0 %344, %v291
      %v346 = vpop.permute.xlu0 %345
      %349 = vset.pattern.permute.xlu0 0
      %350 = vperm.xlu0 %349, %v292
      %v351 = vpop.permute.xlu0 %350
      %354 = vset.pattern.permute.xlu0 0
      %355 = vperm.xlu0 %354, %v293
      %v356 = vpop.permute.xlu0 %355
      %359 = vset.pattern.permute.xlu0 0
      %360 = vperm.xlu0 %359, %v294
      %v361 = vpop.permute.xlu0 %360
      %364 = vset.pattern.permute.xlu0 0
      %365 = vperm.xlu0 %364, %v295
      %v366 = vpop.permute.xlu0 %365
      %369 = vset.pattern.permute.xlu0 0
      %370 = vperm.xlu0 %369, %v296
      %v371 = vpop.permute.xlu0 %370
      %374 = vset.pattern.permute.xlu0 0
      %375 = vperm.xlu0 %374, %v297
      %v376 = vpop.permute.xlu0 %375
      %vm378 = vcmask 64512
      %v380 = vsel %vm378, %v264, 0
      %v383 = vsel %vm378, %v265, 0
      %v386 = vsel %vm378, %v266, 0
      %v389 = vsel %vm378, %v267, 0
      %v392 = vsel %vm378, %v268, 0
      %v395 = vsel %vm378, %v269, 0
      %v398 = vsel %vm378, %v270, 0
      %v401 = vsel %vm378, %v271, 0
      %v404 = vsel %vm378, %v272, 0
      %v407 = vsel %vm378, %v273, 0
      %v410 = vsel %vm378, %v274, 0
      %v413 = vsel %vm378, %v275, 0
      %v416 = vsel %vm378, %v276, 0
      %v419 = vsel %vm378, %v277, 0
      %v422 = vsel %vm378, %v278, 0
      %v425 = vsel %vm378, %v279, 0
      %427 = vmatprep.subr.mxu0 %v281
      %428 = vmatpush1.msra.mxu0 %v280
      %429 = vmatprep.subr.mxu0 0.0
      %430 = vmatpush1.msra.mxu0 0.0
      %431 = vmatprep.subr.mxu0 0.0
      %432 = vmatpush1.msra.mxu0 0.0
      %433 = vmatprep.subr.mxu0 0.0
      %434 = vmatpush1.msra.mxu0 0.0
      %435 = vmatprep.subr.mxu0 0.0
      %436 = vmatpush1.msra.mxu0 0.0
      %437 = vmatprep.subr.mxu0 0.0
      %438 = vmatpush1.msra.mxu0 0.0
      %439 = vmatprep.subr.mxu0 0.0
      %440 = vmatpush1.msra.mxu0 0.0
      %441 = vmatprep.subr.mxu0 0.0
      %442 = vmatpush1.msra.mxu0 0.0
      %443 = vmatprep.subr.mxu0 0.0
      %444 = vmatpush1.msra.mxu0 0.0
      %445 = vmatprep.subr.mxu0 0.0
      %446 = vmatpush1.msra.mxu0 0.0
      %447 = vmatprep.subr.mxu0 0.0
      %448 = vmatpush1.msra.mxu0 0.0
      %449 = vmatprep.subr.mxu0 0.0
      %450 = vmatpush1.msra.mxu0 0.0
      %451 = vmatprep.subr.mxu0 0.0
      %452 = vmatpush1.msra.mxu0 0.0
      %453 = vmatprep.subr.mxu0 0.0
      %454 = vmatpush1.msra.mxu0 0.0
      %455 = vmatprep.subr.mxu0 0.0
      %456 = vmatpush1.msra.mxu0 0.0
      %457 = vmatprep.subr.mxu0 0.0
      %458 = vmatpush1.msra.mxu0 0.0
      %459 = vmatprep.subr.mxu0 0.0
      %460 = vmatpush1.msra.mxu0 0.0
      %461 = vmatprep.subr.mxu0 0.0
      %462 = vmatpush1.msra.mxu0 0.0
      %463 = vmatprep.subr.mxu0 0.0
      %464 = vmatpush1.msra.mxu0 0.0
      %465 = vmatprep.subr.mxu0 0.0
      %466 = vmatpush1.msra.mxu0 0.0
      %467 = vmatprep.subr.mxu0 0.0
      %468 = vmatpush1.msra.mxu0 0.0
      %469 = vmatprep.subr.mxu0 0.0
      %470 = vmatpush1.msra.mxu0 0.0
      %471 = vmatprep.subr.mxu0 0.0
      %472 = vmatpush1.msra.mxu0 0.0
      %473 = vmatprep.subr.mxu0 0.0
      %474 = vmatpush1.msra.mxu0 0.0
      %475 = vmatprep.subr.mxu0 0.0
      %476 = vmatpush1.msra.mxu0 0.0
      %477 = vmatprep.subr.mxu0 0.0
      %478 = vmatpush1.msra.mxu0 0.0
      %479 = vmatprep.subr.mxu0 0.0
      %480 = vmatpush1.msra.mxu0 0.0
      %481 = vmatprep.subr.mxu0 0.0
      %482 = vmatpush1.msra.mxu0 0.0
      %483 = vmatprep.subr.mxu0 0.0
      %484 = vmatpush1.msra.mxu0 0.0
      %485 = vmatprep.subr.mxu0 0.0
      %486 = vmatpush1.msra.mxu0 0.0
      %487 = vmatprep.subr.mxu0 0.0
      %488 = vmatpush1.msra.mxu0 0.0
      %489 = vmatprep.subr.mxu0 0.0
      %490 = vmatpush1.msra.mxu0 0.0
      %491 = vmatprep.mubr.f32.mxu0 0.0
      %492 = vmatmul.mubr.f32.gmra.mrb[0].mxu0 %v380
      %v493 = vpop.f32.mrb[0].mxu0
      %v494 = vadd.f32 %v301, %v493
      %v495 = vpop.f32.mrb[0].mxu0
      %v496 = vadd.f32 %v301, %v495
      %497 = vmatprep.mubr.f32.mxu0 0.0
      %498 = vmatmul.mubr.f32.gmra.mrb[0].mxu0 %v383
      %v499 = vpop.f32.mrb[0].mxu0
      %v500 = vadd.f32 %v306, %v499
      %v501 = vpop.f32.mrb[0].mxu0
      %v502 = vadd.f32 %v306, %v501
      %503 = vmatprep.mubr.f32.mxu0 0.0
      %504 = vmatmul.mubr.f32.gmra.mrb[0].mxu0 %v386
      %v505 = vpop.f32.mrb[0].mxu0
      %v506 = vadd.f32 %v311, %v505
      %v507 = vpop.f32.mrb[0].mxu0
      %v508 = vadd.f32 %v311, %v507
      %509 = vmatprep.mubr.f32.mxu0 0.0
      %510 = vmatmul.mubr.f32.gmra.mrb[0].mxu0 %v389
      %v511 = vpop.f32.mrb[0].mxu0
      %v512 = vadd.f32 %v316, %v511
      %v513 = vpop.f32.mrb[0].mxu0
      %v514 = vadd.f32 %v316, %v513
      %515 = vmatprep.mubr.f32.mxu0 0.0
      %516 = vmatmul.mubr.f32.gmra.mrb[0].mxu0 %v392
      %v517 = vpop.f32.mrb[0].mxu0
      %v518 = vadd.f32 %v321, %v517
      %v519 = vpop.f32.mrb[0].mxu0
      %v520 = vadd.f32 %v321, %v519
      %521 = vmatprep.mubr.f32.mxu0 0.0
      %522 = vmatmul.mubr.f32.gmra.mrb[0].mxu0 %v395
      %v523 = vpop.f32.mrb[0].mxu0
      %v524 = vadd.f32 %v326, %v523
      %v525 = vpop.f32.mrb[0].mxu0
      %v526 = vadd.f32 %v326, %v525
      %527 = vmatprep.mubr.f32.mxu0 0.0
      %528 = vmatmul.mubr.f32.gmra.mrb[0].mxu0 %v398
      %v529 = vpop.f32.mrb[0].mxu0
      %v530 = vadd.f32 %v331, %v529
      %v531 = vpop.f32.mrb[0].mxu0
      %v532 = vadd.f32 %v331, %v531
      %533 = vmatprep.mubr.f32.mxu0 0.0
      %534 = vmatmul.mubr.f32.gmra.mrb[0].mxu0 %v401
      %v535 = vpop.f32.mrb[0].mxu0
      %v536 = vadd.f32 %v336, %v535
      %v537 = vpop.f32.mrb[0].mxu0
      %v538 = vadd.f32 %v336, %v537
      %539 = vmatprep.mubr.f32.mxu0 0.0
      %540 = vmatmul.mubr.f32.gmra.mrb[0].mxu0 %v404
      %v541 = vpop.f32.mrb[0].mxu0
      %v542 = vadd.f32 %v341, %v541
      %v543 = vpop.f32.mrb[0].mxu0
      %v544 = vadd.f32 %v341, %v543
      %545 = vmatprep.mubr.f32.mxu0 0.0
      %546 = vmatmul.mubr.f32.gmra.mrb[0].mxu0 %v407
      %v547 = vpop.f32.mrb[0].mxu0
      %v548 = vadd.f32 %v346, %v547
      %v549 = vpop.f32.mrb[0].mxu0
      %v550 = vadd.f32 %v346, %v549
      %551 = vmatprep.mubr.f32.mxu0 0.0
      %552 = vmatmul.mubr.f32.gmra.mrb[0].mxu0 %v410
      %v553 = vpop.f32.mrb[0].mxu0
      %v554 = vadd.f32 %v351, %v553
      %v555 = vpop.f32.mrb[0].mxu0
      %v556 = vadd.f32 %v351, %v555
      %557 = vmatprep.mubr.f32.mxu0 0.0
      %558 = vmatmul.mubr.f32.gmra.mrb[0].mxu0 %v413
      %v559 = vpop.f32.mrb[0].mxu0
      %v560 = vadd.f32 %v356, %v559
      %v561 = vpop.f32.mrb[0].mxu0
      %v562 = vadd.f32 %v356, %v561
      %563 = vmatprep.mubr.f32.mxu0 0.0
      %564 = vmatmul.mubr.f32.gmra.mrb[0].mxu0 %v416
      %v565 = vpop.f32.mrb[0].mxu0
      %v566 = vadd.f32 %v361, %v565
      %v567 = vpop.f32.mrb[0].mxu0
      %v568 = vadd.f32 %v361, %v567
      %569 = vmatprep.mubr.f32.mxu0 0.0
      %570 = vmatmul.mubr.f32.gmra.mrb[0].mxu0 %v419
      %v571 = vpop.f32.mrb[0].mxu0
      %v572 = vadd.f32 %v366, %v571
      %v573 = vpop.f32.mrb[0].mxu0
      %v574 = vadd.f32 %v366, %v573
      %575 = vmatprep.mubr.f32.mxu0 0.0
      %576 = vmatmul.mubr.f32.gmra.mrb[0].mxu0 %v422
      %v577 = vpop.f32.mrb[0].mxu0
      %v578 = vadd.f32 %v371, %v577
      %v579 = vpop.f32.mrb[0].mxu0
      %v580 = vadd.f32 %v371, %v579
      %581 = vmatprep.mubr.f32.mxu0 0.0
      %582 = vmatmul.mubr.f32.gmra.mrb[0].mxu0 %v425
      %v583 = vpop.f32.mrb[0].mxu0
      %v584 = vadd.f32 %v376, %v583
      %v585 = vpop.f32.mrb[0].mxu0
      %v586 = vadd.f32 %v376, %v585
      %587 = vdwg.mxu0
      %v588 = vmul.f32 %v494, 0.5
      %v589 = vmul.f32 %v496, 0.5
      %v590 = vmul.f32 %v500, 0.5
      %v591 = vmul.f32 %v502, 0.5
      %v592 = vmul.f32 %v506, 0.5
      %v593 = vmul.f32 %v508, 0.5
      %v594 = vmul.f32 %v512, 0.5
      %v595 = vmul.f32 %v514, 0.5
      %v596 = vmul.f32 %v518, 0.5
      %v597 = vmul.f32 %v520, 0.5
      %v598 = vmul.f32 %v524, 0.5
      %v599 = vmul.f32 %v526, 0.5
      %v600 = vmul.f32 %v530, 0.5
      %v601 = vmul.f32 %v532, 0.5
      %v602 = vmul.f32 %v536, 0.5
      %v603 = vmul.f32 %v538, 0.5
      %v604 = vmul.f32 %v542, 0.5
      %v605 = vmul.f32 %v544, 0.5
      %v606 = vmul.f32 %v548, 0.5
      %v607 = vmul.f32 %v550, 0.5
      %v608 = vmul.f32 %v554, 0.5
      %v609 = vmul.f32 %v556, 0.5
      %v610 = vmul.f32 %v560, 0.5
      %v611 = vmul.f32 %v562, 0.5
      %v612 = vmul.f32 %v566, 0.5
      %v613 = vmul.f32 %v568, 0.5
      %v614 = vmul.f32 %v572, 0.5
      %v615 = vmul.f32 %v574, 0.5
      %v616 = vmul.f32 %v578, 0.5
      %v617 = vmul.f32 %v580, 0.5
      %v618 = vmul.f32 %v584, 0.5
      %v619 = vmul.f32 %v586, 0.5
      %v620 = vmul.f32 %v494, 0.70710677
      %v621 = vmul.f32 %v496, 0.70710677
      %v622 = vmul.f32 %v500, 0.70710677
      %v623 = vmul.f32 %v502, 0.70710677
      %v624 = vmul.f32 %v506, 0.70710677
      %v625 = vmul.f32 %v508, 0.70710677
      %v626 = vmul.f32 %v512, 0.70710677
      %v627 = vmul.f32 %v514, 0.70710677
      %v628 = vmul.f32 %v518, 0.70710677
      %v629 = vmul.f32 %v520, 0.70710677
      %v630 = vmul.f32 %v524, 0.70710677
      %v631 = vmul.f32 %v526, 0.70710677
      %v632 = vmul.f32 %v530, 0.70710677
      %v633 = vmul.f32 %v532, 0.70710677
      %v634 = vmul.f32 %v536, 0.70710677
      %v635 = vmul.f32 %v538, 0.70710677
      %v636 = vmul.f32 %v542, 0.70710677
      %v637 = vmul.f32 %v544, 0.70710677
      %v638 = vmul.f32 %v548, 0.70710677
      %v639 = vmul.f32 %v550, 0.70710677
      %v640 = vmul.f32 %v554, 0.70710677
      %v641 = vmul.f32 %v556, 0.70710677
      %v642 = vmul.f32 %v560, 0.70710677
      %v643 = vmul.f32 %v562, 0.70710677
      %v644 = vmul.f32 %v566, 0.70710677
      %v645 = vmul.f32 %v568, 0.70710677
      %v646 = vmul.f32 %v572, 0.70710677
      %v647 = vmul.f32 %v574, 0.70710677
      %v648 = vmul.f32 %v578, 0.70710677
      %v649 = vmul.f32 %v580, 0.70710677
      %v650 = vmul.f32 %v584, 0.70710677
      %v651 = vmul.f32 %v586, 0.70710677
      %v652 = verf.f32.pop %v620
      %v653 = verf.f32.pop %v621
      %v654 = verf.f32.pop %v622
      %v655 = verf.f32.pop %v623
      %v656 = verf.f32.pop %v624
      %v657 = verf.f32.pop %v625
      %v658 = verf.f32.pop %v626
      %v659 = verf.f32.pop %v627
      %v660 = verf.f32.pop %v628
      %v661 = verf.f32.pop %v629
      %v662 = verf.f32.pop %v630
      %v663 = verf.f32.pop %v631
      %v664 = verf.f32.pop %v632
      %v665 = verf.f32.pop %v633
      %v666 = verf.f32.pop %v634
      %v667 = verf.f32.pop %v635
      %v668 = verf.f32.pop %v636
      %v669 = verf.f32.pop %v637
      %v670 = verf.f32.pop %v638
      %v671 = verf.f32.pop %v639
      %v672 = verf.f32.pop %v640
      %v673 = verf.f32.pop %v641
      %v674 = verf.f32.pop %v642
      %v675 = verf.f32.pop %v643
      %v676 = verf.f32.pop %v644
      %v677 = verf.f32.pop %v645
      %v678 = verf.f32.pop %v646
      %v679 = verf.f32.pop %v647
      %v680 = verf.f32.pop %v648
      %v681 = verf.f32.pop %v649
      %v682 = verf.f32.pop %v650
      %v683 = verf.f32.pop %v651
      %v684 = vadd.f32 %v652, 1.0
      %v685 = vadd.f32 %v653, 1.0
      %v686 = vadd.f32 %v654, 1.0
      %v687 = vadd.f32 %v655, 1.0
      %v688 = vadd.f32 %v656, 1.0
      %v689 = vadd.f32 %v657, 1.0
      %v690 = vadd.f32 %v658, 1.0
      %v691 = vadd.f32 %v659, 1.0
      %v692 = vadd.f32 %v660, 1.0
      %v693 = vadd.f32 %v661, 1.0
      %v694 = vadd.f32 %v662, 1.0
      %v695 = vadd.f32 %v663, 1.0
      %v696 = vadd.f32 %v664, 1.0
      %v697 = vadd.f32 %v665, 1.0
      %v698 = vadd.f32 %v666, 1.0
      %v699 = vadd.f32 %v667, 1.0
      %v700 = vadd.f32 %v668, 1.0
      %v701 = vadd.f32 %v669, 1.0
      %v702 = vadd.f32 %v670, 1.0
      %v703 = vadd.f32 %v671, 1.0
      %v704 = vadd.f32 %v672, 1.0
      %v705 = vadd.f32 %v673, 1.0
      %v706 = vadd.f32 %v674, 1.0
      %v707 = vadd.f32 %v675, 1.0
      %v708 = vadd.f32 %v676, 1.0
      %v709 = vadd.f32 %v677, 1.0
      %v710 = vadd.f32 %v678, 1.0
      %v711 = vadd.f32 %v679, 1.0
      %v712 = vadd.f32 %v680, 1.0
      %v713 = vadd.f32 %v681, 1.0
      %v714 = vadd.f32 %v682, 1.0
      %v715 = vadd.f32 %v683, 1.0
      %v716 = vmul.f32 %v588, %v684
      %v717 = vmul.f32 %v589, %v685
      %v718 = vmul.f32 %v590, %v686
      %v719 = vmul.f32 %v591, %v687
      %v720 = vmul.f32 %v592, %v688
      %v721 = vmul.f32 %v593, %v689
      %v722 = vmul.f32 %v594, %v690
      %v723 = vmul.f32 %v595, %v691
      %v724 = vmul.f32 %v596, %v692
      %v725 = vmul.f32 %v597, %v693
      %v726 = vmul.f32 %v598, %v694
      %v727 = vmul.f32 %v599, %v695
      %v728 = vmul.f32 %v600, %v696
      %v729 = vmul.f32 %v601, %v697
      %v730 = vmul.f32 %v602, %v698
      %v731 = vmul.f32 %v603, %v699
      %v732 = vmul.f32 %v604, %v700
      %v733 = vmul.f32 %v605, %v701
      %v734 = vmul.f32 %v606, %v702
      %v735 = vmul.f32 %v607, %v703
      %v736 = vmul.f32 %v608, %v704
      %v737 = vmul.f32 %v609, %v705
      %v738 = vmul.f32 %v610, %v706
      %v739 = vmul.f32 %v611, %v707
      %v740 = vmul.f32 %v612, %v708
      %v741 = vmul.f32 %v613, %v709
      %v742 = vmul.f32 %v614, %v710
      %v743 = vmul.f32 %v615, %v711
      %v744 = vmul.f32 %v616, %v712
      %v745 = vmul.f32 %v617, %v713
      %v746 = vmul.f32 %v618, %v714
      %v747 = vmul.f32 %v619, %v715
      %v748 = vld [vmem:[%s3] sm:$0x3]
      %v749 = vld [vmem:[%s4] sm:$0x3]
      %751 = vset.pattern.permute.xlu0 0
      %752 = vperm.xlu0 %751, %v749
      %v753 = vpop.permute.xlu0 %752
      %755 = vmatprep.subr.mxu0 %v717
      %756 = vmatpush1.msra.mxu0 %v716
      %757 = vmatprep.subr.mxu0 %v719
      %758 = vmatpush1.msra.mxu0 %v718
      %759 = vmatprep.subr.mxu0 %v721
      %760 = vmatpush1.msra.mxu0 %v720
      %761 = vmatprep.subr.mxu0 %v723
      %762 = vmatpush1.msra.mxu0 %v722
      %763 = vmatprep.subr.mxu0 %v725
      %764 = vmatpush1.msra.mxu0 %v724
      %765 = vmatprep.subr.mxu0 %v727
      %766 = vmatpush1.msra.mxu0 %v726
      %767 = vmatprep.subr.mxu0 %v729
      %768 = vmatpush1.msra.mxu0 %v728
      %769 = vmatprep.subr.mxu0 %v731
      %770 = vmatpush1.msra.mxu0 %v730
      %771 = vmatprep.subr.mxu0 %v733
      %772 = vmatpush1.msra.mxu0 %v732
      %773 = vmatprep.subr.mxu0 %v735
      %774 = vmatpush1.msra.mxu0 %v734
      %775 = vmatprep.subr.mxu0 %v737
      %776 = vmatpush1.msra.mxu0 %v736
      %777 = vmatprep.subr.mxu0 %v739
      %778 = vmatpush1.msra.mxu0 %v738
      %779 = vmatprep.subr.mxu0 %v741
      %780 = vmatpush1.msra.mxu0 %v740
      %781 = vmatprep.subr.mxu0 %v743
      %782 = vmatpush1.msra.mxu0 %v742
      %783 = vmatprep.subr.mxu0 %v745
      %784 = vmatpush1.msra.mxu0 %v744
      %785 = vmatprep.subr.mxu0 %v747
      %786 = vmatpush1.msra.mxu0 %v746
      %787 = vmatprep.subr.mxu0 0.0
      %788 = vmatpush1.msra.mxu0 0.0
      %789 = vmatprep.subr.mxu0 0.0
      %790 = vmatpush1.msra.mxu0 0.0
      %791 = vmatprep.subr.mxu0 0.0
      %792 = vmatpush1.msra.mxu0 0.0
      %793 = vmatprep.subr.mxu0 0.0
      %794 = vmatpush1.msra.mxu0 0.0
      %795 = vmatprep.subr.mxu0 0.0
      %796 = vmatpush1.msra.mxu0 0.0
      %797 = vmatprep.subr.mxu0 0.0
      %798 = vmatpush1.msra.mxu0 0.0
      %799 = vmatprep.subr.mxu0 0.0
      %800 = vmatpush1.msra.mxu0 0.0
      %801 = vmatprep.subr.mxu0 0.0
      %802 = vmatpush1.msra.mxu0 0.0
      %803 = vmatprep.subr.mxu0 0.0
      %804 = vmatpush1.msra.mxu0 0.0
      %805 = vmatprep.subr.mxu0 0.0
      %806 = vmatpush1.msra.mxu0 0.0
      %807 = vmatprep.subr.mxu0 0.0
      %808 = vmatpush1.msra.mxu0 0.0
      %809 = vmatprep.subr.mxu0 0.0
      %810 = vmatpush1.msra.mxu0 0.0
      %811 = vmatprep.subr.mxu0 0.0
      %812 = vmatpush1.msra.mxu0 0.0
      %813 = vmatprep.subr.mxu0 0.0
      %814 = vmatpush1.msra.mxu0 0.0
      %815 = vmatprep.subr.mxu0 0.0
      %816 = vmatpush1.msra.mxu0 0.0
      %817 = vmatprep.subr.mxu0 0.0
      %818 = vmatpush1.msra.mxu0 0.0
      %819 = vmatprep.mubr.f32.mxu0 0.0
      %820 = vmatmul.mubr.f32.gmra.mrb[0].mxu0 %v748
      %v821 = vpop.f32.mrb[0].mxu0
      %v822 = vadd.f32 %v753, %v821
      %v823 = vpop.f32.mrb[0].mxu0
      %v824 = vadd.f32 %v753, %v823
      %825 = vdwg.mxu0
      %v828 = vcombine.low %v822, %v824
      %v830 = vunpack.c.l.s4 1983009808
      %v831 = vunpack.c.0.s8 %v830
      %v832 = vlaneseq
      %v833 = vshrl.u32 %v832, 7
      %v834 = vsub.s32 %v831, %v833
      %v835 = vrot.slane %v828, %v834
      %837 = vst [vmem:[%s262] sm:$0xf] %v835
      %s838 = smul.u32 2, %s20
      %p839 = scmp.lt.s32.totalorder %s21, 1
      %s840 = scalar_select %p839, %s21, 1
      %p841 = scmp.lt.s32.totalorder %s838, 1
      %s842 = scalar_select %p841, %s838, 1
      %s843 = smul.addr %s840, 2
      %s844 = sadd.s32 %s842, %s843
      %s845 = smul.addr %s844, 2
      %s846 = scalar_lea.vmem %s5, %s845
      // Predicated region
      $region41: #{gated_freq_moe_forward.19} parent=39 // pred_check
        %p847 = pneg %p160
      $region42: #{gated_freq_moe_forward.19} parent=39 // pred_check_branch
        %849 = sbr.rel (%p847) target = $region44
      $region43: #{gated_freq_moe_forward.19} parent=39 // pred_region
        %s850 = smul.u32 2, %s20
      $region44: #{gated_freq_moe_forward.19} parent=39 // pred_fallthru
        _
    $region40: #{gated_freq_moe_forward.19} parent=5 // pred_fallthru
      _
    %p851 = scmp.le.s32.totalorder 2, %s11
    // Predicated region
    $region45: #{gated_freq_moe_forward.19} parent=5 // pred_check
      %p852 = pneg %p851
    $region46: #{gated_freq_moe_forward.19} parent=5 // pred_check_branch
      %854 = sbr.rel (%p852) target = $region48
    $region47: #{gated_freq_moe_forward.19} parent=5 // pred_region
      %s855 = ssub.s32 %s11, 2
      // Predicated region
      $region49: #{gated_freq_moe_forward.19} parent=47 // pred_check
        %p856 = pneg %p166
      $region50: #{gated_freq_moe_forward.19} parent=47 // pred_check_branch
        %858 = sbr.rel (%p856) target = $region52
      $region51: #{gated_freq_moe_forward.19} parent=47 // pred_region
        %s859 = smul.u32 2, %s22
        %p860 = scmp.lt.s32.totalorder %s23, 1
        %s861 = scalar_select %p860, %s23, 1
        %p862 = scmp.lt.s32.totalorder %s859, 1
        %s863 = scalar_select %p862, %s859, 1
        %s864 = smul.addr %s861, 2
        %s865 = sadd.s32 %s863, %s864
        %s866 = smul.addr %s865, 2
        %s867 = scalar_lea.vmem %s5, %s866
      $region52: #{gated_freq_moe_forward.19} parent=47 // pred_fallthru
        _
    $region48: #{gated_freq_moe_forward.19} parent=5 // pred_fallthru
      _
  $region6: #{gated_freq_moe_forward.19} parent=0 // loop_footer
    %s15 = sadd.s32 1, %s11
  $region7: #{gated_freq_moe_forward.19} parent=0 // loop_footer_branch
    %10 = sbr.rel target = $region3
  $region8: #{gated_freq_moe_forward.19} parent=0 // loop_exit
    _

</llo_original>
